<compile_context>
chip_gen: v5e
topology: v5e:2x2
jax: 0.10.0
libtpu: 0.0.40
codegen_flags: <defaults>
</compile_context>

<pallas_src>
import functools

import jax
import jax.numpy as jnp
from jax import lax
from jax.experimental import pallas as pl
from jax.experimental.pallas import tpu as pltpu

# ----------------------- "config" constants -----------------------
IN_CHANNEL = 4                      # config.MODEL.IN_CHANNEL
KERNEL_SIZES = (1, 3, 5)            # config.MODEL.SPATIAL.KERNEL_SIZES (TYPE=0)
SPATIAL_OUT_CHANNEL = 64            # config.MODEL.SPATIAL.OUT_CHANNEL
SPATIAL_FEATS = len(KERNEL_SIZES) * SPATIAL_OUT_CHANNEL   # 192
HIDDEN_DIM = 128                    # config.MODEL.TEMPORAL.HIDDEN_DIM
MAX_DELTA_T = 8                     # config.MODEL.TEMPORAL.MAX_DELTA_T
ADD_TYPE = 0                        # config.MODEL.TEMPORAL.ADDING_TYPE (add)
PROMPT_TYPE = 0                     # config.MODEL.PROMPT_TYPE
USE_LAYER_NORM = True               # config.MODEL.USE_LAYER_NORM
SE_REDUCTION = 2                    # SEResNet reduction_ratio


def _round_up(x, m):
    return (x + m - 1) // m * m


def _pick_tm(m, pref, min_blocks=4):
    """Row-tile size: as big as `pref`, but keep >= min_blocks grid blocks so
    both v7x TensorCores (and the pipeline) stay busy.  Always a multiple of 8."""
    tm = max(8, min(pref, _round_up(m, 8)))
    while tm > 8 and pl.cdiv(m, tm) < min_blocks:
        tm = max(8, tm // 2)
    return tm


# ----------------------- Pallas kernels -----------------------

def _mm_kernel(a_ref, b_ref, bias_ref, o_ref, *, activation):
    acc = jnp.dot(a_ref[...], b_ref[...], preferred_element_type=jnp.float32)
    acc = acc + bias_ref[...]
    if activation == "relu":
        acc = jnp.maximum(acc, 0.0)
    o_ref[...] = acc.astype(o_ref.dtype)


def matmul_bias(a, b, bias=None, activation=None, out_dtype=jnp.float32,
                tm=1024):
    """(M,K) @ (K,N) + bias (+ReLU).  bf16 MXU operands, f32 accumulation.

    K and N use full-dim blocks (no wrapper-side padding, no post-slice on N);
    only M is padded up to the row-tile.  These kernels are HBM-bound, so the
    win is purely in bytes moved.
    """
    M, K = a.shape
    K2, N = b.shape
    assert K == K2
    if bias is None:
        bias = jnp.zeros((N,), jnp.float32)

    tm = _pick_tm(M, pref=tm)
    Mp = _round_up(M, tm)

    a = a.astype(jnp.bfloat16)
    if Mp != M:
        a = jnp.pad(a, ((0, Mp - M), (0, 0)))
    b = b.astype(jnp.bfloat16)
    bias = bias.astype(jnp.float32).reshape(1, N)

    out = pl.pallas_call(
        functools.partial(_mm_kernel, activation=activation),
        out_shape=jax.ShapeDtypeStruct((Mp, N), out_dtype),
        grid=(Mp // tm,),
        in_specs=[
            pl.BlockSpec((tm, K), lambda m: (m, 0)),   # K == full array dim
            pl.BlockSpec((K, N), lambda m: (0, 0)),    # full weight resident
            pl.BlockSpec((1, N), lambda m: (0, 0)),
        ],
        out_specs=pl.BlockSpec((tm, N), lambda m: (m, 0)),
        compiler_params=pltpu.CompilerParams(
            dimension_semantics=("parallel",)),
    )(a, b, bias)
    return out[:M] if Mp != M else out


def _lstm_head_kernel(x_ref, wih_ref, whh_ref, b_ref, p_ref,
                      g_ref, bln_ref, w_ref, hb_ref, o_ref, *, T, H, eps):
    """Whole LSTM time loop + prompt add + LayerNorm + Linear(H->1), fused.

    x_ref: (T, tm, F) bf16 block of the (B, T, HW, F) slab.
    o_ref: (tm, 1) f32 block of the (B, HW, 1) output.
    """
    tm = o_ref.shape[0]
    feat = x_ref.shape[-1]

    # Input projection hoisted out of the recurrence: one big MXU burst for
    # all T steps, bias broadcast added once (JAX does not CSE broadcasts).
    x_all = x_ref[...].reshape(T * tm, feat)                     # bf16
    xg = jnp.dot(x_all, wih_ref[...],
                 preferred_element_type=jnp.float32) + b_ref[...]

    h = jnp.zeros((tm, H), jnp.float32)
    c = jnp.zeros((tm, H), jnp.float32)
    # TODO(synk): for large production T switch to lax.fori_loop with a small
    # unroll factor; T is tiny here so a static unroll is fine.
    for t in range(T):
        gates = xg[t * tm:(t + 1) * tm, :] + jnp.dot(
            h.astype(jnp.bfloat16), whh_ref[...],
            preferred_element_type=jnp.float32)
        # Gate column order is (i, f, o, g): one sigmoid over a contiguous
        # (tm, 3H) slab, one tanh over (tm, H).
        sig = jax.nn.sigmoid(gates[:, :3 * H])
        i_g = sig[:, 0 * H:1 * H]
        f_g = sig[:, 1 * H:2 * H]
        o_g = sig[:, 2 * H:3 * H]
        g_g = jnp.tanh(gates[:, 3 * H:])
        c = f_g * c + i_g * g_g
        h = o_g * jnp.tanh(c)

    # ---- fused PromptMixin(add) + LayerNorm + Linear(H -> 1) on resident h.
    h = h + p_ref[...]                                   # (1,H) broadcast
    mu = jnp.mean(h, axis=-1, keepdims=True)
    xc = h - mu
    var = jnp.mean(xc * xc, axis=-1, keepdims=True)
    xn = xc * lax.rsqrt(var + eps) * g_ref[...] + bln_ref[...]
    o_ref[...] = jnp.sum(xn * w_ref[...], axis=-1, keepdims=True) + hb_ref[...]


def lstm_prompt_head(sp, w_ih, w_hh, bias, prompt, ln_g, ln_b, head_w, head_b,
                     tm=256, eps=1e-5):
    """sp: (B, T, HW, F) bf16-castable -> (B, HW, 1) f32.

    Grid (B, HW//tm); no wrapper-side transpose of the big LSTM input — the
    (T, tm, F) block is fetched straight out of the (B, T, HW, F) slab.
    """
    B, T, HW, F = sp.shape
    Hd = w_hh.shape[0]
    G = 4 * Hd

    tm = _pick_tm(HW, pref=tm, min_blocks=max(1, -(-4 // B)))
    HWp = _round_up(HW, tm)
    sp = sp.astype(jnp.bfloat16)
    if HWp != HW:
        sp = jnp.pad(sp, ((0, 0), (0, 0), (0, HWp - HW), (0, 0)))

    out = pl.pallas_call(
        functools.partial(_lstm_head_kernel, T=T, H=Hd, eps=eps),
        out_shape=jax.ShapeDtypeStruct((B, HWp, 1), jnp.float32),
        grid=(B, HWp // tm),
        in_specs=[
            pl.BlockSpec((None, T, tm, F), lambda b, m: (b, 0, m, 0)),
            pl.BlockSpec((F, G), lambda b, m: (0, 0)),
            pl.BlockSpec((Hd, G), lambda b, m: (0, 0)),
            pl.BlockSpec((1, G), lambda b, m: (0, 0)),
            pl.BlockSpec((None, 1, Hd), lambda b, m: (b, 0, 0)),   # per-batch prompt
            pl.BlockSpec((1, Hd), lambda b, m: (0, 0)),
            pl.BlockSpec((1, Hd), lambda b, m: (0, 0)),
            pl.BlockSpec((1, Hd), lambda b, m: (0, 0)),
            pl.BlockSpec((1, 1), lambda b, m: (0, 0)),
        ],
        out_specs=pl.BlockSpec((None, tm, 1), lambda b, m: (b, m, 0)),
        compiler_params=pltpu.CompilerParams(
            dimension_semantics=("parallel", "parallel")),
    )(sp,
      w_ih.astype(jnp.bfloat16),
      w_hh.astype(jnp.bfloat16),
      bias.astype(jnp.float32).reshape(1, G),
      prompt.astype(jnp.float32),
      ln_g.reshape(1, Hd).astype(jnp.float32),
      ln_b.reshape(1, Hd).astype(jnp.float32),
      head_w.reshape(1, Hd).astype(jnp.float32),
      head_b.reshape(1, 1).astype(jnp.float32))
    return out[:, :HW] if HWp != HW else out


# ----------------------- JAX glue (data movement only) -----------------------

def im2col_nhwc(x, k):
    """(N, H, W, C) -> (N*H*W, k*k*C) patches, 'same' zero padding.
    Feature order is (dy, dx, c), matching weight layout (k*k*C, OUT)."""
    N, H, W, C = x.shape
    pad = k // 2
    xp = jnp.pad(x, ((0, 0), (pad, pad), (pad, pad), (0, 0)))
    taps = [xp[:, dy:dy + H, dx:dx + W, :]
            for dy in range(k) for dx in range(k)]
    p = jnp.concatenate(taps, axis=-1)                 # (N, H, W, k*k*C)
    return p.reshape(N * H * W, k * k * C)
    # TODO(synk): for large images, move patch extraction in-kernel (halo DMA
    # + shifted VMEM loads) to avoid materializing the k*k expansion in HBM.


def forward(params, ncmwf, lead_time):
    """ncmwf: (B, T, C, H, W) float32; lead_time: (B,) int -> (B, H, W, 1)."""
    B, T, C, H, W = ncmwf.shape
    BT = B * T
    # Single layout change on the smallest tensor: NCHW -> NHWC.
    x = jnp.transpose(ncmwf.reshape(BT, C, H, W), (0, 2, 3, 1))
    x = x.astype(jnp.float32)                                   # (BT,H,W,C)

    # ---- channel_attn: SEResNet(C -> C, reduction_ratio=2) ----
    cols3 = im2col_nhwc(x.astype(jnp.bfloat16), 3)              # (M, 9C) bf16
    y = matmul_bias(cols3, params["se_conv_w"], params["se_conv_b"],
                    activation="relu")                          # (M, C) f32
    y = y.reshape(BT, H, W, C)
    s = jnp.mean(y, axis=(1, 2))                                # squeeze (BT,C)
    s = jax.nn.relu(s @ params["se_fc1_w"] + params["se_fc1_b"])
    s = jax.nn.sigmoid(s @ params["se_fc2_w"] + params["se_fc2_b"])
    x = x + y * s[:, None, None, :]                             # SE gate + residual

    # ---- spatial_exactor: Combined_Spatial (k = 1,3,5 branches fused into
    # one 5x5 matmul; smaller kernels are zero-embedded -> mathematically exact)
    cols5 = im2col_nhwc(x.astype(jnp.bfloat16), 5)              # (M, 25C) bf16
    sp = matmul_bias(cols5, params["spatial_w"], params["spatial_b"],
                     activation="relu",
                     out_dtype=jnp.bfloat16)                    # (M, 192) bf16

    # ---- temporal LSTM + PromptMixin(add) + LayerNorm + head, fused ----
    sp = sp.reshape(B, T, H * W, SPATIAL_FEATS)                 # free reshape
    # PyTorch raises for out-of-range lead_time; under jit we clamp instead.
    idx = jnp.clip(lead_time.astype(jnp.int32) - 7, 0, MAX_DELTA_T - 1)
    prompt = params["delta_t"][idx][:, None, :]                 # (B, 1, HIDDEN)
    out = lstm_prompt_head(sp, params["w_ih"], params["w_hh"],
                           params["b_lstm"], prompt,
                           params["ln_g"], params["ln_b"],
                           params["head_w"], params["head_b"])  # (B, HW, 1)
    return out.reshape(B, H, W, 1)


# ----------------------- deterministic parameter init -----------------------

def init_params(key):
    C = IN_CHANNEL
    OC = SPATIAL_OUT_CHANNEL
    F = SPATIAL_FEATS
    Hd = HIDDEN_DIM
    r = max(1, C // SE_REDUCTION)

    def nrm(k, shape, scale=0.05):
        return scale * jax.random.normal(k, shape, jnp.float32)

    keys = iter(jax.random.split(key, 16))

    # Combined_Spatial: each k in {1,3,5} branch embedded into a 5x5 kernel,
    # weight rows ordered (dy, dx, c) to match im2col_nhwc.
    kmax = max(KERNEL_SIZES)
    branches = []
    for ksz in KERNEL_SIZES:
        w = nrm(next(keys), (ksz, ksz, C, OC))
        off = (kmax - ksz) // 2
        w_full = jnp.zeros((kmax, kmax, C, OC), jnp.float32)
        w_full = w_full.at[off:off + ksz, off:off + ksz, :, :].set(w)
        branches.append(w_full)
    spatial_w = jnp.concatenate(branches, axis=-1).reshape(kmax * kmax * C, F)

    params = {
        # SEResNet (channel_attn): 3x3 conv weight rows ordered (dy, dx, c)
        "se_conv_w": nrm(next(keys), (9 * C, C)),
        "se_conv_b": jnp.zeros((C,), jnp.float32),
        "se_fc1_w": nrm(next(keys), (C, r), scale=0.5),
        "se_fc1_b": jnp.zeros((r,), jnp.float32),
        "se_fc2_w": nrm(next(keys), (r, C), scale=0.5),
        "se_fc2_b": jnp.zeros((C,), jnp.float32),
        # Combined_Spatial
        "spatial_w": spatial_w,
        "spatial_b": jnp.zeros((F,), jnp.float32),
        # TemporalExactor (single-layer LSTM); gate column order (i, f, o, g)
        "w_ih": nrm(next(keys), (F, 4 * Hd)),
        "w_hh": nrm(next(keys), (Hd, 4 * Hd)),
        "b_lstm": jnp.zeros((4 * Hd,), jnp.float32),
        # PromptMixin
        "delta_t": jax.random.normal(next(keys), (MAX_DELTA_T, Hd),
                                     jnp.float32),
        # PredictionHead
        "ln_g": jnp.ones((Hd,), jnp.float32),
        "ln_b": jnp.zeros((Hd,), jnp.float32),
        "head_w": nrm(next(keys), (Hd,)),
        "head_b": jnp.zeros((1,), jnp.float32),
    }
    return params


# ----------------------- main -----------------------

if __name__ == "__main__":
    key = jax.random.PRNGKey(0)
    kx, kp = jax.random.split(key)

    B, T, C, H, W = 2, 2, IN_CHANNEL, 16, 16
    ncmwf = jax.random.normal(kx, (B, T, C, H, W), jnp.float32)
    lead_time = jnp.array([7, 9], jnp.int32)   # valid range [7, 7 + MAX_DELTA_T)

    params = init_params(kp)

    fwd = jax.jit(forward)
    out = jax.block_until_ready(fwd(params, ncmwf, lead_time))

    assert out.shape == (B, H, W, 1), out.shape
    assert bool(jnp.all(jnp.isfinite(out)))
    print("KERNEL_OK")
</pallas_src>

<mosaic_0001>
module attributes {stable_mosaic.version = 11 : i64} {
  func.func @_mm_kernel(%arg0: i32, %arg1: memref<256x36xbf16, #tpu.memory_space<vmem>>, %arg2: memref<36x4xbf16, #tpu.memory_space<vmem>>, %arg3: memref<1x4xf32, #tpu.memory_space<vmem>>, %arg4: memref<256x4xf32, #tpu.memory_space<vmem>>) attributes {dimension_semantics = [#tpu.dimension_semantics<parallel>], iteration_bounds = array<i64: 4>, scalar_prefetch = 0 : i64, scratch_operands = 0 : i64, tpu.core_type = #tpu.core_type<tc>, window_params = [{transform_indices = @transform_0, window_bounds = array<i64: 256, 36>}, {pipeline_mode = #tpu.pipeline_mode<synchronous>, transform_indices = @transform_1, window_bounds = array<i64: 36, 4>}, {pipeline_mode = #tpu.pipeline_mode<synchronous>, transform_indices = @transform_2, window_bounds = array<i64: 1, 4>}, {transform_indices = @transform_3, window_bounds = array<i64: 256, 4>}]} {
    %c0 = arith.constant 0 : index
    %c0_0 = arith.constant 0 : index
    %0 = vector.load %arg1[%c0, %c0_0] : memref<256x36xbf16, #tpu.memory_space<vmem>>, vector<256x36xbf16>
    %c0_1 = arith.constant 0 : index
    %c0_2 = arith.constant 0 : index
    %1 = vector.load %arg2[%c0_1, %c0_2] : memref<36x4xbf16, #tpu.memory_space<vmem>>, vector<36x4xbf16>
    %cst = arith.constant dense<0.000000e+00> : vector<256x4xf32>
    %2 = tpu.matmul %0, %1, %cst {dimension_numbers = #tpu.dot_dimension_numbers<[1], [0], [0], [1], [0, 0, 1, 1], [], []>} : vector<256x36xbf16>, vector<36x4xbf16>, vector<256x4xf32> -> vector<256x4xf32>
    %c0_3 = arith.constant 0 : index
    %c0_4 = arith.constant 0 : index
    %3 = vector.load %arg3[%c0_3, %c0_4] : memref<1x4xf32, #tpu.memory_space<vmem>>, vector<1x4xf32>
    %4 = vector.broadcast %3 : vector<1x4xf32> to vector<256x4xf32>
    %5 = arith.addf %2, %4 : vector<256x4xf32>
    %cst_5 = arith.constant 0.000000e+00 : f32
    %6 = vector.broadcast %cst_5 : f32 to vector<256x4xf32>
    %7 = arith.maximumf %5, %6 : vector<256x4xf32>
    %c0_6 = arith.constant 0 : index
    %c0_7 = arith.constant 0 : index
    %8 = vector.load %arg4[%c0_6, %c0_7] : memref<256x4xf32, #tpu.memory_space<vmem>>, vector<256x4xf32>
    tpu.vector_store %arg4[%c0_6, %c0_7], %7 {strides = array<i32>} : memref<256x4xf32, #tpu.memory_space<vmem>>, vector<256x4xf32>,
    return
  }
  func.func @transform_0(%arg0: i32) -> (i32, i32) {
    %c0_i32 = arith.constant 0 : i32
    %c0_i32_0 = arith.constant 0 : i32
    return %arg0, %c0_i32 : i32, i32
  }
  func.func @transform_1(%arg0: i32) -> (i32, i32) {
    %c0_i32 = arith.constant 0 : i32
    %c0_i32_0 = arith.constant 0 : i32
    %c0_i32_1 = arith.constant 0 : i32
    return %c0_i32, %c0_i32_0 : i32, i32
  }
  func.func @transform_2(%arg0: i32) -> (i32, i32) {
    %c0_i32 = arith.constant 0 : i32
    %c0_i32_0 = arith.constant 0 : i32
    %c0_i32_1 = arith.constant 0 : i32
    return %c0_i32, %c0_i32_0 : i32, i32
  }
  func.func @transform_3(%arg0: i32) -> (i32, i32) {
    %c0_i32 = arith.constant 0 : i32
    %c0_i32_0 = arith.constant 0 : i32
    return %arg0, %c0_i32 : i32, i32
  }
}

module attributes {stable_mosaic.version = 11 : i64} {
  func.func @_mm_kernel(%arg0: i32, %arg1: memref<256x100xbf16, #tpu.memory_space<vmem>>, %arg2: memref<100x192xbf16, #tpu.memory_space<vmem>>, %arg3: memref<1x192xf32, #tpu.memory_space<vmem>>, %arg4: memref<256x192xbf16, #tpu.memory_space<vmem>>) attributes {dimension_semantics = [#tpu.dimension_semantics<parallel>], iteration_bounds = array<i64: 4>, scalar_prefetch = 0 : i64, scratch_operands = 0 : i64, tpu.core_type = #tpu.core_type<tc>, window_params = [{transform_indices = @transform_0, window_bounds = array<i64: 256, 100>}, {pipeline_mode = #tpu.pipeline_mode<synchronous>, transform_indices = @transform_1, window_bounds = array<i64: 100, 192>}, {pipeline_mode = #tpu.pipeline_mode<synchronous>, transform_indices = @transform_2, window_bounds = array<i64: 1, 192>}, {transform_indices = @transform_3, window_bounds = array<i64: 256, 192>}]} {
    %c0 = arith.constant 0 : index
    %c0_0 = arith.constant 0 : index
    %0 = vector.load %arg1[%c0, %c0_0] : memref<256x100xbf16, #tpu.memory_space<vmem>>, vector<256x100xbf16>
    %c0_1 = arith.constant 0 : index
    %c0_2 = arith.constant 0 : index
    %1 = vector.load %arg2[%c0_1, %c0_2] : memref<100x192xbf16, #tpu.memory_space<vmem>>, vector<100x192xbf16>
    %cst = arith.constant dense<0.000000e+00> : vector<256x192xf32>
    %2 = tpu.matmul %0, %1, %cst {dimension_numbers = #tpu.dot_dimension_numbers<[1], [0], [0], [1], [0, 0, 1, 1], [], []>} : vector<256x100xbf16>, vector<100x192xbf16>, vector<256x192xf32> -> vector<256x192xf32>
    %c0_3 = arith.constant 0 : index
    %c0_4 = arith.constant 0 : index
    %3 = vector.load %arg3[%c0_3, %c0_4] : memref<1x192xf32, #tpu.memory_space<vmem>>, vector<1x192xf32>
    %4 = vector.broadcast %3 : vector<1x192xf32> to vector<256x192xf32>
    %5 = arith.addf %2, %4 : vector<256x192xf32>
    %cst_5 = arith.constant 0.000000e+00 : f32
    %6 = vector.broadcast %cst_5 : f32 to vector<256x192xf32>
    %7 = arith.maximumf %5, %6 : vector<256x192xf32>
    %8 = arith.truncf %7 : vector<256x192xf32> to vector<256x192xbf16>
    %c0_6 = arith.constant 0 : index
    %c0_7 = arith.constant 0 : index
    %9 = vector.load %arg4[%c0_6, %c0_7] : memref<256x192xbf16, #tpu.memory_space<vmem>>, vector<256x192xbf16>
    tpu.vector_store %arg4[%c0_6, %c0_7], %8 {strides = array<i32>} : memref<256x192xbf16, #tpu.memory_space<vmem>>, vector<256x192xbf16>,
    return
  }
  func.func @transform_0(%arg0: i32) -> (i32, i32) {
    %c0_i32 = arith.constant 0 : i32
    %c0_i32_0 = arith.constant 0 : i32
    return %arg0, %c0_i32 : i32, i32
  }
  func.func @transform_1(%arg0: i32) -> (i32, i32) {
    %c0_i32 = arith.constant 0 : i32
    %c0_i32_0 = arith.constant 0 : i32
    %c0_i32_1 = arith.constant 0 : i32
    return %c0_i32, %c0_i32_0 : i32, i32
  }
  func.func @transform_2(%arg0: i32) -> (i32, i32) {
    %c0_i32 = arith.constant 0 : i32
    %c0_i32_0 = arith.constant 0 : i32
    %c0_i32_1 = arith.constant 0 : i32
    return %c0_i32, %c0_i32_0 : i32, i32
  }
  func.func @transform_3(%arg0: i32) -> (i32, i32) {
    %c0_i32 = arith.constant 0 : i32
    %c0_i32_0 = arith.constant 0 : i32
    return %arg0, %c0_i32 : i32, i32
  }
}

module attributes {stable_mosaic.version = 11 : i64} {
  func.func @_lstm_head_kernel(%arg0: i32, %arg1: i32, %arg2: memref<1x2x128x192xbf16, #tpu.memory_space<vmem>>, %arg3: memref<192x512xbf16, #tpu.memory_space<vmem>>, %arg4: memref<128x512xbf16, #tpu.memory_space<vmem>>, %arg5: memref<1x512xf32, #tpu.memory_space<vmem>>, %arg6: memref<1x1x128xf32, #tpu.memory_space<vmem>>, %arg7: memref<1x128xf32, #tpu.memory_space<vmem>>, %arg8: memref<1x128xf32, #tpu.memory_space<vmem>>, %arg9: memref<1x128xf32, #tpu.memory_space<vmem>>, %arg10: memref<1x1xf32, #tpu.memory_space<vmem>>, %arg11: memref<1x128x1xf32, #tpu.memory_space<vmem>>) attributes {dimension_semantics = [#tpu.dimension_semantics<parallel>, #tpu.dimension_semantics<parallel>], iteration_bounds = array<i64: 2, 2>, scalar_prefetch = 0 : i64, scratch_operands = 0 : i64, tpu.core_type = #tpu.core_type<tc>, window_params = [{transform_indices = @transform_0, window_bounds = array<i64: 1, 2, 128, 192>}, {pipeline_mode = #tpu.pipeline_mode<synchronous>, transform_indices = @transform_1, window_bounds = array<i64: 192, 512>}, {pipeline_mode = #tpu.pipeline_mode<synchronous>, transform_indices = @transform_2, window_bounds = array<i64: 128, 512>}, {pipeline_mode = #tpu.pipeline_mode<synchronous>, transform_indices = @transform_3, window_bounds = array<i64: 1, 512>}, {transform_indices = @transform_4, window_bounds = array<i64: 1, 1, 128>}, {pipeline_mode = #tpu.pipeline_mode<synchronous>, transform_indices = @transform_5, window_bounds = array<i64: 1, 128>}, {pipeline_mode = #tpu.pipeline_mode<synchronous>, transform_indices = @transform_6, window_bounds = array<i64: 1, 128>}, {pipeline_mode = #tpu.pipeline_mode<synchronous>, transform_indices = @transform_7, window_bounds = array<i64: 1, 128>}, {pipeline_mode = #tpu.pipeline_mode<synchronous>, transform_indices = @transform_8, window_bounds = array<i64: 1, 1>}, {transform_indices = @transform_9, window_bounds = array<i64: 1, 128, 1>}]} {
    %c0 = arith.constant 0 : index
    %c0_0 = arith.constant 0 : index
    %c0_1 = arith.constant 0 : index
    %c0_2 = arith.constant 0 : index
    %0 = vector.load %arg2[%c0, %c0_0, %c0_1, %c0_2] : memref<1x2x128x192xbf16, #tpu.memory_space<vmem>>, vector<1x2x128x192xbf16>
    %1 = vector.shape_cast %0 : vector<1x2x128x192xbf16> to vector<2x128x192xbf16>
    %2 = vector.shape_cast %1 : vector<2x128x192xbf16> to vector<256x192xbf16>
    %c0_3 = arith.constant 0 : index
    %c0_4 = arith.constant 0 : index
    %3 = vector.load %arg3[%c0_3, %c0_4] : memref<192x512xbf16, #tpu.memory_space<vmem>>, vector<192x512xbf16>
    %cst = arith.constant dense<0.000000e+00> : vector<256x512xf32>
    %4 = tpu.matmul %2, %3, %cst {dimension_numbers = #tpu.dot_dimension_numbers<[1], [0], [0], [1], [0, 0, 1, 1], [], []>} : vector<256x192xbf16>, vector<192x512xbf16>, vector<256x512xf32> -> vector<256x512xf32>
    %c0_5 = arith.constant 0 : index
    %c0_6 = arith.constant 0 : index
    %5 = vector.load %arg5[%c0_5, %c0_6] : memref<1x512xf32, #tpu.memory_space<vmem>>, vector<1x512xf32>
    %6 = vector.broadcast %5 : vector<1x512xf32> to vector<256x512xf32>
    %7 = arith.addf %4, %6 : vector<256x512xf32>
    %cst_7 = arith.constant 0.000000e+00 : f32
    %8 = vector.broadcast %cst_7 : f32 to vector<128x128xf32>
    %cst_8 = arith.constant 0.000000e+00 : f32
    %9 = vector.broadcast %cst_8 : f32 to vector<128x128xf32>
    %10 = vector.extract_strided_slice %7 {offsets = [0, 0], sizes = [128, 512], strides = [1, 1]} : vector<256x512xf32> to vector<128x512xf32>
    %11 = arith.truncf %8 : vector<128x128xf32> to vector<128x128xbf16>
    %c0_9 = arith.constant 0 : index
    %c0_10 = arith.constant 0 : index
    %12 = vector.load %arg4[%c0_9, %c0_10] : memref<128x512xbf16, #tpu.memory_space<vmem>>, vector<128x512xbf16>
    %cst_11 = arith.constant dense<0.000000e+00> : vector<128x512xf32>
    %13 = tpu.matmul %11, %12, %cst_11 {dimension_numbers = #tpu.dot_dimension_numbers<[1], [0], [0], [1], [0, 0, 1, 1], [], []>} : vector<128x128xbf16>, vector<128x512xbf16>, vector<128x512xf32> -> vector<128x512xf32>
    %14 = arith.addf %10, %13 : vector<128x512xf32>
    %15 = vector.extract_strided_slice %14 {offsets = [0, 0], sizes = [128, 384], strides = [1, 1]} : vector<128x512xf32> to vector<128x384xf32>
    %16 = arith.negf %15 : vector<128x384xf32>
    %17 = math.exp %16 : vector<128x384xf32>
    %cst_12 = arith.constant 1.000000e+00 : f32
    %18 = vector.broadcast %cst_12 : f32 to vector<128x384xf32>
    %19 = arith.addf %18, %17 : vector<128x384xf32>
    %20 = arith.divf %18, %19 : vector<128x384xf32>
    %21 = vector.extract_strided_slice %20 {offsets = [0, 0], sizes = [128, 128], strides = [1, 1]} : vector<128x384xf32> to vector<128x128xf32>
    %22 = vector.extract_strided_slice %20 {offsets = [0, 128], sizes = [128, 128], strides = [1, 1]} : vector<128x384xf32> to vector<128x128xf32>
    %23 = vector.extract_strided_slice %20 {offsets = [0, 256], sizes = [128, 128], strides = [1, 1]} : vector<128x384xf32> to vector<128x128xf32>
    %24 = vector.extract_strided_slice %14 {offsets = [0, 384], sizes = [128, 128], strides = [1, 1]} : vector<128x512xf32> to vector<128x128xf32>
    %25 = math.tanh %24 : vector<128x128xf32>
    %26 = arith.mulf %22, %9 : vector<128x128xf32>
    %27 = arith.mulf %21, %25 : vector<128x128xf32>
    %28 = arith.addf %26, %27 : vector<128x128xf32>
    %29 = math.tanh %28 : vector<128x128xf32>
    %30 = arith.mulf %23, %29 : vector<128x128xf32>
    %31 = vector.extract_strided_slice %7 {offsets = [128, 0], sizes = [128, 512], strides = [1, 1]} : vector<256x512xf32> to vector<128x512xf32>
    %32 = arith.truncf %30 : vector<128x128xf32> to vector<128x128xbf16>
    %c0_13 = arith.constant 0 : index
    %c0_14 = arith.constant 0 : index
    %33 = vector.load %arg4[%c0_13, %c0_14] : memref<128x512xbf16, #tpu.memory_space<vmem>>, vector<128x512xbf16>
    %cst_15 = arith.constant dense<0.000000e+00> : vector<128x512xf32>
    %34 = tpu.matmul %32, %33, %cst_15 {dimension_numbers = #tpu.dot_dimension_numbers<[1], [0], [0], [1], [0, 0, 1, 1], [], []>} : vector<128x128xbf16>, vector<128x512xbf16>, vector<128x512xf32> -> vector<128x512xf32>
    %35 = arith.addf %31, %34 : vector<128x512xf32>
    %36 = vector.extract_strided_slice %35 {offsets = [0, 0], sizes = [128, 384], strides = [1, 1]} : vector<128x512xf32> to vector<128x384xf32>
    %37 = arith.negf %36 : vector<128x384xf32>
    %38 = math.exp %37 : vector<128x384xf32>
    %cst_16 = arith.constant 1.000000e+00 : f32
    %39 = vector.broadcast %cst_16 : f32 to vector<128x384xf32>
    %40 = arith.addf %39, %38 : vector<128x384xf32>
    %41 = arith.divf %39, %40 : vector<128x384xf32>
    %42 = vector.extract_strided_slice %41 {offsets = [0, 0], sizes = [128, 128], strides = [1, 1]} : vector<128x384xf32> to vector<128x128xf32>
    %43 = vector.extract_strided_slice %41 {offsets = [0, 128], sizes = [128, 128], strides = [1, 1]} : vector<128x384xf32> to vector<128x128xf32>
    %44 = vector.extract_strided_slice %41 {offsets = [0, 256], sizes = [128, 128], strides = [1, 1]} : vector<128x384xf32> to vector<128x128xf32>
    %45 = vector.extract_strided_slice %35 {offsets = [0, 384], sizes = [128, 128], strides = [1, 1]} : vector<128x512xf32> to vector<128x128xf32>
    %46 = math.tanh %45 : vector<128x128xf32>
    %47 = arith.mulf %43, %28 : vector<128x128xf32>
    %48 = arith.mulf %42, %46 : vector<128x128xf32>
    %49 = arith.addf %47, %48 : vector<128x128xf32>
    %50 = math.tanh %49 : vector<128x128xf32>
    %51 = arith.mulf %44, %50 : vector<128x128xf32>
    %c0_17 = arith.constant 0 : index
    %c0_18 = arith.constant 0 : index
    %c0_19 = arith.constant 0 : index
    %52 = vector.load %arg6[%c0_17, %c0_18, %c0_19] : memref<1x1x128xf32, #tpu.memory_space<vmem>>, vector<1x1x128xf32>
    %53 = vector.shape_cast %52 : vector<1x1x128xf32> to vector<1x128xf32>
    %54 = vector.broadcast %53 : vector<1x128xf32> to vector<128x128xf32>
    %55 = arith.addf %51, %54 : vector<128x128xf32>
    %cst_20 = arith.constant dense<0.000000e+00> : vector<128xf32>
    %56 = vector.multi_reduction <add>, %55, %cst_20 [1] : vector<128x128xf32> to vector<128xf32>
    %57 = vector.shape_cast %56 : vector<128xf32> to vector<128x1xf32>
    %cst_21 = arith.constant 1.280000e+02 : f32
    %58 = vector.broadcast %cst_21 : f32 to vector<128x1xf32>
    %59 = arith.divf %57, %58 : vector<128x1xf32>
    %60 = vector.broadcast %59 : vector<128x1xf32> to vector<128x128xf32>
    %61 = arith.subf %55, %60 : vector<128x128xf32>
    %62 = arith.mulf %61, %61 : vector<128x128xf32>
    %cst_22 = arith.constant dense<0.000000e+00> : vector<128xf32>
    %63 = vector.multi_reduction <add>, %62, %cst_22 [1] : vector<128x128xf32> to vector<128xf32>
    %64 = vector.shape_cast %63 : vector<128xf32> to vector<128x1xf32>
    %cst_23 = arith.constant 1.280000e+02 : f32
    %65 = vector.broadcast %cst_23 : f32 to vector<128x1xf32>
    %66 = arith.divf %64, %65 : vector<128x1xf32>
    %cst_24 = arith.constant 9.99999974E-6 : f32
    %67 = vector.broadcast %cst_24 : f32 to vector<128x1xf32>
    %68 = arith.addf %66, %67 : vector<128x1xf32>
    %69 = math.rsqrt %68 : vector<128x1xf32>
    %70 = vector.broadcast %69 : vector<128x1xf32> to vector<128x128xf32>
    %71 = arith.mulf %61, %70 : vector<128x128xf32>
    %c0_25 = arith.constant 0 : index
    %c0_26 = arith.constant 0 : index
    %72 = vector.load %arg7[%c0_25, %c0_26] : memref<1x128xf32, #tpu.memory_space<vmem>>, vector<1x128xf32>
    %73 = vector.broadcast %72 : vector<1x128xf32> to vector<128x128xf32>
    %74 = arith.mulf %71, %73 : vector<128x128xf32>
    %c0_27 = arith.constant 0 : index
    %c0_28 = arith.constant 0 : index
    %75 = vector.load %arg8[%c0_27, %c0_28] : memref<1x128xf32, #tpu.memory_space<vmem>>, vector<1x128xf32>
    %76 = vector.broadcast %75 : vector<1x128xf32> to vector<128x128xf32>
    %77 = arith.addf %74, %76 : vector<128x128xf32>
    %c0_29 = arith.constant 0 : index
    %c0_30 = arith.constant 0 : index
    %78 = vector.load %arg9[%c0_29, %c0_30] : memref<1x128xf32, #tpu.memory_space<vmem>>, vector<1x128xf32>
    %79 = vector.broadcast %78 : vector<1x128xf32> to vector<128x128xf32>
    %80 = arith.mulf %77, %79 : vector<128x128xf32>
    %cst_31 = arith.constant dense<0.000000e+00> : vector<128xf32>
    %81 = vector.multi_reduction <add>, %80, %cst_31 [1] : vector<128x128xf32> to vector<128xf32>
    %82 = vector.shape_cast %81 : vector<128xf32> to vector<128x1xf32>
    %c0_32 = arith.constant 0 : index
    %c0_33 = arith.constant 0 : index
    %83 = vector.load %arg10[%c0_32, %c0_33] : memref<1x1xf32, #tpu.memory_space<vmem>>, vector<1x1xf32>
    %84 = vector.broadcast %83 : vector<1x1xf32> to vector<128x1xf32>
    %85 = arith.addf %82, %84 : vector<128x1xf32>
    %c0_34 = arith.constant 0 : index
    %c0_35 = arith.constant 0 : index
    %c0_36 = arith.constant 0 : index
    %86 = vector.load %arg11[%c0_34, %c0_35, %c0_36] : memref<1x128x1xf32, #tpu.memory_space<vmem>>, vector<1x128x1xf32>
    %87 = vector.shape_cast %86 : vector<1x128x1xf32> to vector<128x1xf32>
    %88 = vector.shape_cast %85 : vector<128x1xf32> to vector<1x128x1xf32>
    tpu.vector_store %arg11[%c0_34, %c0_35, %c0_36], %88 {strides = array<i32>} : memref<1x128x1xf32, #tpu.memory_space<vmem>>, vector<1x128x1xf32>,
    return
  }
  func.func @transform_0(%arg0: i32, %arg1: i32) -> (i32, i32, i32, i32) {
    %c0_i32 = arith.constant 0 : i32
    %c0_i32_0 = arith.constant 0 : i32
    %c0_i32_1 = arith.constant 0 : i32
    return %arg0, %c0_i32, %arg1, %c0_i32_0 : i32, i32, i32, i32
  }
  func.func @transform_1(%arg0: i32, %arg1: i32) -> (i32, i32) {
    %c0_i32 = arith.constant 0 : i32
    %c0_i32_0 = arith.constant 0 : i32
    %c0_i32_1 = arith.constant 0 : i32
    return %c0_i32, %c0_i32_0 : i32, i32
  }
  func.func @transform_2(%arg0: i32, %arg1: i32) -> (i32, i32) {
    %c0_i32 = arith.constant 0 : i32
    %c0_i32_0 = arith.constant 0 : i32
    %c0_i32_1 = arith.constant 0 : i32
    return %c0_i32, %c0_i32_0 : i32, i32
  }
  func.func @transform_3(%arg0: i32, %arg1: i32) -> (i32, i32) {
    %c0_i32 = arith.constant 0 : i32
    %c0_i32_0 = arith.constant 0 : i32
    %c0_i32_1 = arith.constant 0 : i32
    return %c0_i32, %c0_i32_0 : i32, i32
  }
  func.func @transform_4(%arg0: i32, %arg1: i32) -> (i32, i32, i32) {
    %c0_i32 = arith.constant 0 : i32
    %c0_i32_0 = arith.constant 0 : i32
    %c0_i32_1 = arith.constant 0 : i32
    return %arg0, %c0_i32, %c0_i32_0 : i32, i32, i32
  }
  func.func @transform_5(%arg0: i32, %arg1: i32) -> (i32, i32) {
    %c0_i32 = arith.constant 0 : i32
    %c0_i32_0 = arith.constant 0 : i32
    %c0_i32_1 = arith.constant 0 : i32
    return %c0_i32, %c0_i32_0 : i32, i32
  }
  func.func @transform_6(%arg0: i32, %arg1: i32) -> (i32, i32) {
    %c0_i32 = arith.constant 0 : i32
    %c0_i32_0 = arith.constant 0 : i32
    %c0_i32_1 = arith.constant 0 : i32
    return %c0_i32, %c0_i32_0 : i32, i32
  }
  func.func @transform_7(%arg0: i32, %arg1: i32) -> (i32, i32) {
    %c0_i32 = arith.constant 0 : i32
    %c0_i32_0 = arith.constant 0 : i32
    %c0_i32_1 = arith.constant 0 : i32
    return %c0_i32, %c0_i32_0 : i32, i32
  }
  func.func @transform_8(%arg0: i32, %arg1: i32) -> (i32, i32) {
    %c0_i32 = arith.constant 0 : i32
    %c0_i32_0 = arith.constant 0 : i32
    %c0_i32_1 = arith.constant 0 : i32
    return %c0_i32, %c0_i32_0 : i32, i32
  }
  func.func @transform_9(%arg0: i32, %arg1: i32) -> (i32, i32, i32) {
    %c0_i32 = arith.constant 0 : i32
    %c0_i32_0 = arith.constant 0 : i32
    return %arg0, %arg1, %c0_i32 : i32, i32, i32
  }
}

</mosaic_0001>

<llo_original>
// kernel: forward.3
$region0: #{forward.3}
  #allocation0 [shape = 'u32[]', space=smem, size = 0x4, offset = 0x4, fixed_abs, tag = 'smem constant byte address 0x4 - core index']
  #allocation1 [shape = 'u32[72,128]{1,0:T(1,128)}', space=vmem, size = 0x9000, scoped, tag = 'internal scratch']
  %s0 = inlined_call_operand.vmem [shape: bf16[1024,36], index: 0, kind: input, shape index: {}]
  %s1 = inlined_call_operand.vmem [shape: bf16[36,4], index: 1, kind: input, shape index: {}]
  %s2 = inlined_call_operand.vmem [shape: f32[1,4], index: 2, kind: input, shape index: {}]
  %s3 = inlined_call_operand.vmem [shape: f32[1024,4], index: 3, kind: output, shape index: {}]
  %s4 = sld [smem:[#allocation0]]
  $region45: #{forward.3} parent=0
    _
  %s6 = ssub.s32 1, %s4
  %s7 = scalar_select 0, %s6, %s4
  loop: start=0, step=1, limit=6
  $region2: #{forward.3} parent=0 // loop_pre_header
    _
  $region3: #{forward.3} parent=0 // loop_header
    %s9 = sphi 0, %s13
    %p10 = scmp.ge.s32.totalorder %s9, 6
    %s19 = sphi 0, %s21
    %s22 = sphi 0, %s19
    %s23 = sphi 0, %s22
    %s39 = sphi 0, %s23
    %s43 = sphi 0, %s43
    %s45 = sphi 0, %s43
    %s46 = sphi 0, %s45
    %s60 = sphi 0, %s46
    %s64 = sphi 0, %s64
    %s66 = sphi 0, %s64
    %s67 = sphi 0, %s66
    %s81 = sphi 0, %s67
    %s87 = sphi 0, %s89
    %s90 = sphi 0, %s87
    %s91 = sphi 0, %s90
    %s107 = sphi 0, %s91
  $region4: #{forward.3} parent=0 // loop_header_branch
    %12 = sbr.rel (%p10) target = $region8
  $region5: #{forward.3} parent=0 // loop_body
    %s14 = ssub.s32 %s9, 1
    %s15 = ssub.s32 %s9, 2
    %s16 = sadd.s32 %s9, 1
    %s17 = ssub.s32 %s9, %s16
    %p18 = scmp.eq.s32.totalorder %s17, 0
    %s20 = sadd.s32 %s19, 1
    %s21 = scalar_select %p18, %s19, %s20
    %p24 = pneg %p18
    %p25 = scmp.eq.s32.totalorder %s9, 3
    %p26 = por %p24, %p25
    %p27 = scmp.ne.s32.totalorder %s19, %s22
    %p28 = scmp.eq.s32.totalorder %s9, 0
    %p29 = por %p27, %p28
    %p30 = scmp.ne.s32.totalorder %s19, %s22
    %p31 = scmp.eq.s32.totalorder %s14, 3
    %p32 = por %p30, %p31
    %p33 = scmp.ne.s32.totalorder %s22, %s23
    %p34 = scmp.eq.s32.totalorder %s14, 0
    %p35 = por %p33, %p34
    %p36 = scmp.ne.s32.totalorder %s22, %s23
    %p37 = scmp.eq.s32.totalorder %s15, 3
    %p38 = por %p36, %p37
    %p40 = scmp.ne.s32.totalorder %s23, %s39
    %p41 = scmp.eq.s32.totalorder %s15, 0
    %p42 = por %p40, %p41
    %s44 = sadd.s32 %s43, 1
    %p47 = scmp.eq.s32.totalorder %s9, 3
    %p48 = scmp.ne.s32.totalorder %s43, %s45
    %p49 = scmp.eq.s32.totalorder %s9, 0
    %p50 = por %p48, %p49
    %p51 = scmp.ne.s32.totalorder %s43, %s45
    %p52 = scmp.eq.s32.totalorder %s14, 3
    %p53 = por %p51, %p52
    %p54 = scmp.ne.s32.totalorder %s45, %s46
    %p55 = scmp.eq.s32.totalorder %s14, 0
    %p56 = por %p54, %p55
    %p57 = scmp.ne.s32.totalorder %s45, %s46
    %p58 = scmp.eq.s32.totalorder %s15, 3
    %p59 = por %p57, %p58
    %p61 = scmp.ne.s32.totalorder %s46, %s60
    %p62 = scmp.eq.s32.totalorder %s15, 0
    %p63 = por %p61, %p62
    %s65 = sadd.s32 %s64, 1
    %p68 = scmp.eq.s32.totalorder %s9, 3
    %p69 = scmp.ne.s32.totalorder %s64, %s66
    %p70 = scmp.eq.s32.totalorder %s9, 0
    %p71 = por %p69, %p70
    %p72 = scmp.ne.s32.totalorder %s64, %s66
    %p73 = scmp.eq.s32.totalorder %s14, 3
    %p74 = por %p72, %p73
    %p75 = scmp.ne.s32.totalorder %s66, %s67
    %p76 = scmp.eq.s32.totalorder %s14, 0
    %p77 = por %p75, %p76
    %p78 = scmp.ne.s32.totalorder %s66, %s67
    %p79 = scmp.eq.s32.totalorder %s15, 3
    %p80 = por %p78, %p79
    %p82 = scmp.ne.s32.totalorder %s67, %s81
    %p83 = scmp.eq.s32.totalorder %s15, 0
    %p84 = por %p82, %p83
    %s85 = ssub.s32 %s9, %s16
    %p86 = scmp.eq.s32.totalorder %s85, 0
    %s88 = sadd.s32 %s87, 1
    %s89 = scalar_select %p86, %s87, %s88
    %p92 = pneg %p86
    %p93 = scmp.eq.s32.totalorder %s9, 3
    %p94 = por %p92, %p93
    %p95 = scmp.ne.s32.totalorder %s87, %s90
    %p96 = scmp.eq.s32.totalorder %s9, 0
    %p97 = por %p95, %p96
    %p98 = scmp.ne.s32.totalorder %s87, %s90
    %p99 = scmp.eq.s32.totalorder %s14, 3
    %p100 = por %p98, %p99
    %p101 = scmp.ne.s32.totalorder %s90, %s91
    %p102 = scmp.eq.s32.totalorder %s14, 0
    %p103 = por %p101, %p102
    %p104 = scmp.ne.s32.totalorder %s90, %s91
    %p105 = scmp.eq.s32.totalorder %s15, 3
    %p106 = por %p104, %p105
    %p108 = scmp.ne.s32.totalorder %s91, %s107
    %p109 = scmp.eq.s32.totalorder %s15, 0
    %p110 = por %p108, %p109
    %p111 = scmp.le.s32.totalorder 1, %s9
    %p112 = scmp.lt.s32.totalorder %s9, 5
    %p113 = pnand %p111, %p112
    %p114 = pneg %p113
    // Predicated region
    $region9: #{forward.3} parent=5 // pred_check
      _
    $region10: #{forward.3} parent=5 // pred_check_branch
      %116 = sbr.rel (%p113) target = $region12
    $region11: #{forward.3} parent=5 // pred_region
      %s117 = ssub.s32 %s9, 1
      // Predicated region
      $region13: #{forward.3} parent=11 // pred_check
        %p118 = pneg %p56
      $region14: #{forward.3} parent=11 // pred_check_branch
        %120 = sbr.rel (%p118) target = $region16
      $region15: #{forward.3} parent=11 // pred_region
        _
      $region16: #{forward.3} parent=11 // pred_fallthru
        _
      // Predicated region
      $region17: #{forward.3} parent=11 // pred_check
        %p121 = pneg %p77
      $region18: #{forward.3} parent=11 // pred_check_branch
        %123 = sbr.rel (%p121) target = $region20
      $region19: #{forward.3} parent=11 // pred_region
        _
      $region20: #{forward.3} parent=11 // pred_fallthru
        _
    $region12: #{forward.3} parent=5 // pred_fallthru
      _
    %p124 = scmp.lt.s32.totalorder %s9, 4
    // Predicated region
    $region21: #{forward.3} parent=5 // pred_check
      %p125 = pneg %p124
    $region22: #{forward.3} parent=5 // pred_check_branch
      %127 = sbr.rel (%p125) target = $region24
    $region23: #{forward.3} parent=5 // pred_region
      // Predicated region
      $region25: #{forward.3} parent=23 // pred_check
        %p128 = pneg %p29
      $region26: #{forward.3} parent=23 // pred_check_branch
        %130 = sbr.rel (%p128) target = $region28
      $region27: #{forward.3} parent=23 // pred_region
        %s131 = smul.u32 32, %s9
        %p132 = scmp.lt.s32.totalorder %s131, 127
        %s133 = scalar_select %p132, %s131, 127
        %s134 = smul.addr %s133, 4
        %s135 = scalar_lea.vmem %s0, %s134
        %s136 = smul.u32 32, %s9
      $region28: #{forward.3} parent=23 // pred_fallthru
        _
    $region24: #{forward.3} parent=5 // pred_fallthru
      _
    %p137 = scmp.le.s32.totalorder 1, %s9
    %p138 = scmp.lt.s32.totalorder %s9, 5
    %p139 = pnand %p137, %p138
    %p140 = pneg %p139
    // Predicated region
    $region29: #{forward.3} parent=5 // pred_check
      _
    $region30: #{forward.3} parent=5 // pred_check_branch
      %142 = sbr.rel (%p139) target = $region32
    $region31: #{forward.3} parent=5 // pred_region
      %s143 = ssub.s32 %s9, 1
      %s144 = smul.u32 32, %s14
      %p145 = scmp.lt.s32.totalorder %s144, 127
      %s146 = scalar_select %p145, %s144, 127
      %s147 = smul.addr %s146, 4
      %s148 = scalar_lea.vmem %s0, %s147
      %p149 = pneg %p35
      %p150 = pneg %p32
      %p151 = pneg %p56
      %p152 = pneg %p53
      %p153 = pneg %p77
      %p154 = pneg %p74
      %p155 = pneg %p103
      %p156 = pneg %p100
      %s157 = smul.u32 32, %s14
      %p158 = scmp.lt.s32.totalorder %s157, 127
      %s159 = scalar_select %p158, %s157, 127
      %s160 = smul.addr %s159, 8
      %s161 = scalar_lea.vmem %s3, %s160
      %s162 = smul.u32 32, %s14
      %p163 = scmp.lt.s32.totalorder %s162, 127
      %s164 = scalar_select %p163, %s162, 127
      %s165 = smul.addr %s164, 4
      %s166 = scalar_lea.vmem %s0, %s165
      %s167 = smul.u32 32, %s14
      %s168 = smul.u32 32, %s14
      %p169 = scmp.lt.s32.totalorder %s168, 127
      %s170 = scalar_select %p169, %s168, 127
      %s171 = smul.addr %s170, 8
      %s172 = scalar_lea.vmem %s3, %s171
      %s173 = smul.u32 32, %s14
      %v175 = vld [vmem:[%s166] sm:$0xf]
      %v176 = vld [vmem:[%s166 + $0x4] sm:$0xf]
      %v177 = vld [vmem:[%s166 + $0x8] sm:$0xf]
      %v178 = vld [vmem:[%s166 + $0xc] sm:$0xf]
      %v179 = vld [vmem:[%s166 + $0x10] sm:$0xf]
      %v180 = vld [vmem:[%s166 + $0x14] sm:$0xf]
      %v181 = vld [vmem:[%s166 + $0x18] sm:$0xf]
      %v182 = vld [vmem:[%s166 + $0x1c] sm:$0xf]
      %v183 = vld [vmem:[%s166 + $0x20] sm:$0xf]
      %v184 = vld [vmem:[%s166 + $0x24] sm:$0xf]
      %v185 = vld [vmem:[%s166 + $0x28] sm:$0xf]
      %v186 = vld [vmem:[%s166 + $0x2c] sm:$0xf]
      %v187 = vld [vmem:[%s166 + $0x30] sm:$0xf]
      %v188 = vld [vmem:[%s166 + $0x34] sm:$0xf]
      %v189 = vld [vmem:[%s166 + $0x38] sm:$0xf]
      %v190 = vld [vmem:[%s166 + $0x3c] sm:$0xf]
      %v191 = vld [vmem:[%s166 + $0x40] sm:$0xf]
      %v192 = vld [vmem:[%s166 + $0x44] sm:$0xf]
      %v193 = vld [vmem:[%s166 + $0x48] sm:$0xf]
      %v194 = vld [vmem:[%s166 + $0x4c] sm:$0xf]
      %v195 = vld [vmem:[%s166 + $0x50] sm:$0xf]
      %v196 = vld [vmem:[%s166 + $0x54] sm:$0xf]
      %v197 = vld [vmem:[%s166 + $0x58] sm:$0xf]
      %v198 = vld [vmem:[%s166 + $0x5c] sm:$0xf]
      %v199 = vld [vmem:[%s166 + $0x60] sm:$0xf]
      %v200 = vld [vmem:[%s166 + $0x64] sm:$0xf]
      %v201 = vld [vmem:[%s166 + $0x68] sm:$0xf]
      %v202 = vld [vmem:[%s166 + $0x6c] sm:$0xf]
      %v203 = vld [vmem:[%s166 + $0x70] sm:$0xf]
      %v204 = vld [vmem:[%s166 + $0x74] sm:$0xf]
      %v205 = vld [vmem:[%s166 + $0x78] sm:$0xf]
      %v206 = vld [vmem:[%s166 + $0x7c] sm:$0xf]
      %v207 = vld [vmem:[%s1] sm:$0xf]
      %v208 = vld [vmem:[%s1 + $0x4] sm:$0xf]
      %v209 = vld [vmem:[%s1 + $0x8] sm:$0xf]
      %v210 = vld [vmem:[%s1 + $0xc] sm:$0xf]
      %v211 = vld [vmem:[%s1 + $0x10] sm:$0x3]
      %v212 = vld [vmem:[%s2] sm:$0x1]
      %v214 = vperm.slane %v212, 0
      %v248 = vunpack.c.l.b16 %v175
      %v249 = vunpack.c.l.b16 %v176
      %v250 = vunpack.c.l.b16 %v177
      %v251 = vunpack.c.l.b16 %v178
      %v252 = vunpack.c.l.b16 %v179
      %v253 = vunpack.c.l.b16 %v180
      %v254 = vunpack.c.l.b16 %v181
      %v255 = vunpack.c.l.b16 %v182
      %v256 = vunpack.c.l.b16 %v183
      %v257 = vunpack.c.l.b16 %v184
      %v258 = vunpack.c.l.b16 %v185
      %v259 = vunpack.c.l.b16 %v186
      %v260 = vunpack.c.l.b16 %v187
      %v261 = vunpack.c.l.b16 %v188
      %v262 = vunpack.c.l.b16 %v189
      %v263 = vunpack.c.l.b16 %v190
      %v264 = vunpack.c.l.b16 %v191
      %v265 = vunpack.c.l.b16 %v192
      %v266 = vunpack.c.l.b16 %v193
      %v267 = vunpack.c.l.b16 %v194
      %v268 = vunpack.c.l.b16 %v195
      %v269 = vunpack.c.l.b16 %v196
      %v270 = vunpack.c.l.b16 %v197
      %v271 = vunpack.c.l.b16 %v198
      %v272 = vunpack.c.l.b16 %v199
      %v273 = vunpack.c.l.b16 %v200
      %v274 = vunpack.c.l.b16 %v201
      %v275 = vunpack.c.l.b16 %v202
      %v276 = vunpack.c.l.b16 %v203
      %v277 = vunpack.c.l.b16 %v204
      %v278 = vunpack.c.l.b16 %v205
      %v279 = vunpack.c.l.b16 %v206
      %v280 = vpack.c.b16 %v249, %v248
      %v281 = vpack.c.b16 %v251, %v250
      %v282 = vpack.c.b16 %v253, %v252
      %v283 = vpack.c.b16 %v255, %v254
      %v284 = vpack.c.b16 %v257, %v256
      %v285 = vpack.c.b16 %v259, %v258
      %v286 = vpack.c.b16 %v261, %v260
      %v287 = vpack.c.b16 %v263, %v262
      %v288 = vpack.c.b16 %v265, %v264
      %v289 = vpack.c.b16 %v267, %v266
      %v290 = vpack.c.b16 %v269, %v268
      %v291 = vpack.c.b16 %v271, %v270
      %v292 = vpack.c.b16 %v273, %v272
      %v293 = vpack.c.b16 %v275, %v274
      %v294 = vpack.c.b16 %v277, %v276
      %v295 = vpack.c.b16 %v279, %v278
      %v301 = vunpack.c.l.b16 %v207
      %v302 = vunpack.c.l.b16 %v208
      %v303 = vunpack.c.l.b16 %v209
      %v304 = vunpack.c.l.b16 %v210
      %v305 = vunpack.c.l.b16 %v211
      %v306 = vpack.c.b16 %v302, %v301
      %v307 = vpack.c.b16 %v304, %v303
      %v308 = vpack.c.b16 %v305, %v305
      %vm311 = vcmask 293888
      %v313 = vsel %vm311, %v280, 0
      %v316 = vsel %vm311, %v281, 0
      %v319 = vsel %vm311, %v282, 0
      %v322 = vsel %vm311, %v283, 0
      %v325 = vsel %vm311, %v284, 0
      %v328 = vsel %vm311, %v285, 0
      %v331 = vsel %vm311, %v286, 0
      %v334 = vsel %vm311, %v287, 0
      %v337 = vsel %vm311, %v288, 0
      %v340 = vsel %vm311, %v289, 0
      %v343 = vsel %vm311, %v290, 0
      %v346 = vsel %vm311, %v291, 0
      %v349 = vsel %vm311, %v292, 0
      %v352 = vsel %vm311, %v293, 0
      %v355 = vsel %vm311, %v294, 0
      %v358 = vsel %vm311, %v295, 0
      %vm360 = vcmask 1041408
      %v362 = vsel %vm360, %v308, 0
      %364 = vmatpush.bf16.msra.mxu0 0
      %365 = vmatpush.bf16.msra.mxu0 0
      %366 = vmatpush.bf16.msra.mxu0 0
      %367 = vmatpush.bf16.msra.mxu0 0
      %368 = vmatpush.bf16.msra.mxu0 0
      %369 = vmatpush.bf16.msra.mxu0 %v362
      %370 = vmatpush.bf16.msra.mxu0 %v307
      %371 = vmatpush.bf16.msra.mxu0 %v306
      %372 = vmatmul.bf16.gmra.mxu0 %v313
      %v373 = vpop.f32.mrf.mxu0
      %v374 = vadd.f32 %v214, %v373
      %v375 = vpop.f32.mrf.mxu0
      %v376 = vadd.f32 %v214, %v375
      %377 = vmatmul.bf16.gmra.mxu0 %v316
      %v378 = vpop.f32.mrf.mxu0
      %v379 = vadd.f32 %v214, %v378
      %v380 = vpop.f32.mrf.mxu0
      %v381 = vadd.f32 %v214, %v380
      %382 = vmatmul.bf16.gmra.mxu0 %v319
      %v383 = vpop.f32.mrf.mxu0
      %v384 = vadd.f32 %v214, %v383
      %v385 = vpop.f32.mrf.mxu0
      %v386 = vadd.f32 %v214, %v385
      %387 = vmatmul.bf16.gmra.mxu0 %v322
      %v388 = vpop.f32.mrf.mxu0
      %v389 = vadd.f32 %v214, %v388
      %v390 = vpop.f32.mrf.mxu0
      %v391 = vadd.f32 %v214, %v390
      %392 = vmatmul.bf16.gmra.mxu0 %v325
      %v393 = vpop.f32.mrf.mxu0
      %v394 = vadd.f32 %v214, %v393
      %v395 = vpop.f32.mrf.mxu0
      %v396 = vadd.f32 %v214, %v395
      %397 = vmatmul.bf16.gmra.mxu0 %v328
      %v398 = vpop.f32.mrf.mxu0
      %v399 = vadd.f32 %v214, %v398
      %v400 = vpop.f32.mrf.mxu0
      %v401 = vadd.f32 %v214, %v400
      %402 = vmatmul.bf16.gmra.mxu0 %v331
      %v403 = vpop.f32.mrf.mxu0
      %v404 = vadd.f32 %v214, %v403
      %v405 = vpop.f32.mrf.mxu0
      %v406 = vadd.f32 %v214, %v405
      %407 = vmatmul.bf16.gmra.mxu0 %v334
      %v408 = vpop.f32.mrf.mxu0
      %v409 = vadd.f32 %v214, %v408
      %v410 = vpop.f32.mrf.mxu0
      %v411 = vadd.f32 %v214, %v410
      %412 = vmatmul.bf16.gmra.mxu0 %v337
      %v413 = vpop.f32.mrf.mxu0
      %v414 = vadd.f32 %v214, %v413
      %v415 = vpop.f32.mrf.mxu0
      %v416 = vadd.f32 %v214, %v415
      %417 = vmatmul.bf16.gmra.mxu0 %v340
      %v418 = vpop.f32.mrf.mxu0
      %v419 = vadd.f32 %v214, %v418
      %v420 = vpop.f32.mrf.mxu0
      %v421 = vadd.f32 %v214, %v420
      %422 = vmatmul.bf16.gmra.mxu0 %v343
      %v423 = vpop.f32.mrf.mxu0
      %v424 = vadd.f32 %v214, %v423
      %v425 = vpop.f32.mrf.mxu0
      %v426 = vadd.f32 %v214, %v425
      %427 = vmatmul.bf16.gmra.mxu0 %v346
      %v428 = vpop.f32.mrf.mxu0
      %v429 = vadd.f32 %v214, %v428
      %v430 = vpop.f32.mrf.mxu0
      %v431 = vadd.f32 %v214, %v430
      %432 = vmatmul.bf16.gmra.mxu0 %v349
      %v433 = vpop.f32.mrf.mxu0
      %v434 = vadd.f32 %v214, %v433
      %v435 = vpop.f32.mrf.mxu0
      %v436 = vadd.f32 %v214, %v435
      %437 = vmatmul.bf16.gmra.mxu0 %v352
      %v438 = vpop.f32.mrf.mxu0
      %v439 = vadd.f32 %v214, %v438
      %v440 = vpop.f32.mrf.mxu0
      %v441 = vadd.f32 %v214, %v440
      %442 = vmatmul.bf16.gmra.mxu0 %v355
      %v443 = vpop.f32.mrf.mxu0
      %v444 = vadd.f32 %v214, %v443
      %v445 = vpop.f32.mrf.mxu0
      %v446 = vadd.f32 %v214, %v445
      %447 = vmatmul.bf16.gmra.mxu0 %v358
      %v448 = vpop.f32.mrf.mxu0
      %v449 = vadd.f32 %v214, %v448
      %v450 = vpop.f32.mrf.mxu0
      %v451 = vadd.f32 %v214, %v450
      %452 = vdwg.mxu0
      %v453 = vmax.f32 %v374, 0.0
      %v454 = vmax.f32 %v376, 0.0
      %v455 = vmax.f32 %v379, 0.0
      %v456 = vmax.f32 %v381, 0.0
      %v457 = vmax.f32 %v384, 0.0
      %v458 = vmax.f32 %v386, 0.0
      %v459 = vmax.f32 %v389, 0.0
      %v460 = vmax.f32 %v391, 0.0
      %v461 = vmax.f32 %v394, 0.0
      %v462 = vmax.f32 %v396, 0.0
      %v463 = vmax.f32 %v399, 0.0
      %v464 = vmax.f32 %v401, 0.0
      %v465 = vmax.f32 %v404, 0.0
      %v466 = vmax.f32 %v406, 0.0
      %v467 = vmax.f32 %v409, 0.0
      %v468 = vmax.f32 %v411, 0.0
      %v469 = vmax.f32 %v414, 0.0
      %v470 = vmax.f32 %v416, 0.0
      %v471 = vmax.f32 %v419, 0.0
      %v472 = vmax.f32 %v421, 0.0
      %v473 = vmax.f32 %v424, 0.0
      %v474 = vmax.f32 %v426, 0.0
      %v475 = vmax.f32 %v429, 0.0
      %v476 = vmax.f32 %v431, 0.0
      %v477 = vmax.f32 %v434, 0.0
      %v478 = vmax.f32 %v436, 0.0
      %v479 = vmax.f32 %v439, 0.0
      %v480 = vmax.f32 %v441, 0.0
      %v481 = vmax.f32 %v444, 0.0
      %v482 = vmax.f32 %v446, 0.0
      %v483 = vmax.f32 %v449, 0.0
      %v484 = vmax.f32 %v451, 0.0
      %vm485 = vcmask 31744
      %486 = vst.msk [vmem:[%s172] sm:$0xff] %vm485, %v453
      %487 = vst.msk [vmem:[%s172 + $0x8] sm:$0xff] %vm485, %v454
      %488 = vst.msk [vmem:[%s172 + $0x10] sm:$0xff] %vm485, %v455
      %489 = vst.msk [vmem:[%s172 + $0x18] sm:$0xff] %vm485, %v456
      %490 = vst.msk [vmem:[%s172 + $0x20] sm:$0xff] %vm485, %v457
      %491 = vst.msk [vmem:[%s172 + $0x28] sm:$0xff] %vm485, %v458
      %492 = vst.msk [vmem:[%s172 + $0x30] sm:$0xff] %vm485, %v459
      %493 = vst.msk [vmem:[%s172 + $0x38] sm:$0xff] %vm485, %v460
      %494 = vst.msk [vmem:[%s172 + $0x40] sm:$0xff] %vm485, %v461
      %495 = vst.msk [vmem:[%s172 + $0x48] sm:$0xff] %vm485, %v462
      %496 = vst.msk [vmem:[%s172 + $0x50] sm:$0xff] %vm485, %v463
      %497 = vst.msk [vmem:[%s172 + $0x58] sm:$0xff] %vm485, %v464
      %498 = vst.msk [vmem:[%s172 + $0x60] sm:$0xff] %vm485, %v465
      %499 = vst.msk [vmem:[%s172 + $0x68] sm:$0xff] %vm485, %v466
      %500 = vst.msk [vmem:[%s172 + $0x70] sm:$0xff] %vm485, %v467
      %501 = vst.msk [vmem:[%s172 + $0x78] sm:$0xff] %vm485, %v468
      %502 = vst.msk [vmem:[%s172 + $0x80] sm:$0xff] %vm485, %v469
      %503 = vst.msk [vmem:[%s172 + $0x88] sm:$0xff] %vm485, %v470
      %504 = vst.msk [vmem:[%s172 + $0x90] sm:$0xff] %vm485, %v471
      %505 = vst.msk [vmem:[%s172 + $0x98] sm:$0xff] %vm485, %v472
      %506 = vst.msk [vmem:[%s172 + $0xa0] sm:$0xff] %vm485, %v473
      %507 = vst.msk [vmem:[%s172 + $0xa8] sm:$0xff] %vm485, %v474
      %508 = vst.msk [vmem:[%s172 + $0xb0] sm:$0xff] %vm485, %v475
      %509 = vst.msk [vmem:[%s172 + $0xb8] sm:$0xff] %vm485, %v476
      %510 = vst.msk [vmem:[%s172 + $0xc0] sm:$0xff] %vm485, %v477
      %511 = vst.msk [vmem:[%s172 + $0xc8] sm:$0xff] %vm485, %v478
      %512 = vst.msk [vmem:[%s172 + $0xd0] sm:$0xff] %vm485, %v479
      %513 = vst.msk [vmem:[%s172 + $0xd8] sm:$0xff] %vm485, %v480
      %514 = vst.msk [vmem:[%s172 + $0xe0] sm:$0xff] %vm485, %v481
      %515 = vst.msk [vmem:[%s172 + $0xe8] sm:$0xff] %vm485, %v482
      %516 = vst.msk [vmem:[%s172 + $0xf0] sm:$0xff] %vm485, %v483
      %517 = vst.msk [vmem:[%s172 + $0xf8] sm:$0xff] %vm485, %v484
      %s518 = smul.u32 32, %s14
      %p519 = scmp.lt.s32.totalorder %s518, 127
      %s520 = scalar_select %p519, %s518, 127
      %s521 = smul.addr %s520, 8
      %s522 = scalar_lea.vmem %s3, %s521
      // Predicated region
      $region33: #{forward.3} parent=31 // pred_check
        %p523 = pneg %p100
      $region34: #{forward.3} parent=31 // pred_check_branch
        %525 = sbr.rel (%p523) target = $region36
      $region35: #{forward.3} parent=31 // pred_region
        %s526 = smul.u32 32, %s14
      $region36: #{forward.3} parent=31 // pred_fallthru
        _
    $region32: #{forward.3} parent=5 // pred_fallthru
      _
    %p527 = scmp.le.s32.totalorder 2, %s9
    // Predicated region
    $region37: #{forward.3} parent=5 // pred_check
      %p528 = pneg %p527
    $region38: #{forward.3} parent=5 // pred_check_branch
      %530 = sbr.rel (%p528) target = $region40
    $region39: #{forward.3} parent=5 // pred_region
      %s531 = ssub.s32 %s9, 2
      // Predicated region
      $region41: #{forward.3} parent=39 // pred_check
        %p532 = pneg %p106
      $region42: #{forward.3} parent=39 // pred_check_branch
        %534 = sbr.rel (%p532) target = $region44
      $region43: #{forward.3} parent=39 // pred_region
        %s535 = smul.u32 32, %s15
        %p536 = scmp.lt.s32.totalorder %s535, 127
        %s537 = scalar_select %p536, %s535, 127
        %s538 = smul.addr %s537, 8
        %s539 = scalar_lea.vmem %s3, %s538
      $region44: #{forward.3} parent=39 // pred_fallthru
        _
    $region40: #{forward.3} parent=5 // pred_fallthru
      _
  $region6: #{forward.3} parent=0 // loop_footer
    %s13 = sadd.s32 1, %s9
  $region7: #{forward.3} parent=0 // loop_footer_branch
    %8 = sbr.rel target = $region3
  $region8: #{forward.3} parent=0 // loop_exit
    _

// kernel: forward.4
$region0: #{forward.4}
  #allocation0 [shape = 'u32[]', space=smem, size = 0x4, offset = 0x4, fixed_abs, tag = 'smem constant byte address 0x4 - core index']
  #allocation1 [shape = 'u32[72,128]{1,0:T(1,128)}', space=vmem, size = 0x9000, scoped, tag = 'internal scratch']
  %s0 = inlined_call_operand.vmem [shape: bf16[1024,100], index: 0, kind: input, shape index: {}]
  %s1 = inlined_call_operand.vmem [shape: bf16[100,192], index: 1, kind: input, shape index: {}]
  %s2 = inlined_call_operand.vmem [shape: f32[1,192], index: 2, kind: input, shape index: {}]
  %s3 = inlined_call_operand.vmem [shape: bf16[1024,192], index: 3, kind: output, shape index: {}]
  %s4 = sld [smem:[#allocation0]]
  $region45: #{forward.4} parent=0
    _
  %s6 = ssub.s32 1, %s4
  %s7 = scalar_select 0, %s6, %s4
  loop: start=0, step=1, limit=6
  $region2: #{forward.4} parent=0 // loop_pre_header
    _
  $region3: #{forward.4} parent=0 // loop_header
    %s9 = sphi 0, %s13
    %p10 = scmp.ge.s32.totalorder %s9, 6
    %s19 = sphi 0, %s21
    %s22 = sphi 0, %s19
    %s23 = sphi 0, %s22
    %s39 = sphi 0, %s23
    %s43 = sphi 0, %s43
    %s45 = sphi 0, %s43
    %s46 = sphi 0, %s45
    %s60 = sphi 0, %s46
    %s64 = sphi 0, %s64
    %s66 = sphi 0, %s64
    %s67 = sphi 0, %s66
    %s81 = sphi 0, %s67
    %s87 = sphi 0, %s89
    %s90 = sphi 0, %s87
    %s91 = sphi 0, %s90
    %s107 = sphi 0, %s91
  $region4: #{forward.4} parent=0 // loop_header_branch
    %12 = sbr.rel (%p10) target = $region8
  $region5: #{forward.4} parent=0 // loop_body
    %s14 = ssub.s32 %s9, 1
    %s15 = ssub.s32 %s9, 2
    %s16 = sadd.s32 %s9, 1
    %s17 = ssub.s32 %s9, %s16
    %p18 = scmp.eq.s32.totalorder %s17, 0
    %s20 = sadd.s32 %s19, 1
    %s21 = scalar_select %p18, %s19, %s20
    %p24 = pneg %p18
    %p25 = scmp.eq.s32.totalorder %s9, 3
    %p26 = por %p24, %p25
    %p27 = scmp.ne.s32.totalorder %s19, %s22
    %p28 = scmp.eq.s32.totalorder %s9, 0
    %p29 = por %p27, %p28
    %p30 = scmp.ne.s32.totalorder %s19, %s22
    %p31 = scmp.eq.s32.totalorder %s14, 3
    %p32 = por %p30, %p31
    %p33 = scmp.ne.s32.totalorder %s22, %s23
    %p34 = scmp.eq.s32.totalorder %s14, 0
    %p35 = por %p33, %p34
    %p36 = scmp.ne.s32.totalorder %s22, %s23
    %p37 = scmp.eq.s32.totalorder %s15, 3
    %p38 = por %p36, %p37
    %p40 = scmp.ne.s32.totalorder %s23, %s39
    %p41 = scmp.eq.s32.totalorder %s15, 0
    %p42 = por %p40, %p41
    %s44 = sadd.s32 %s43, 1
    %p47 = scmp.eq.s32.totalorder %s9, 3
    %p48 = scmp.ne.s32.totalorder %s43, %s45
    %p49 = scmp.eq.s32.totalorder %s9, 0
    %p50 = por %p48, %p49
    %p51 = scmp.ne.s32.totalorder %s43, %s45
    %p52 = scmp.eq.s32.totalorder %s14, 3
    %p53 = por %p51, %p52
    %p54 = scmp.ne.s32.totalorder %s45, %s46
    %p55 = scmp.eq.s32.totalorder %s14, 0
    %p56 = por %p54, %p55
    %p57 = scmp.ne.s32.totalorder %s45, %s46
    %p58 = scmp.eq.s32.totalorder %s15, 3
    %p59 = por %p57, %p58
    %p61 = scmp.ne.s32.totalorder %s46, %s60
    %p62 = scmp.eq.s32.totalorder %s15, 0
    %p63 = por %p61, %p62
    %s65 = sadd.s32 %s64, 1
    %p68 = scmp.eq.s32.totalorder %s9, 3
    %p69 = scmp.ne.s32.totalorder %s64, %s66
    %p70 = scmp.eq.s32.totalorder %s9, 0
    %p71 = por %p69, %p70
    %p72 = scmp.ne.s32.totalorder %s64, %s66
    %p73 = scmp.eq.s32.totalorder %s14, 3
    %p74 = por %p72, %p73
    %p75 = scmp.ne.s32.totalorder %s66, %s67
    %p76 = scmp.eq.s32.totalorder %s14, 0
    %p77 = por %p75, %p76
    %p78 = scmp.ne.s32.totalorder %s66, %s67
    %p79 = scmp.eq.s32.totalorder %s15, 3
    %p80 = por %p78, %p79
    %p82 = scmp.ne.s32.totalorder %s67, %s81
    %p83 = scmp.eq.s32.totalorder %s15, 0
    %p84 = por %p82, %p83
    %s85 = ssub.s32 %s9, %s16
    %p86 = scmp.eq.s32.totalorder %s85, 0
    %s88 = sadd.s32 %s87, 1
    %s89 = scalar_select %p86, %s87, %s88
    %p92 = pneg %p86
    %p93 = scmp.eq.s32.totalorder %s9, 3
    %p94 = por %p92, %p93
    %p95 = scmp.ne.s32.totalorder %s87, %s90
    %p96 = scmp.eq.s32.totalorder %s9, 0
    %p97 = por %p95, %p96
    %p98 = scmp.ne.s32.totalorder %s87, %s90
    %p99 = scmp.eq.s32.totalorder %s14, 3
    %p100 = por %p98, %p99
    %p101 = scmp.ne.s32.totalorder %s90, %s91
    %p102 = scmp.eq.s32.totalorder %s14, 0
    %p103 = por %p101, %p102
    %p104 = scmp.ne.s32.totalorder %s90, %s91
    %p105 = scmp.eq.s32.totalorder %s15, 3
    %p106 = por %p104, %p105
    %p108 = scmp.ne.s32.totalorder %s91, %s107
    %p109 = scmp.eq.s32.totalorder %s15, 0
    %p110 = por %p108, %p109
    %p111 = scmp.le.s32.totalorder 1, %s9
    %p112 = scmp.lt.s32.totalorder %s9, 5
    %p113 = pnand %p111, %p112
    %p114 = pneg %p113
    // Predicated region
    $region9: #{forward.4} parent=5 // pred_check
      _
    $region10: #{forward.4} parent=5 // pred_check_branch
      %116 = sbr.rel (%p113) target = $region12
    $region11: #{forward.4} parent=5 // pred_region
      %s117 = ssub.s32 %s9, 1
      // Predicated region
      $region13: #{forward.4} parent=11 // pred_check
        %p118 = pneg %p56
      $region14: #{forward.4} parent=11 // pred_check_branch
        %120 = sbr.rel (%p118) target = $region16
      $region15: #{forward.4} parent=11 // pred_region
        _
      $region16: #{forward.4} parent=11 // pred_fallthru
        _
      // Predicated region
      $region17: #{forward.4} parent=11 // pred_check
        %p121 = pneg %p77
      $region18: #{forward.4} parent=11 // pred_check_branch
        %123 = sbr.rel (%p121) target = $region20
      $region19: #{forward.4} parent=11 // pred_region
        _
      $region20: #{forward.4} parent=11 // pred_fallthru
        _
    $region12: #{forward.4} parent=5 // pred_fallthru
      _
    %p124 = scmp.lt.s32.totalorder %s9, 4
    // Predicated region
    $region21: #{forward.4} parent=5 // pred_check
      %p125 = pneg %p124
    $region22: #{forward.4} parent=5 // pred_check_branch
      %127 = sbr.rel (%p125) target = $region24
    $region23: #{forward.4} parent=5 // pred_region
      // Predicated region
      $region25: #{forward.4} parent=23 // pred_check
        %p128 = pneg %p29
      $region26: #{forward.4} parent=23 // pred_check_branch
        %130 = sbr.rel (%p128) target = $region28
      $region27: #{forward.4} parent=23 // pred_region
        %s131 = smul.u32 32, %s9
        %p132 = scmp.lt.s32.totalorder %s131, 127
        %s133 = scalar_select %p132, %s131, 127
        %s134 = smul.addr %s133, 4
        %s135 = scalar_lea.vmem %s0, %s134
        %s136 = smul.u32 32, %s9
      $region28: #{forward.4} parent=23 // pred_fallthru
        _
    $region24: #{forward.4} parent=5 // pred_fallthru
      _
    %p137 = scmp.le.s32.totalorder 1, %s9
    %p138 = scmp.lt.s32.totalorder %s9, 5
    %p139 = pnand %p137, %p138
    %p140 = pneg %p139
    // Predicated region
    $region29: #{forward.4} parent=5 // pred_check
      _
    $region30: #{forward.4} parent=5 // pred_check_branch
      %142 = sbr.rel (%p139) target = $region32
    $region31: #{forward.4} parent=5 // pred_region
      %s143 = ssub.s32 %s9, 1
      %s144 = smul.u32 32, %s14
      %p145 = scmp.lt.s32.totalorder %s144, 127
      %s146 = scalar_select %p145, %s144, 127
      %s147 = smul.addr %s146, 4
      %s148 = scalar_lea.vmem %s0, %s147
      %p149 = pneg %p35
      %p150 = pneg %p32
      %p151 = pneg %p56
      %p152 = pneg %p53
      %p153 = pneg %p77
      %p154 = pneg %p74
      %p155 = pneg %p103
      %p156 = pneg %p100
      %s157 = smul.u32 32, %s14
      %p158 = scmp.lt.s32.totalorder %s157, 127
      %s159 = scalar_select %p158, %s157, 127
      %s160 = smul.addr %s159, 2
      %s161 = smul.addr %s160, 4
      %s162 = scalar_lea.vmem %s3, %s161
      %s163 = smul.u32 32, %s14
      %p164 = scmp.lt.s32.totalorder %s163, 127
      %s165 = scalar_select %p164, %s163, 127
      %s166 = smul.addr %s165, 4
      %s167 = scalar_lea.vmem %s0, %s166
      %s168 = smul.u32 32, %s14
      %s169 = smul.u32 32, %s14
      %p170 = scmp.lt.s32.totalorder %s169, 127
      %s171 = scalar_select %p170, %s169, 127
      %s172 = smul.addr %s171, 2
      %s173 = smul.addr %s172, 4
      %s174 = scalar_lea.vmem %s3, %s173
      %s175 = smul.u32 32, %s14
      %v177 = vld [vmem:[%s167] sm:$0xf]
      %v178 = vld [vmem:[%s167 + $0x4] sm:$0xf]
      %v179 = vld [vmem:[%s167 + $0x8] sm:$0xf]
      %v180 = vld [vmem:[%s167 + $0xc] sm:$0xf]
      %v181 = vld [vmem:[%s167 + $0x10] sm:$0xf]
      %v182 = vld [vmem:[%s167 + $0x14] sm:$0xf]
      %v183 = vld [vmem:[%s167 + $0x18] sm:$0xf]
      %v184 = vld [vmem:[%s167 + $0x1c] sm:$0xf]
      %v185 = vld [vmem:[%s167 + $0x20] sm:$0xf]
      %v186 = vld [vmem:[%s167 + $0x24] sm:$0xf]
      %v187 = vld [vmem:[%s167 + $0x28] sm:$0xf]
      %v188 = vld [vmem:[%s167 + $0x2c] sm:$0xf]
      %v189 = vld [vmem:[%s167 + $0x30] sm:$0xf]
      %v190 = vld [vmem:[%s167 + $0x34] sm:$0xf]
      %v191 = vld [vmem:[%s167 + $0x38] sm:$0xf]
      %v192 = vld [vmem:[%s167 + $0x3c] sm:$0xf]
      %v193 = vld [vmem:[%s167 + $0x40] sm:$0xf]
      %v194 = vld [vmem:[%s167 + $0x44] sm:$0xf]
      %v195 = vld [vmem:[%s167 + $0x48] sm:$0xf]
      %v196 = vld [vmem:[%s167 + $0x4c] sm:$0xf]
      %v197 = vld [vmem:[%s167 + $0x50] sm:$0xf]
      %v198 = vld [vmem:[%s167 + $0x54] sm:$0xf]
      %v199 = vld [vmem:[%s167 + $0x58] sm:$0xf]
      %v200 = vld [vmem:[%s167 + $0x5c] sm:$0xf]
      %v201 = vld [vmem:[%s167 + $0x60] sm:$0xf]
      %v202 = vld [vmem:[%s167 + $0x64] sm:$0xf]
      %v203 = vld [vmem:[%s167 + $0x68] sm:$0xf]
      %v204 = vld [vmem:[%s167 + $0x6c] sm:$0xf]
      %v205 = vld [vmem:[%s167 + $0x70] sm:$0xf]
      %v206 = vld [vmem:[%s167 + $0x74] sm:$0xf]
      %v207 = vld [vmem:[%s167 + $0x78] sm:$0xf]
      %v208 = vld [vmem:[%s167 + $0x7c] sm:$0xf]
      %v209 = vld [vmem:[%s1] sm:$0xff]
      %v210 = vld [vmem:[%s1 + $0x8] sm:$0xff]
      %v211 = vld [vmem:[%s1 + $0x10] sm:$0xff]
      %v212 = vld [vmem:[%s1 + $0x18] sm:$0xff]
      %v213 = vld [vmem:[%s1 + $0x20] sm:$0xff]
      %v214 = vld [vmem:[%s1 + $0x28] sm:$0xff]
      %v215 = vld [vmem:[%s1 + $0x30] sm:$0xff]
      %v216 = vld [vmem:[%s1 + $0x38] sm:$0xff]
      %v217 = vld [vmem:[%s1 + $0x40] sm:$0xff]
      %v218 = vld [vmem:[%s1 + $0x48] sm:$0xff]
      %v219 = vld [vmem:[%s1 + $0x50] sm:$0xff]
      %v220 = vld [vmem:[%s1 + $0x58] sm:$0xff]
      %v221 = vld [vmem:[%s1 + $0x60] sm:$0x33]
      %v222 = vld [vmem:[%s2] sm:$0x3]
      %v224 = vperm.slane %v222, 0
      %v225 = vperm.slane %v222, 1
      %v260 = vunpack.c.l.b16 %v177
      %v261 = vunpack.c.l.b16 %v178
      %v262 = vunpack.c.l.b16 %v179
      %v263 = vunpack.c.l.b16 %v180
      %v264 = vunpack.c.l.b16 %v181
      %v265 = vunpack.c.l.b16 %v182
      %v266 = vunpack.c.l.b16 %v183
      %v267 = vunpack.c.l.b16 %v184
      %v268 = vunpack.c.l.b16 %v185
      %v269 = vunpack.c.l.b16 %v186
      %v270 = vunpack.c.l.b16 %v187
      %v271 = vunpack.c.l.b16 %v188
      %v272 = vunpack.c.l.b16 %v189
      %v273 = vunpack.c.l.b16 %v190
      %v274 = vunpack.c.l.b16 %v191
      %v275 = vunpack.c.l.b16 %v192
      %v276 = vunpack.c.l.b16 %v193
      %v277 = vunpack.c.l.b16 %v194
      %v278 = vunpack.c.l.b16 %v195
      %v279 = vunpack.c.l.b16 %v196
      %v280 = vunpack.c.l.b16 %v197
      %v281 = vunpack.c.l.b16 %v198
      %v282 = vunpack.c.l.b16 %v199
      %v283 = vunpack.c.l.b16 %v200
      %v284 = vunpack.c.l.b16 %v201
      %v285 = vunpack.c.l.b16 %v202
      %v286 = vunpack.c.l.b16 %v203
      %v287 = vunpack.c.l.b16 %v204
      %v288 = vunpack.c.l.b16 %v205
      %v289 = vunpack.c.l.b16 %v206
      %v290 = vunpack.c.l.b16 %v207
      %v291 = vunpack.c.l.b16 %v208
      %v292 = vpack.c.b16 %v261, %v260
      %v293 = vpack.c.b16 %v263, %v262
      %v294 = vpack.c.b16 %v265, %v264
      %v295 = vpack.c.b16 %v267, %v266
      %v296 = vpack.c.b16 %v269, %v268
      %v297 = vpack.c.b16 %v271, %v270
      %v298 = vpack.c.b16 %v273, %v272
      %v299 = vpack.c.b16 %v275, %v274
      %v300 = vpack.c.b16 %v277, %v276
      %v301 = vpack.c.b16 %v279, %v278
      %v302 = vpack.c.b16 %v281, %v280
      %v303 = vpack.c.b16 %v283, %v282
      %v304 = vpack.c.b16 %v285, %v284
      %v305 = vpack.c.b16 %v287, %v286
      %v306 = vpack.c.b16 %v289, %v288
      %v307 = vpack.c.b16 %v291, %v290
      %v321 = vunpack.c.l.b16 %v209
      %v322 = vunpack.c.h.b16 %v209
      %v323 = vunpack.c.l.b16 %v210
      %v324 = vunpack.c.h.b16 %v210
      %v325 = vunpack.c.l.b16 %v211
      %v326 = vunpack.c.h.b16 %v211
      %v327 = vunpack.c.l.b16 %v212
      %v328 = vunpack.c.h.b16 %v212
      %v329 = vunpack.c.l.b16 %v213
      %v330 = vunpack.c.h.b16 %v213
      %v331 = vunpack.c.l.b16 %v214
      %v332 = vunpack.c.h.b16 %v214
      %v333 = vunpack.c.l.b16 %v215
      %v334 = vunpack.c.h.b16 %v215
      %v335 = vunpack.c.l.b16 %v216
      %v336 = vunpack.c.h.b16 %v216
      %v337 = vunpack.c.l.b16 %v217
      %v338 = vunpack.c.h.b16 %v217
      %v339 = vunpack.c.l.b16 %v218
      %v340 = vunpack.c.h.b16 %v218
      %v341 = vunpack.c.l.b16 %v219
      %v342 = vunpack.c.h.b16 %v219
      %v343 = vunpack.c.l.b16 %v220
      %v344 = vunpack.c.h.b16 %v220
      %v345 = vunpack.c.l.b16 %v221
      %v346 = vunpack.c.h.b16 %v221
      %v347 = vpack.c.b16 %v323, %v321
      %v348 = vpack.c.b16 %v324, %v322
      %v349 = vpack.c.b16 %v327, %v325
      %v350 = vpack.c.b16 %v328, %v326
      %v351 = vpack.c.b16 %v331, %v329
      %v352 = vpack.c.b16 %v332, %v330
      %v353 = vpack.c.b16 %v335, %v333
      %v354 = vpack.c.b16 %v336, %v334
      %v355 = vpack.c.b16 %v339, %v337
      %v356 = vpack.c.b16 %v340, %v338
      %v357 = vpack.c.b16 %v343, %v341
      %v358 = vpack.c.b16 %v344, %v342
      %v359 = vpack.c.b16 %v345, %v345
      %v360 = vpack.c.b16 %v346, %v346
      %vm373 = vcmask 818176
      %v375 = vsel %vm373, %v292, 0
      %v378 = vsel %vm373, %v293, 0
      %v381 = vsel %vm373, %v294, 0
      %v384 = vsel %vm373, %v295, 0
      %v387 = vsel %vm373, %v296, 0
      %v390 = vsel %vm373, %v297, 0
      %v393 = vsel %vm373, %v298, 0
      %v396 = vsel %vm373, %v299, 0
      %v399 = vsel %vm373, %v300, 0
      %v402 = vsel %vm373, %v301, 0
      %v405 = vsel %vm373, %v302, 0
      %v408 = vsel %vm373, %v303, 0
      %v411 = vsel %vm373, %v304, 0
      %v414 = vsel %vm373, %v305, 0
      %v417 = vsel %vm373, %v306, 0
      %v420 = vsel %vm373, %v307, 0
      %vm422 = vcmask 1041408
      %v424 = vsel %vm422, %v359, 0
      %v427 = vsel %vm422, %v360, 0
      %429 = vmatpush.bf16.msra.mxu0 0
      %430 = vmatpush.bf16.msra.mxu0 %v424
      %431 = vmatpush.bf16.msra.mxu0 %v357
      %432 = vmatpush.bf16.msra.mxu0 %v355
      %433 = vmatpush.bf16.msra.mxu0 %v353
      %434 = vmatpush.bf16.msra.mxu0 %v351
      %435 = vmatpush.bf16.msra.mxu0 %v349
      %436 = vmatpush.bf16.msra.mxu0 %v347
      %437 = vmatmul.bf16.gmra.mxu0 %v375
      %v438 = vpop.f32.mrf.mxu0
      %v439 = vadd.f32 %v224, %v438
      %v440 = vpop.f32.mrf.mxu0
      %v441 = vadd.f32 %v224, %v440
      %442 = vmatmul.bf16.gmra.mxu0 %v378
      %v443 = vpop.f32.mrf.mxu0
      %v444 = vadd.f32 %v224, %v443
      %v445 = vpop.f32.mrf.mxu0
      %v446 = vadd.f32 %v224, %v445
      %447 = vmatmul.bf16.gmra.mxu0 %v381
      %v448 = vpop.f32.mrf.mxu0
      %v449 = vadd.f32 %v224, %v448
      %v450 = vpop.f32.mrf.mxu0
      %v451 = vadd.f32 %v224, %v450
      %452 = vmatmul.bf16.gmra.mxu0 %v384
      %v453 = vpop.f32.mrf.mxu0
      %v454 = vadd.f32 %v224, %v453
      %v455 = vpop.f32.mrf.mxu0
      %v456 = vadd.f32 %v224, %v455
      %457 = vmatmul.bf16.gmra.mxu0 %v387
      %v458 = vpop.f32.mrf.mxu0
      %v459 = vadd.f32 %v224, %v458
      %v460 = vpop.f32.mrf.mxu0
      %v461 = vadd.f32 %v224, %v460
      %462 = vmatmul.bf16.gmra.mxu0 %v390
      %v463 = vpop.f32.mrf.mxu0
      %v464 = vadd.f32 %v224, %v463
      %v465 = vpop.f32.mrf.mxu0
      %v466 = vadd.f32 %v224, %v465
      %467 = vmatmul.bf16.gmra.mxu0 %v393
      %v468 = vpop.f32.mrf.mxu0
      %v469 = vadd.f32 %v224, %v468
      %v470 = vpop.f32.mrf.mxu0
      %v471 = vadd.f32 %v224, %v470
      %472 = vmatmul.bf16.gmra.mxu0 %v396
      %v473 = vpop.f32.mrf.mxu0
      %v474 = vadd.f32 %v224, %v473
      %v475 = vpop.f32.mrf.mxu0
      %v476 = vadd.f32 %v224, %v475
      %477 = vmatmul.bf16.gmra.mxu0 %v399
      %v478 = vpop.f32.mrf.mxu0
      %v479 = vadd.f32 %v224, %v478
      %v480 = vpop.f32.mrf.mxu0
      %v481 = vadd.f32 %v224, %v480
      %482 = vmatmul.bf16.gmra.mxu0 %v402
      %v483 = vpop.f32.mrf.mxu0
      %v484 = vadd.f32 %v224, %v483
      %v485 = vpop.f32.mrf.mxu0
      %v486 = vadd.f32 %v224, %v485
      %487 = vmatmul.bf16.gmra.mxu0 %v405
      %v488 = vpop.f32.mrf.mxu0
      %v489 = vadd.f32 %v224, %v488
      %v490 = vpop.f32.mrf.mxu0
      %v491 = vadd.f32 %v224, %v490
      %492 = vmatmul.bf16.gmra.mxu0 %v408
      %v493 = vpop.f32.mrf.mxu0
      %v494 = vadd.f32 %v224, %v493
      %v495 = vpop.f32.mrf.mxu0
      %v496 = vadd.f32 %v224, %v495
      %497 = vmatmul.bf16.gmra.mxu0 %v411
      %v498 = vpop.f32.mrf.mxu0
      %v499 = vadd.f32 %v224, %v498
      %v500 = vpop.f32.mrf.mxu0
      %v501 = vadd.f32 %v224, %v500
      %502 = vmatmul.bf16.gmra.mxu0 %v414
      %v503 = vpop.f32.mrf.mxu0
      %v504 = vadd.f32 %v224, %v503
      %v505 = vpop.f32.mrf.mxu0
      %v506 = vadd.f32 %v224, %v505
      %507 = vmatmul.bf16.gmra.mxu0 %v417
      %v508 = vpop.f32.mrf.mxu0
      %v509 = vadd.f32 %v224, %v508
      %v510 = vpop.f32.mrf.mxu0
      %v511 = vadd.f32 %v224, %v510
      %512 = vmatmul.bf16.gmra.mxu0 %v420
      %v513 = vpop.f32.mrf.mxu0
      %v514 = vadd.f32 %v224, %v513
      %v515 = vpop.f32.mrf.mxu0
      %v516 = vadd.f32 %v224, %v515
      %517 = vdwg.mxu0
      %518 = vmatpush.bf16.msra.mxu0 0
      %519 = vmatpush.bf16.msra.mxu0 %v427
      %520 = vmatpush.bf16.msra.mxu0 %v358
      %521 = vmatpush.bf16.msra.mxu0 %v356
      %522 = vmatpush.bf16.msra.mxu0 %v354
      %523 = vmatpush.bf16.msra.mxu0 %v352
      %524 = vmatpush.bf16.msra.mxu0 %v350
      %525 = vmatpush.bf16.msra.mxu0 %v348
      %526 = vmatmul.bf16.gmra.mxu0 %v375
      %v527 = vpop.f32.mrf.mxu0
      %v528 = vadd.f32 %v225, %v527
      %v529 = vpop.f32.mrf.mxu0
      %v530 = vadd.f32 %v225, %v529
      %531 = vmatmul.bf16.gmra.mxu0 %v378
      %v532 = vpop.f32.mrf.mxu0
      %v533 = vadd.f32 %v225, %v532
      %v534 = vpop.f32.mrf.mxu0
      %v535 = vadd.f32 %v225, %v534
      %536 = vmatmul.bf16.gmra.mxu0 %v381
      %v537 = vpop.f32.mrf.mxu0
      %v538 = vadd.f32 %v225, %v537
      %v539 = vpop.f32.mrf.mxu0
      %v540 = vadd.f32 %v225, %v539
      %541 = vmatmul.bf16.gmra.mxu0 %v384
      %v542 = vpop.f32.mrf.mxu0
      %v543 = vadd.f32 %v225, %v542
      %v544 = vpop.f32.mrf.mxu0
      %v545 = vadd.f32 %v225, %v544
      %546 = vmatmul.bf16.gmra.mxu0 %v387
      %v547 = vpop.f32.mrf.mxu0
      %v548 = vadd.f32 %v225, %v547
      %v549 = vpop.f32.mrf.mxu0
      %v550 = vadd.f32 %v225, %v549
      %551 = vmatmul.bf16.gmra.mxu0 %v390
      %v552 = vpop.f32.mrf.mxu0
      %v553 = vadd.f32 %v225, %v552
      %v554 = vpop.f32.mrf.mxu0
      %v555 = vadd.f32 %v225, %v554
      %556 = vmatmul.bf16.gmra.mxu0 %v393
      %v557 = vpop.f32.mrf.mxu0
      %v558 = vadd.f32 %v225, %v557
      %v559 = vpop.f32.mrf.mxu0
      %v560 = vadd.f32 %v225, %v559
      %561 = vmatmul.bf16.gmra.mxu0 %v396
      %v562 = vpop.f32.mrf.mxu0
      %v563 = vadd.f32 %v225, %v562
      %v564 = vpop.f32.mrf.mxu0
      %v565 = vadd.f32 %v225, %v564
      %566 = vmatmul.bf16.gmra.mxu0 %v399
      %v567 = vpop.f32.mrf.mxu0
      %v568 = vadd.f32 %v225, %v567
      %v569 = vpop.f32.mrf.mxu0
      %v570 = vadd.f32 %v225, %v569
      %571 = vmatmul.bf16.gmra.mxu0 %v402
      %v572 = vpop.f32.mrf.mxu0
      %v573 = vadd.f32 %v225, %v572
      %v574 = vpop.f32.mrf.mxu0
      %v575 = vadd.f32 %v225, %v574
      %576 = vmatmul.bf16.gmra.mxu0 %v405
      %v577 = vpop.f32.mrf.mxu0
      %v578 = vadd.f32 %v225, %v577
      %v579 = vpop.f32.mrf.mxu0
      %v580 = vadd.f32 %v225, %v579
      %581 = vmatmul.bf16.gmra.mxu0 %v408
      %v582 = vpop.f32.mrf.mxu0
      %v583 = vadd.f32 %v225, %v582
      %v584 = vpop.f32.mrf.mxu0
      %v585 = vadd.f32 %v225, %v584
      %586 = vmatmul.bf16.gmra.mxu0 %v411
      %v587 = vpop.f32.mrf.mxu0
      %v588 = vadd.f32 %v225, %v587
      %v589 = vpop.f32.mrf.mxu0
      %v590 = vadd.f32 %v225, %v589
      %591 = vmatmul.bf16.gmra.mxu0 %v414
      %v592 = vpop.f32.mrf.mxu0
      %v593 = vadd.f32 %v225, %v592
      %v594 = vpop.f32.mrf.mxu0
      %v595 = vadd.f32 %v225, %v594
      %596 = vmatmul.bf16.gmra.mxu0 %v417
      %v597 = vpop.f32.mrf.mxu0
      %v598 = vadd.f32 %v225, %v597
      %v599 = vpop.f32.mrf.mxu0
      %v600 = vadd.f32 %v225, %v599
      %601 = vmatmul.bf16.gmra.mxu0 %v420
      %v602 = vpop.f32.mrf.mxu0
      %v603 = vadd.f32 %v225, %v602
      %v604 = vpop.f32.mrf.mxu0
      %v605 = vadd.f32 %v225, %v604
      %606 = vdwg.mxu0
      %v607 = vmax.f32 %v439, 0.0
      %v608 = vmax.f32 %v528, 0.0
      %v609 = vmax.f32 %v441, 0.0
      %v610 = vmax.f32 %v530, 0.0
      %v611 = vmax.f32 %v444, 0.0
      %v612 = vmax.f32 %v533, 0.0
      %v613 = vmax.f32 %v446, 0.0
      %v614 = vmax.f32 %v535, 0.0
      %v615 = vmax.f32 %v449, 0.0
      %v616 = vmax.f32 %v538, 0.0
      %v617 = vmax.f32 %v451, 0.0
      %v618 = vmax.f32 %v540, 0.0
      %v619 = vmax.f32 %v454, 0.0
      %v620 = vmax.f32 %v543, 0.0
      %v621 = vmax.f32 %v456, 0.0
      %v622 = vmax.f32 %v545, 0.0
      %v623 = vmax.f32 %v459, 0.0
      %v624 = vmax.f32 %v548, 0.0
      %v625 = vmax.f32 %v461, 0.0
      %v626 = vmax.f32 %v550, 0.0
      %v627 = vmax.f32 %v464, 0.0
      %v628 = vmax.f32 %v553, 0.0
      %v629 = vmax.f32 %v466, 0.0
      %v630 = vmax.f32 %v555, 0.0
      %v631 = vmax.f32 %v469, 0.0
      %v632 = vmax.f32 %v558, 0.0
      %v633 = vmax.f32 %v471, 0.0
      %v634 = vmax.f32 %v560, 0.0
      %v635 = vmax.f32 %v474, 0.0
      %v636 = vmax.f32 %v563, 0.0
      %v637 = vmax.f32 %v476, 0.0
      %v638 = vmax.f32 %v565, 0.0
      %v639 = vmax.f32 %v479, 0.0
      %v640 = vmax.f32 %v568, 0.0
      %v641 = vmax.f32 %v481, 0.0
      %v642 = vmax.f32 %v570, 0.0
      %v643 = vmax.f32 %v484, 0.0
      %v644 = vmax.f32 %v573, 0.0
      %v645 = vmax.f32 %v486, 0.0
      %v646 = vmax.f32 %v575, 0.0
      %v647 = vmax.f32 %v489, 0.0
      %v648 = vmax.f32 %v578, 0.0
      %v649 = vmax.f32 %v491, 0.0
      %v650 = vmax.f32 %v580, 0.0
      %v651 = vmax.f32 %v494, 0.0
      %v652 = vmax.f32 %v583, 0.0
      %v653 = vmax.f32 %v496, 0.0
      %v654 = vmax.f32 %v585, 0.0
      %v655 = vmax.f32 %v499, 0.0
      %v656 = vmax.f32 %v588, 0.0
      %v657 = vmax.f32 %v501, 0.0
      %v658 = vmax.f32 %v590, 0.0
      %v659 = vmax.f32 %v504, 0.0
      %v660 = vmax.f32 %v593, 0.0
      %v661 = vmax.f32 %v506, 0.0
      %v662 = vmax.f32 %v595, 0.0
      %v663 = vmax.f32 %v509, 0.0
      %v664 = vmax.f32 %v598, 0.0
      %v665 = vmax.f32 %v511, 0.0
      %v666 = vmax.f32 %v600, 0.0
      %v667 = vmax.f32 %v514, 0.0
      %v668 = vmax.f32 %v603, 0.0
      %v669 = vmax.f32 %v516, 0.0
      %v670 = vmax.f32 %v605, 0.0
      %v671 = vpack.c.bf16 %v608, %v607
      %v672 = vpack.c.bf16 %v610, %v609
      %v673 = vpack.c.bf16 %v612, %v611
      %v674 = vpack.c.bf16 %v614, %v613
      %v675 = vpack.c.bf16 %v616, %v615
      %v676 = vpack.c.bf16 %v618, %v617
      %v677 = vpack.c.bf16 %v620, %v619
      %v678 = vpack.c.bf16 %v622, %v621
      %v679 = vpack.c.bf16 %v624, %v623
      %v680 = vpack.c.bf16 %v626, %v625
      %v681 = vpack.c.bf16 %v628, %v627
      %v682 = vpack.c.bf16 %v630, %v629
      %v683 = vpack.c.bf16 %v632, %v631
      %v684 = vpack.c.bf16 %v634, %v633
      %v685 = vpack.c.bf16 %v636, %v635
      %v686 = vpack.c.bf16 %v638, %v637
      %v687 = vpack.c.bf16 %v640, %v639
      %v688 = vpack.c.bf16 %v642, %v641
      %v689 = vpack.c.bf16 %v644, %v643
      %v690 = vpack.c.bf16 %v646, %v645
      %v691 = vpack.c.bf16 %v648, %v647
      %v692 = vpack.c.bf16 %v650, %v649
      %v693 = vpack.c.bf16 %v652, %v651
      %v694 = vpack.c.bf16 %v654, %v653
      %v695 = vpack.c.bf16 %v656, %v655
      %v696 = vpack.c.bf16 %v658, %v657
      %v697 = vpack.c.bf16 %v660, %v659
      %v698 = vpack.c.bf16 %v662, %v661
      %v699 = vpack.c.bf16 %v664, %v663
      %v700 = vpack.c.bf16 %v666, %v665
      %v701 = vpack.c.bf16 %v668, %v667
      %v702 = vpack.c.bf16 %v670, %v669
      %vm703 = vcmask 1043456
      %vm704 = vcmask 523268
      %vm705 = vmor %vm704, %vm703
      %706 = vst.msk [vmem:[%s174] sm:$0xff] %vm705, %v671
      %707 = vst.msk [vmem:[%s174 + $0x8] sm:$0xff] %vm705, %v672
      %708 = vst.msk [vmem:[%s174 + $0x10] sm:$0xff] %vm705, %v673
      %709 = vst.msk [vmem:[%s174 + $0x18] sm:$0xff] %vm705, %v674
      %710 = vst.msk [vmem:[%s174 + $0x20] sm:$0xff] %vm705, %v675
      %711 = vst.msk [vmem:[%s174 + $0x28] sm:$0xff] %vm705, %v676
      %712 = vst.msk [vmem:[%s174 + $0x30] sm:$0xff] %vm705, %v677
      %713 = vst.msk [vmem:[%s174 + $0x38] sm:$0xff] %vm705, %v678
      %714 = vst.msk [vmem:[%s174 + $0x40] sm:$0xff] %vm705, %v679
      %715 = vst.msk [vmem:[%s174 + $0x48] sm:$0xff] %vm705, %v680
      %716 = vst.msk [vmem:[%s174 + $0x50] sm:$0xff] %vm705, %v681
      %717 = vst.msk [vmem:[%s174 + $0x58] sm:$0xff] %vm705, %v682
      %718 = vst.msk [vmem:[%s174 + $0x60] sm:$0xff] %vm705, %v683
      %719 = vst.msk [vmem:[%s174 + $0x68] sm:$0xff] %vm705, %v684
      %720 = vst.msk [vmem:[%s174 + $0x70] sm:$0xff] %vm705, %v685
      %721 = vst.msk [vmem:[%s174 + $0x78] sm:$0xff] %vm705, %v686
      %722 = vst.msk [vmem:[%s174 + $0x80] sm:$0xff] %vm705, %v687
      %723 = vst.msk [vmem:[%s174 + $0x88] sm:$0xff] %vm705, %v688
      %724 = vst.msk [vmem:[%s174 + $0x90] sm:$0xff] %vm705, %v689
      %725 = vst.msk [vmem:[%s174 + $0x98] sm:$0xff] %vm705, %v690
      %726 = vst.msk [vmem:[%s174 + $0xa0] sm:$0xff] %vm705, %v691
      %727 = vst.msk [vmem:[%s174 + $0xa8] sm:$0xff] %vm705, %v692
      %728 = vst.msk [vmem:[%s174 + $0xb0] sm:$0xff] %vm705, %v693
      %729 = vst.msk [vmem:[%s174 + $0xb8] sm:$0xff] %vm705, %v694
      %730 = vst.msk [vmem:[%s174 + $0xc0] sm:$0xff] %vm705, %v695
      %731 = vst.msk [vmem:[%s174 + $0xc8] sm:$0xff] %vm705, %v696
      %732 = vst.msk [vmem:[%s174 + $0xd0] sm:$0xff] %vm705, %v697
      %733 = vst.msk [vmem:[%s174 + $0xd8] sm:$0xff] %vm705, %v698
      %734 = vst.msk [vmem:[%s174 + $0xe0] sm:$0xff] %vm705, %v699
      %735 = vst.msk [vmem:[%s174 + $0xe8] sm:$0xff] %vm705, %v700
      %736 = vst.msk [vmem:[%s174 + $0xf0] sm:$0xff] %vm705, %v701
      %737 = vst.msk [vmem:[%s174 + $0xf8] sm:$0xff] %vm705, %v702
      %s738 = smul.u32 32, %s14
      %p739 = scmp.lt.s32.totalorder %s738, 127
      %s740 = scalar_select %p739, %s738, 127
      %s741 = smul.addr %s740, 2
      %s742 = smul.addr %s741, 4
      %s743 = scalar_lea.vmem %s3, %s742
      // Predicated region
      $region33: #{forward.4} parent=31 // pred_check
        %p744 = pneg %p100
      $region34: #{forward.4} parent=31 // pred_check_branch
        %746 = sbr.rel (%p744) target = $region36
      $region35: #{forward.4} parent=31 // pred_region
        %s747 = smul.u32 32, %s14
      $region36: #{forward.4} parent=31 // pred_fallthru
        _
    $region32: #{forward.4} parent=5 // pred_fallthru
      _
    %p748 = scmp.le.s32.totalorder 2, %s9
    // Predicated region
    $region37: #{forward.4} parent=5 // pred_check
      %p749 = pneg %p748
    $region38: #{forward.4} parent=5 // pred_check_branch
      %751 = sbr.rel (%p749) target = $region40
    $region39: #{forward.4} parent=5 // pred_region
      %s752 = ssub.s32 %s9, 2
      // Predicated region
      $region41: #{forward.4} parent=39 // pred_check
        %p753 = pneg %p106
      $region42: #{forward.4} parent=39 // pred_check_branch
        %755 = sbr.rel (%p753) target = $region44
      $region43: #{forward.4} parent=39 // pred_region
        %s756 = smul.u32 32, %s15
        %p757 = scmp.lt.s32.totalorder %s756, 127
        %s758 = scalar_select %p757, %s756, 127
        %s759 = smul.addr %s758, 2
        %s760 = smul.addr %s759, 4
        %s761 = scalar_lea.vmem %s3, %s760
      $region44: #{forward.4} parent=39 // pred_fallthru
        _
    $region40: #{forward.4} parent=5 // pred_fallthru
      _
  $region6: #{forward.4} parent=0 // loop_footer
    %s13 = sadd.s32 1, %s9
  $region7: #{forward.4} parent=0 // loop_footer_branch
    %8 = sbr.rel target = $region3
  $region8: #{forward.4} parent=0 // loop_exit
    _

// kernel: forward.5
$region0: #{forward.5}
  #allocation0 [shape = 'u32[]', space=smem, size = 0x4, offset = 0x4, fixed_abs, tag = 'smem constant byte address 0x4 - core index']
  #allocation1 [shape = 'u32[72,128]{1,0:T(1,128)}', space=vmem, size = 0x9000, scoped, tag = 'internal scratch']
  #allocation2 [shape = 'f32[1,1]{1,0:T(1,128)S(1)}', space=vmem, size = 0x200, scoped, tag = 'scoped memory for forward.5']
  %s0 = inlined_call_operand.vmem [shape: bf16[2,2,256,192], index: 0, kind: input, shape index: {}]
  %s1 = inlined_call_operand.vmem [shape: bf16[192,512], index: 1, kind: input, shape index: {}]
  %s2 = inlined_call_operand.vmem [shape: bf16[128,512], index: 2, kind: input, shape index: {}]
  %s3 = inlined_call_operand.vmem [shape: f32[1,512], index: 3, kind: input, shape index: {}]
  %s4 = inlined_call_operand.vmem [shape: f32[2,1,128], index: 4, kind: input, shape index: {}]
  %s5 = inlined_call_operand.vmem [shape: f32[1,128], index: 5, kind: input, shape index: {}]
  %s6 = inlined_call_operand.vmem [shape: f32[1,128], index: 6, kind: input, shape index: {}]
  %s7 = inlined_call_operand.vmem [shape: f32[1,128], index: 7, kind: input, shape index: {}]
  %s8 = inlined_call_operand.<no memory space> [shape: f32[1,1], index: 8, kind: input, shape index: {}]
  %s9 = inlined_call_operand.vmem [shape: f32[2,256,1], index: 9, kind: output, shape index: {}]
  %s10 = sld [smem:[#allocation0]]
  $region107: #{forward.5} parent=0
    _
  %s12 = ssub.s32 1, %s10
  %s13 = scalar_select 0, %s12, %s10
  %v14 = vstv %s8
  %15 = vst [vmem:[#allocation2] sm:$0x1] %v14
  $region1: #{forward.5} parent=0
    #allocation3 [shape = 'u8[262144]{0}', space=vmem, size = 0x40000, scoped, tag = 'input window, operand 0']
    loop: start=0, step=1, limit=6
    $region2: #{forward.5} parent=1 // loop_pre_header
      _
    $region3: #{forward.5} parent=1 // loop_header
      %s17 = sphi 0, %s21
      %p18 = scmp.ge.s32.totalorder %s17, 6
      %s24 = sphi 0, %s36
      %s25 = sphi 0, %s32
      %s26 = sphi 0, %s24
      %s27 = sphi 0, %s25
      %s28 = sphi 0, %s26
      %s29 = sphi 0, %s27
      %s41 = sphi 0, %s43
      %s44 = sphi 0, %s41
      %s45 = sphi 0, %s44
      %s61 = sphi 0, %s45
      %s65 = sphi 0, %s65
      %s67 = sphi 0, %s65
      %s68 = sphi 0, %s67
      %s82 = sphi 0, %s68
      %s86 = sphi 0, %s86
      %s88 = sphi 0, %s86
      %s89 = sphi 0, %s88
      %s103 = sphi 0, %s89
      %s107 = sphi 0, %s107
      %s109 = sphi 0, %s107
      %s110 = sphi 0, %s109
      %s124 = sphi 0, %s110
      %s130 = sphi 0, %s132
      %s133 = sphi 0, %s130
      %s134 = sphi 0, %s133
      %s150 = sphi 0, %s134
      %s154 = sphi 0, %s154
      %s156 = sphi 0, %s154
      %s157 = sphi 0, %s156
      %s171 = sphi 0, %s157
      %s175 = sphi 0, %s175
      %s177 = sphi 0, %s175
      %s178 = sphi 0, %s177
      %s192 = sphi 0, %s178
      %s196 = sphi 0, %s196
      %s198 = sphi 0, %s196
      %s199 = sphi 0, %s198
      %s213 = sphi 0, %s199
      %s217 = sphi 0, %s217
      %s219 = sphi 0, %s217
      %s220 = sphi 0, %s219
      %s234 = sphi 0, %s220
      %s242 = sphi 0, %s244
      %s245 = sphi 0, %s242
      %s246 = sphi 0, %s245
      %s262 = sphi 0, %s246
    $region4: #{forward.5} parent=1 // loop_header_branch
      %20 = sbr.rel (%p18) target = $region8
    $region5: #{forward.5} parent=1 // loop_body
      %s22 = ssub.s32 %s17, 1
      %s23 = ssub.s32 %s17, 2
      %s30 = sadd.s32 1, %s25
      %p31 = scmp.ge.s32.totalorder %s30, 2
      %s32 = scalar_select %p31, 0, %s30
      %s33 = sadd.s32 1, %s24
      %s34 = scalar_select %p31, %s33, %s24
      %p35 = scmp.ge.s32.totalorder %s34, 2
      %s36 = scalar_select %p35, 0, %s34
      %s37 = ssub.s32 %s24, %s36
      %s38 = ssub.s32 %s25, %s32
      %s39 = sor.u32 %s37, %s38
      %p40 = scmp.eq.s32.totalorder %s39, 0
      %s42 = sadd.s32 %s41, 1
      %s43 = scalar_select %p40, %s41, %s42
      %p46 = pneg %p40
      %p47 = scmp.eq.s32.totalorder %s17, 3
      %p48 = por %p46, %p47
      %p49 = scmp.ne.s32.totalorder %s41, %s44
      %p50 = scmp.eq.s32.totalorder %s17, 0
      %p51 = por %p49, %p50
      %p52 = scmp.ne.s32.totalorder %s41, %s44
      %p53 = scmp.eq.s32.totalorder %s22, 3
      %p54 = por %p52, %p53
      %p55 = scmp.ne.s32.totalorder %s44, %s45
      %p56 = scmp.eq.s32.totalorder %s22, 0
      %p57 = por %p55, %p56
      %p58 = scmp.ne.s32.totalorder %s44, %s45
      %p59 = scmp.eq.s32.totalorder %s23, 3
      %p60 = por %p58, %p59
      %p62 = scmp.ne.s32.totalorder %s45, %s61
      %p63 = scmp.eq.s32.totalorder %s23, 0
      %p64 = por %p62, %p63
      %s66 = sadd.s32 %s65, 1
      %p69 = scmp.eq.s32.totalorder %s17, 3
      %p70 = scmp.ne.s32.totalorder %s65, %s67
      %p71 = scmp.eq.s32.totalorder %s17, 0
      %p72 = por %p70, %p71
      %p73 = scmp.ne.s32.totalorder %s65, %s67
      %p74 = scmp.eq.s32.totalorder %s22, 3
      %p75 = por %p73, %p74
      %p76 = scmp.ne.s32.totalorder %s67, %s68
      %p77 = scmp.eq.s32.totalorder %s22, 0
      %p78 = por %p76, %p77
      %p79 = scmp.ne.s32.totalorder %s67, %s68
      %p80 = scmp.eq.s32.totalorder %s23, 3
      %p81 = por %p79, %p80
      %p83 = scmp.ne.s32.totalorder %s68, %s82
      %p84 = scmp.eq.s32.totalorder %s23, 0
      %p85 = por %p83, %p84
      %s87 = sadd.s32 %s86, 1
      %p90 = scmp.eq.s32.totalorder %s17, 3
      %p91 = scmp.ne.s32.totalorder %s86, %s88
      %p92 = scmp.eq.s32.totalorder %s17, 0
      %p93 = por %p91, %p92
      %p94 = scmp.ne.s32.totalorder %s86, %s88
      %p95 = scmp.eq.s32.totalorder %s22, 3
      %p96 = por %p94, %p95
      %p97 = scmp.ne.s32.totalorder %s88, %s89
      %p98 = scmp.eq.s32.totalorder %s22, 0
      %p99 = por %p97, %p98
      %p100 = scmp.ne.s32.totalorder %s88, %s89
      %p101 = scmp.eq.s32.totalorder %s23, 3
      %p102 = por %p100, %p101
      %p104 = scmp.ne.s32.totalorder %s89, %s103
      %p105 = scmp.eq.s32.totalorder %s23, 0
      %p106 = por %p104, %p105
      %s108 = sadd.s32 %s107, 1
      %p111 = scmp.eq.s32.totalorder %s17, 3
      %p112 = scmp.ne.s32.totalorder %s107, %s109
      %p113 = scmp.eq.s32.totalorder %s17, 0
      %p114 = por %p112, %p113
      %p115 = scmp.ne.s32.totalorder %s107, %s109
      %p116 = scmp.eq.s32.totalorder %s22, 3
      %p117 = por %p115, %p116
      %p118 = scmp.ne.s32.totalorder %s109, %s110
      %p119 = scmp.eq.s32.totalorder %s22, 0
      %p120 = por %p118, %p119
      %p121 = scmp.ne.s32.totalorder %s109, %s110
      %p122 = scmp.eq.s32.totalorder %s23, 3
      %p123 = por %p121, %p122
      %p125 = scmp.ne.s32.totalorder %s110, %s124
      %p126 = scmp.eq.s32.totalorder %s23, 0
      %p127 = por %p125, %p126
      %s128 = ssub.s32 %s24, %s36
      %p129 = scmp.eq.s32.totalorder %s128, 0
      %s131 = sadd.s32 %s130, 1
      %s132 = scalar_select %p129, %s130, %s131
      %p135 = pneg %p129
      %p136 = scmp.eq.s32.totalorder %s17, 3
      %p137 = por %p135, %p136
      %p138 = scmp.ne.s32.totalorder %s130, %s133
      %p139 = scmp.eq.s32.totalorder %s17, 0
      %p140 = por %p138, %p139
      %p141 = scmp.ne.s32.totalorder %s130, %s133
      %p142 = scmp.eq.s32.totalorder %s22, 3
      %p143 = por %p141, %p142
      %p144 = scmp.ne.s32.totalorder %s133, %s134
      %p145 = scmp.eq.s32.totalorder %s22, 0
      %p146 = por %p144, %p145
      %p147 = scmp.ne.s32.totalorder %s133, %s134
      %p148 = scmp.eq.s32.totalorder %s23, 3
      %p149 = por %p147, %p148
      %p151 = scmp.ne.s32.totalorder %s134, %s150
      %p152 = scmp.eq.s32.totalorder %s23, 0
      %p153 = por %p151, %p152
      %s155 = sadd.s32 %s154, 1
      %p158 = scmp.eq.s32.totalorder %s17, 3
      %p159 = scmp.ne.s32.totalorder %s154, %s156
      %p160 = scmp.eq.s32.totalorder %s17, 0
      %p161 = por %p159, %p160
      %p162 = scmp.ne.s32.totalorder %s154, %s156
      %p163 = scmp.eq.s32.totalorder %s22, 3
      %p164 = por %p162, %p163
      %p165 = scmp.ne.s32.totalorder %s156, %s157
      %p166 = scmp.eq.s32.totalorder %s22, 0
      %p167 = por %p165, %p166
      %p168 = scmp.ne.s32.totalorder %s156, %s157
      %p169 = scmp.eq.s32.totalorder %s23, 3
      %p170 = por %p168, %p169
      %p172 = scmp.ne.s32.totalorder %s157, %s171
      %p173 = scmp.eq.s32.totalorder %s23, 0
      %p174 = por %p172, %p173
      %s176 = sadd.s32 %s175, 1
      %p179 = scmp.eq.s32.totalorder %s17, 3
      %p180 = scmp.ne.s32.totalorder %s175, %s177
      %p181 = scmp.eq.s32.totalorder %s17, 0
      %p182 = por %p180, %p181
      %p183 = scmp.ne.s32.totalorder %s175, %s177
      %p184 = scmp.eq.s32.totalorder %s22, 3
      %p185 = por %p183, %p184
      %p186 = scmp.ne.s32.totalorder %s177, %s178
      %p187 = scmp.eq.s32.totalorder %s22, 0
      %p188 = por %p186, %p187
      %p189 = scmp.ne.s32.totalorder %s177, %s178
      %p190 = scmp.eq.s32.totalorder %s23, 3
      %p191 = por %p189, %p190
      %p193 = scmp.ne.s32.totalorder %s178, %s192
      %p194 = scmp.eq.s32.totalorder %s23, 0
      %p195 = por %p193, %p194
      %s197 = sadd.s32 %s196, 1
      %p200 = scmp.eq.s32.totalorder %s17, 3
      %p201 = scmp.ne.s32.totalorder %s196, %s198
      %p202 = scmp.eq.s32.totalorder %s17, 0
      %p203 = por %p201, %p202
      %p204 = scmp.ne.s32.totalorder %s196, %s198
      %p205 = scmp.eq.s32.totalorder %s22, 3
      %p206 = por %p204, %p205
      %p207 = scmp.ne.s32.totalorder %s198, %s199
      %p208 = scmp.eq.s32.totalorder %s22, 0
      %p209 = por %p207, %p208
      %p210 = scmp.ne.s32.totalorder %s198, %s199
      %p211 = scmp.eq.s32.totalorder %s23, 3
      %p212 = por %p210, %p211
      %p214 = scmp.ne.s32.totalorder %s199, %s213
      %p215 = scmp.eq.s32.totalorder %s23, 0
      %p216 = por %p214, %p215
      %s218 = sadd.s32 %s217, 1
      %p221 = scmp.eq.s32.totalorder %s17, 3
      %p222 = scmp.ne.s32.totalorder %s217, %s219
      %p223 = scmp.eq.s32.totalorder %s17, 0
      %p224 = por %p222, %p223
      %p225 = scmp.ne.s32.totalorder %s217, %s219
      %p226 = scmp.eq.s32.totalorder %s22, 3
      %p227 = por %p225, %p226
      %p228 = scmp.ne.s32.totalorder %s219, %s220
      %p229 = scmp.eq.s32.totalorder %s22, 0
      %p230 = por %p228, %p229
      %p231 = scmp.ne.s32.totalorder %s219, %s220
      %p232 = scmp.eq.s32.totalorder %s23, 3
      %p233 = por %p231, %p232
      %p235 = scmp.ne.s32.totalorder %s220, %s234
      %p236 = scmp.eq.s32.totalorder %s23, 0
      %p237 = por %p235, %p236
      %s238 = ssub.s32 %s24, %s36
      %s239 = ssub.s32 %s25, %s32
      %s240 = sor.u32 %s238, %s239
      %p241 = scmp.eq.s32.totalorder %s240, 0
      %s243 = sadd.s32 %s242, 1
      %s244 = scalar_select %p241, %s242, %s243
      %p247 = pneg %p241
      %p248 = scmp.eq.s32.totalorder %s17, 3
      %p249 = por %p247, %p248
      %p250 = scmp.ne.s32.totalorder %s242, %s245
      %p251 = scmp.eq.s32.totalorder %s17, 0
      %p252 = por %p250, %p251
      %p253 = scmp.ne.s32.totalorder %s242, %s245
      %p254 = scmp.eq.s32.totalorder %s22, 3
      %p255 = por %p253, %p254
      %p256 = scmp.ne.s32.totalorder %s245, %s246
      %p257 = scmp.eq.s32.totalorder %s22, 0
      %p258 = por %p256, %p257
      %p259 = scmp.ne.s32.totalorder %s245, %s246
      %p260 = scmp.eq.s32.totalorder %s23, 3
      %p261 = por %p259, %p260
      %p263 = scmp.ne.s32.totalorder %s246, %s262
      %p264 = scmp.eq.s32.totalorder %s23, 0
      %p265 = por %p263, %p264
      %p266 = scmp.le.s32.totalorder 1, %s17
      %p267 = scmp.lt.s32.totalorder %s17, 5
      %p268 = pnand %p266, %p267
      %p269 = pneg %p268
      // Predicated region
      $region9: #{forward.5} parent=5 // pred_check
        _
      $region10: #{forward.5} parent=5 // pred_check_branch
        %271 = sbr.rel (%p268) target = $region12
      $region11: #{forward.5} parent=5 // pred_region
        %s272 = ssub.s32 %s17, 1
        // Predicated region
        $region13: #{forward.5} parent=11 // pred_check
          %p273 = pneg %p78
        $region14: #{forward.5} parent=11 // pred_check_branch
          %275 = sbr.rel (%p273) target = $region16
        $region15: #{forward.5} parent=11 // pred_region
          _
        $region16: #{forward.5} parent=11 // pred_fallthru
          _
        // Predicated region
        $region17: #{forward.5} parent=11 // pred_check
          %p276 = pneg %p99
        $region18: #{forward.5} parent=11 // pred_check_branch
          %278 = sbr.rel (%p276) target = $region20
        $region19: #{forward.5} parent=11 // pred_region
          _
        $region20: #{forward.5} parent=11 // pred_fallthru
          _
        // Predicated region
        $region21: #{forward.5} parent=11 // pred_check
          %p279 = pneg %p120
        $region22: #{forward.5} parent=11 // pred_check_branch
          %281 = sbr.rel (%p279) target = $region24
        $region23: #{forward.5} parent=11 // pred_region
          _
        $region24: #{forward.5} parent=11 // pred_fallthru
          _
        // Predicated region
        $region25: #{forward.5} parent=11 // pred_check
          %p282 = pneg %p167
        $region26: #{forward.5} parent=11 // pred_check_branch
          %284 = sbr.rel (%p282) target = $region28
        $region27: #{forward.5} parent=11 // pred_region
          _
        $region28: #{forward.5} parent=11 // pred_fallthru
          _
        // Predicated region
        $region29: #{forward.5} parent=11 // pred_check
          %p285 = pneg %p188
        $region30: #{forward.5} parent=11 // pred_check_branch
          %287 = sbr.rel (%p285) target = $region32
        $region31: #{forward.5} parent=11 // pred_region
          _
        $region32: #{forward.5} parent=11 // pred_fallthru
          _
        // Predicated region
        $region33: #{forward.5} parent=11 // pred_check
          %p288 = pneg %p209
        $region34: #{forward.5} parent=11 // pred_check_branch
          %290 = sbr.rel (%p288) target = $region36
        $region35: #{forward.5} parent=11 // pred_region
          _
        $region36: #{forward.5} parent=11 // pred_fallthru
          _
        // Predicated region
        $region37: #{forward.5} parent=11 // pred_check
          %p291 = pneg %p230
        $region38: #{forward.5} parent=11 // pred_check_branch
          %293 = sbr.rel (%p291) target = $region40
        $region39: #{forward.5} parent=11 // pred_region
          _
        $region40: #{forward.5} parent=11 // pred_fallthru
          _
      $region12: #{forward.5} parent=5 // pred_fallthru
        _
      %p294 = scmp.lt.s32.totalorder %s17, 4
      // Predicated region
      $region41: #{forward.5} parent=5 // pred_check
        %p295 = pneg %p294
      $region42: #{forward.5} parent=5 // pred_check_branch
        %297 = sbr.rel (%p295) target = $region44
      $region43: #{forward.5} parent=5 // pred_region
        // Predicated region
        $region45: #{forward.5} parent=43 // pred_check
          %p298 = pneg %p51
        $region46: #{forward.5} parent=43 // pred_check_branch
          %300 = sbr.rel (%p298) target = $region48
        $region47: #{forward.5} parent=43 // pred_region
          %s301 = sand.u32 %s41, 1
          %s302 = sand.u32 %s41, 1
          %s303 = smul.addr %s302, 256
          %s304 = scalar_lea.vmem [#allocation3], %s303
          %s305 = smul.u32 16, %s25
          %s306 = smul.addr %s305, 2
          %s307 = smul.addr %s24, 128
          %s308 = sadd.s32 %s306, %s307
          %s309 = smul.addr %s308, 4
          %s310 = scalar_lea.vmem %s0, %s309
          // Predicated region
          $region49: #{forward.5} parent=47 // pred_check
            _
          $region50: #{forward.5} parent=47 // pred_check_branch
            %312 = sbr.rel (0) target = $region52
          $region51: #{forward.5} parent=47 // pred_region
            // Predicated region
            $region53: #{forward.5} parent=51 // pred_check
              _
            $region54: #{forward.5} parent=51 // pred_check_branch
              %314 = sbr.rel (0) target = $region56
            $region55: #{forward.5} parent=51 // pred_region
              // Predicated region
              $region68: #{forward.5} parent=55 // pred_check
                _
              $region69: #{forward.5} parent=55 // pred_check_branch
                %392 = sbr.rel (0) target = $region71
              $region70: #{forward.5} parent=55 // pred_region
                loop: start=0, step=1, limit=1
                $region72: #{forward.5} parent=70 // loop_pre_header
                  _
                $region73: #{forward.5} parent=70 // loop_header
                  %s394 = sphi 0, %s398
                  %p395 = scmp.ge.s32.totalorder %s394, 1
                  %s399 = sphi %s310, %s310
                  %s400 = sphi %s304, %s304
                $region74: #{forward.5} parent=70 // loop_header_branch
                  %397 = sbr.rel (%p395) target = $region78
                $region75: #{forward.5} parent=70 // loop_body
                  %v401 = vld [vmem:[%s399] sm:$0xff]
                  %402 = vst [vmem:[%s400] sm:$0xff] %v401
                  %v403 = vld [vmem:[%s399 + $0x8] sm:$0xff]
                  %404 = vst [vmem:[%s400 + $0x8] sm:$0xff] %v403
                  %v405 = vld [vmem:[%s399 + $0x10] sm:$0xff]
                  %406 = vst [vmem:[%s400 + $0x10] sm:$0xff] %v405
                  %v407 = vld [vmem:[%s399 + $0x18] sm:$0xff]
                  %408 = vst [vmem:[%s400 + $0x18] sm:$0xff] %v407
                  %v409 = vld [vmem:[%s399 + $0x20] sm:$0xff]
                  %410 = vst [vmem:[%s400 + $0x20] sm:$0xff] %v409
                  %v411 = vld [vmem:[%s399 + $0x28] sm:$0xff]
                  %412 = vst [vmem:[%s400 + $0x28] sm:$0xff] %v411
                  %v413 = vld [vmem:[%s399 + $0x30] sm:$0xff]
                  %414 = vst [vmem:[%s400 + $0x30] sm:$0xff] %v413
                  %v415 = vld [vmem:[%s399 + $0x38] sm:$0xff]
                  %416 = vst [vmem:[%s400 + $0x38] sm:$0xff] %v415
                  %v417 = vld [vmem:[%s399 + $0x40] sm:$0xff]
                  %418 = vst [vmem:[%s400 + $0x40] sm:$0xff] %v417
                  %v419 = vld [vmem:[%s399 + $0x48] sm:$0xff]
                  %420 = vst [vmem:[%s400 + $0x48] sm:$0xff] %v419
                  %v421 = vld [vmem:[%s399 + $0x50] sm:$0xff]
                  %422 = vst [vmem:[%s400 + $0x50] sm:$0xff] %v421
                  %v423 = vld [vmem:[%s399 + $0x58] sm:$0xff]
                  %424 = vst [vmem:[%s400 + $0x58] sm:$0xff] %v423
                  %v425 = vld [vmem:[%s399 + $0x60] sm:$0xff]
                  %426 = vst [vmem:[%s400 + $0x60] sm:$0xff] %v425
                  %v427 = vld [vmem:[%s399 + $0x68] sm:$0xff]
                  %428 = vst [vmem:[%s400 + $0x68] sm:$0xff] %v427
                  %v429 = vld [vmem:[%s399 + $0x70] sm:$0xff]
                  %430 = vst [vmem:[%s400 + $0x70] sm:$0xff] %v429
                  %v431 = vld [vmem:[%s399 + $0x78] sm:$0xff]
                  %432 = vst [vmem:[%s400 + $0x78] sm:$0xff] %v431
                  %v433 = vld [vmem:[%s399 + $0x100] sm:$0xff]
                  %434 = vst [vmem:[%s400 + $0x80] sm:$0xff] %v433
                  %v435 = vld [vmem:[%s399 + $0x108] sm:$0xff]
                  %436 = vst [vmem:[%s400 + $0x88] sm:$0xff] %v435
                  %v437 = vld [vmem:[%s399 + $0x110] sm:$0xff]
                  %438 = vst [vmem:[%s400 + $0x90] sm:$0xff] %v437
                  %v439 = vld [vmem:[%s399 + $0x118] sm:$0xff]
                  %440 = vst [vmem:[%s400 + $0x98] sm:$0xff] %v439
                  %v441 = vld [vmem:[%s399 + $0x120] sm:$0xff]
                  %442 = vst [vmem:[%s400 + $0xa0] sm:$0xff] %v441
                  %v443 = vld [vmem:[%s399 + $0x128] sm:$0xff]
                  %444 = vst [vmem:[%s400 + $0xa8] sm:$0xff] %v443
                  %v445 = vld [vmem:[%s399 + $0x130] sm:$0xff]
                  %446 = vst [vmem:[%s400 + $0xb0] sm:$0xff] %v445
                  %v447 = vld [vmem:[%s399 + $0x138] sm:$0xff]
                  %448 = vst [vmem:[%s400 + $0xb8] sm:$0xff] %v447
                  %v449 = vld [vmem:[%s399 + $0x140] sm:$0xff]
                  %450 = vst [vmem:[%s400 + $0xc0] sm:$0xff] %v449
                  %v451 = vld [vmem:[%s399 + $0x148] sm:$0xff]
                  %452 = vst [vmem:[%s400 + $0xc8] sm:$0xff] %v451
                  %v453 = vld [vmem:[%s399 + $0x150] sm:$0xff]
                  %454 = vst [vmem:[%s400 + $0xd0] sm:$0xff] %v453
                  %v455 = vld [vmem:[%s399 + $0x158] sm:$0xff]
                  %456 = vst [vmem:[%s400 + $0xd8] sm:$0xff] %v455
                  %v457 = vld [vmem:[%s399 + $0x160] sm:$0xff]
                  %458 = vst [vmem:[%s400 + $0xe0] sm:$0xff] %v457
                  %v459 = vld [vmem:[%s399 + $0x168] sm:$0xff]
                  %460 = vst [vmem:[%s400 + $0xe8] sm:$0xff] %v459
                  %v461 = vld [vmem:[%s399 + $0x170] sm:$0xff]
                  %462 = vst [vmem:[%s400 + $0xf0] sm:$0xff] %v461
                  %v463 = vld [vmem:[%s399 + $0x178] sm:$0xff]
                  %464 = vst [vmem:[%s400 + $0xf8] sm:$0xff] %v463
                $region76: #{forward.5} parent=70 // loop_footer
                  %s398 = sadd.s32 1, %s394
                $region77: #{forward.5} parent=70 // loop_footer_branch
                  %393 = sbr.rel target = $region73
                $region78: #{forward.5} parent=70 // loop_exit
                  _
              $region71: #{forward.5} parent=55 // pred_fallthru
                _
              // Predicated region
              $region79: #{forward.5} parent=55 // pred_check
                _
              $region80: #{forward.5} parent=55 // pred_check_branch
                %466 = sbr.rel target = $region82
              $region81: #{forward.5} parent=55 // pred_region
                _
              $region82: #{forward.5} parent=55 // pred_fallthru
                _
            $region56: #{forward.5} parent=51 // pred_fallthru
              _
            // Predicated region
            $region57: #{forward.5} parent=51 // pred_check
              _
            $region58: #{forward.5} parent=51 // pred_check_branch
              %316 = sbr.rel target = $region60
            $region59: #{forward.5} parent=51 // pred_region
              %s318 = ssub.s32 256, 1
              loop: start=0, step=1, limit=1
              $region61: #{forward.5} parent=59 // loop_pre_header
                _
              $region62: #{forward.5} parent=59 // loop_header
                %s320 = sphi 0, %s324
                %p321 = scmp.ge.s32.totalorder %s320, 1
                %s325 = sphi %s310, %s310
                %s326 = sphi %s304, %s304
              $region63: #{forward.5} parent=59 // loop_header_branch
                %323 = sbr.rel (%p321) target = $region67
              $region64: #{forward.5} parent=59 // loop_body
                %v327 = vld [vmem:[%s325] sm:%s318]
                %328 = vst [vmem:[%s326] sm:%s318] %v327
                %v329 = vld [vmem:[%s325 + $0x8] sm:%s318]
                %330 = vst [vmem:[%s326 + $0x8] sm:%s318] %v329
                %v331 = vld [vmem:[%s325 + $0x10] sm:%s318]
                %332 = vst [vmem:[%s326 + $0x10] sm:%s318] %v331
                %v333 = vld [vmem:[%s325 + $0x18] sm:%s318]
                %334 = vst [vmem:[%s326 + $0x18] sm:%s318] %v333
                %v335 = vld [vmem:[%s325 + $0x20] sm:%s318]
                %336 = vst [vmem:[%s326 + $0x20] sm:%s318] %v335
                %v337 = vld [vmem:[%s325 + $0x28] sm:%s318]
                %338 = vst [vmem:[%s326 + $0x28] sm:%s318] %v337
                %v339 = vld [vmem:[%s325 + $0x30] sm:%s318]
                %340 = vst [vmem:[%s326 + $0x30] sm:%s318] %v339
                %v341 = vld [vmem:[%s325 + $0x38] sm:%s318]
                %342 = vst [vmem:[%s326 + $0x38] sm:%s318] %v341
                %v343 = vld [vmem:[%s325 + $0x40] sm:%s318]
                %344 = vst [vmem:[%s326 + $0x40] sm:%s318] %v343
                %v345 = vld [vmem:[%s325 + $0x48] sm:%s318]
                %346 = vst [vmem:[%s326 + $0x48] sm:%s318] %v345
                %v347 = vld [vmem:[%s325 + $0x50] sm:%s318]
                %348 = vst [vmem:[%s326 + $0x50] sm:%s318] %v347
                %v349 = vld [vmem:[%s325 + $0x58] sm:%s318]
                %350 = vst [vmem:[%s326 + $0x58] sm:%s318] %v349
                %v351 = vld [vmem:[%s325 + $0x60] sm:%s318]
                %352 = vst [vmem:[%s326 + $0x60] sm:%s318] %v351
                %v353 = vld [vmem:[%s325 + $0x68] sm:%s318]
                %354 = vst [vmem:[%s326 + $0x68] sm:%s318] %v353
                %v355 = vld [vmem:[%s325 + $0x70] sm:%s318]
                %356 = vst [vmem:[%s326 + $0x70] sm:%s318] %v355
                %v357 = vld [vmem:[%s325 + $0x78] sm:%s318]
                %358 = vst [vmem:[%s326 + $0x78] sm:%s318] %v357
                %v359 = vld [vmem:[%s325 + $0x100] sm:%s318]
                %360 = vst [vmem:[%s326 + $0x80] sm:%s318] %v359
                %v361 = vld [vmem:[%s325 + $0x108] sm:%s318]
                %362 = vst [vmem:[%s326 + $0x88] sm:%s318] %v361
                %v363 = vld [vmem:[%s325 + $0x110] sm:%s318]
                %364 = vst [vmem:[%s326 + $0x90] sm:%s318] %v363
                %v365 = vld [vmem:[%s325 + $0x118] sm:%s318]
                %366 = vst [vmem:[%s326 + $0x98] sm:%s318] %v365
                %v367 = vld [vmem:[%s325 + $0x120] sm:%s318]
                %368 = vst [vmem:[%s326 + $0xa0] sm:%s318] %v367
                %v369 = vld [vmem:[%s325 + $0x128] sm:%s318]
                %370 = vst [vmem:[%s326 + $0xa8] sm:%s318] %v369
                %v371 = vld [vmem:[%s325 + $0x130] sm:%s318]
                %372 = vst [vmem:[%s326 + $0xb0] sm:%s318] %v371
                %v373 = vld [vmem:[%s325 + $0x138] sm:%s318]
                %374 = vst [vmem:[%s326 + $0xb8] sm:%s318] %v373
                %v375 = vld [vmem:[%s325 + $0x140] sm:%s318]
                %376 = vst [vmem:[%s326 + $0xc0] sm:%s318] %v375
                %v377 = vld [vmem:[%s325 + $0x148] sm:%s318]
                %378 = vst [vmem:[%s326 + $0xc8] sm:%s318] %v377
                %v379 = vld [vmem:[%s325 + $0x150] sm:%s318]
                %380 = vst [vmem:[%s326 + $0xd0] sm:%s318] %v379
                %v381 = vld [vmem:[%s325 + $0x158] sm:%s318]
                %382 = vst [vmem:[%s326 + $0xd8] sm:%s318] %v381
                %v383 = vld [vmem:[%s325 + $0x160] sm:%s318]
                %384 = vst [vmem:[%s326 + $0xe0] sm:%s318] %v383
                %v385 = vld [vmem:[%s325 + $0x168] sm:%s318]
                %386 = vst [vmem:[%s326 + $0xe8] sm:%s318] %v385
                %v387 = vld [vmem:[%s325 + $0x170] sm:%s318]
                %388 = vst [vmem:[%s326 + $0xf0] sm:%s318] %v387
                %v389 = vld [vmem:[%s325 + $0x178] sm:%s318]
                %390 = vst [vmem:[%s326 + $0xf8] sm:%s318] %v389
              $region65: #{forward.5} parent=59 // loop_footer
                %s324 = sadd.s32 1, %s320
              $region66: #{forward.5} parent=59 // loop_footer_branch
                %319 = sbr.rel target = $region62
              $region67: #{forward.5} parent=59 // loop_exit
                _
            $region60: #{forward.5} parent=51 // pred_fallthru
              _
          $region52: #{forward.5} parent=47 // pred_fallthru
            _
          %467 = vnop
        $region48: #{forward.5} parent=43 // pred_fallthru
          _
        // Predicated region
        $region83: #{forward.5} parent=43 // pred_check
          %p468 = pneg %p140
        $region84: #{forward.5} parent=43 // pred_check_branch
          %470 = sbr.rel (%p468) target = $region86
        $region85: #{forward.5} parent=43 // pred_region
          %p471 = scmp.lt.s32.totalorder %s24, 1
          %s472 = scalar_select %p471, %s24, 1
          %s473 = scalar_lea.vmem %s4, %s472
        $region86: #{forward.5} parent=43 // pred_fallthru
          _
      $region44: #{forward.5} parent=5 // pred_fallthru
        _
      %p474 = scmp.le.s32.totalorder 1, %s17
      %p475 = scmp.lt.s32.totalorder %s17, 5
      %p476 = pnand %p474, %p475
      %p477 = pneg %p476
      // Predicated region
      $region87: #{forward.5} parent=5 // pred_check
        _
      $region88: #{forward.5} parent=5 // pred_check_branch
        %479 = sbr.rel (%p476) target = $region90
      $region89: #{forward.5} parent=5 // pred_region
        %s480 = ssub.s32 %s17, 1
        %s481 = sand.u32 %s44, 1
        %s482 = sand.u32 %s44, 1
        %s483 = smul.addr %s482, 256
        %s484 = scalar_lea.vmem [#allocation3], %s483
        // Predicated region
        $region91: #{forward.5} parent=89 // pred_check
          %p485 = pneg %p57
        $region92: #{forward.5} parent=89 // pred_check_branch
          %487 = sbr.rel (%p485) target = $region94
        $region93: #{forward.5} parent=89 // pred_region
          _
        $region94: #{forward.5} parent=89 // pred_fallthru
          _
        %s488 = sand.u32 %s44, 1
        %s489 = sand.u32 %s44, 1
        %s490 = smul.addr %s489, 256
        %s491 = scalar_lea.vmem [#allocation3], %s490
        %p492 = pneg %p57
        %p493 = pneg %p54
        %p494 = pneg %p78
        %p495 = pneg %p75
        %p496 = pneg %p99
        %p497 = pneg %p96
        %p498 = pneg %p120
        %p499 = pneg %p117
        %p500 = scmp.lt.s32.totalorder %s26, 1
        %s501 = scalar_select %p500, %s26, 1
        %s502 = scalar_lea.vmem %s4, %s501
        %p503 = pneg %p146
        %p504 = pneg %p143
        %p505 = pneg %p167
        %p506 = pneg %p164
        %p507 = pneg %p188
        %p508 = pneg %p185
        %p509 = pneg %p209
        %p510 = pneg %p206
        %p511 = pneg %p230
        %p512 = pneg %p227
        %p513 = pneg %p258
        %p514 = pneg %p255
        %s515 = smul.u32 16, %s27
        %p516 = scmp.lt.s32.totalorder %s26, 1
        %s517 = scalar_select %p516, %s26, 1
        %p518 = scmp.lt.s32.totalorder %s515, 31
        %s519 = scalar_select %p518, %s515, 31
        %s520 = smul.addr %s517, 32
        %s521 = sadd.s32 %s519, %s520
        %s522 = smul.addr %s521, 8
        %s523 = scalar_lea.vmem %s9, %s522
        %s524 = smul.u32 16, %s27
        %p525 = scmp.lt.s32.totalorder %s26, 1
        %s526 = scalar_select %p525, %s26, 1
        %s527 = scalar_lea.vmem %s4, %s526
        %s528 = smul.u32 16, %s27
        %p529 = scmp.lt.s32.totalorder %s26, 1
        %s530 = scalar_select %p529, %s26, 1
        %p531 = scmp.lt.s32.totalorder %s528, 31
        %s532 = scalar_select %p531, %s528, 31
        %s533 = smul.addr %s530, 32
        %s534 = sadd.s32 %s532, %s533
        %s535 = smul.addr %s534, 8
        %s536 = scalar_lea.vmem %s9, %s535
        %s537 = smul.u32 16, %s27
        %v539 = vld [vmem:[%s484] sm:$0xff]
        %v540 = vld [vmem:[%s484 + $0x8] sm:$0xff]
        %v541 = vld [vmem:[%s484 + $0x10] sm:$0xff]
        %v542 = vld [vmem:[%s484 + $0x18] sm:$0xff]
        %v543 = vld [vmem:[%s484 + $0x20] sm:$0xff]
        %v544 = vld [vmem:[%s484 + $0x28] sm:$0xff]
        %v545 = vld [vmem:[%s484 + $0x30] sm:$0xff]
        %v546 = vld [vmem:[%s484 + $0x38] sm:$0xff]
        %v547 = vld [vmem:[%s484 + $0x40] sm:$0xff]
        %v548 = vld [vmem:[%s484 + $0x48] sm:$0xff]
        %v549 = vld [vmem:[%s484 + $0x50] sm:$0xff]
        %v550 = vld [vmem:[%s484 + $0x58] sm:$0xff]
        %v551 = vld [vmem:[%s484 + $0x60] sm:$0xff]
        %v552 = vld [vmem:[%s484 + $0x68] sm:$0xff]
        %v553 = vld [vmem:[%s484 + $0x70] sm:$0xff]
        %v554 = vld [vmem:[%s484 + $0x78] sm:$0xff]
        %v555 = vld [vmem:[%s484 + $0x80] sm:$0xff]
        %v556 = vld [vmem:[%s484 + $0x88] sm:$0xff]
        %v557 = vld [vmem:[%s484 + $0x90] sm:$0xff]
        %v558 = vld [vmem:[%s484 + $0x98] sm:$0xff]
        %v559 = vld [vmem:[%s484 + $0xa0] sm:$0xff]
        %v560 = vld [vmem:[%s484 + $0xa8] sm:$0xff]
        %v561 = vld [vmem:[%s484 + $0xb0] sm:$0xff]
        %v562 = vld [vmem:[%s484 + $0xb8] sm:$0xff]
        %v563 = vld [vmem:[%s484 + $0xc0] sm:$0xff]
        %v564 = vld [vmem:[%s484 + $0xc8] sm:$0xff]
        %v565 = vld [vmem:[%s484 + $0xd0] sm:$0xff]
        %v566 = vld [vmem:[%s484 + $0xd8] sm:$0xff]
        %v567 = vld [vmem:[%s484 + $0xe0] sm:$0xff]
        %v568 = vld [vmem:[%s484 + $0xe8] sm:$0xff]
        %v569 = vld [vmem:[%s484 + $0xf0] sm:$0xff]
        %v570 = vld [vmem:[%s484 + $0xf8] sm:$0xff]
        %v571 = vld [vmem:[%s1] sm:$0xff]
        %v572 = vld [vmem:[%s1 + $0x8] sm:$0xff]
        %v573 = vld [vmem:[%s1 + $0x10] sm:$0xff]
        %v574 = vld [vmem:[%s1 + $0x18] sm:$0xff]
        %v575 = vld [vmem:[%s1 + $0x20] sm:$0xff]
        %v576 = vld [vmem:[%s1 + $0x28] sm:$0xff]
        %v577 = vld [vmem:[%s1 + $0x30] sm:$0xff]
        %v578 = vld [vmem:[%s1 + $0x38] sm:$0xff]
        %v579 = vld [vmem:[%s1 + $0x40] sm:$0xff]
        %v580 = vld [vmem:[%s1 + $0x48] sm:$0xff]
        %v581 = vld [vmem:[%s1 + $0x50] sm:$0xff]
        %v582 = vld [vmem:[%s1 + $0x58] sm:$0xff]
        %v583 = vld [vmem:[%s1 + $0x60] sm:$0xff]
        %v584 = vld [vmem:[%s1 + $0x68] sm:$0xff]
        %v585 = vld [vmem:[%s1 + $0x70] sm:$0xff]
        %v586 = vld [vmem:[%s1 + $0x78] sm:$0xff]
        %v587 = vld [vmem:[%s1 + $0x80] sm:$0xff]
        %v588 = vld [vmem:[%s1 + $0x88] sm:$0xff]
        %v589 = vld [vmem:[%s1 + $0x90] sm:$0xff]
        %v590 = vld [vmem:[%s1 + $0x98] sm:$0xff]
        %v591 = vld [vmem:[%s1 + $0xa0] sm:$0xff]
        %v592 = vld [vmem:[%s1 + $0xa8] sm:$0xff]
        %v593 = vld [vmem:[%s1 + $0xb0] sm:$0xff]
        %v594 = vld [vmem:[%s1 + $0xb8] sm:$0xff]
        %v595 = vld [vmem:[%s1 + $0xc0] sm:$0xff]
        %v596 = vld [vmem:[%s1 + $0xc8] sm:$0xff]
        %v597 = vld [vmem:[%s1 + $0xd0] sm:$0xff]
        %v598 = vld [vmem:[%s1 + $0xd8] sm:$0xff]
        %v599 = vld [vmem:[%s1 + $0xe0] sm:$0xff]
        %v600 = vld [vmem:[%s1 + $0xe8] sm:$0xff]
        %v601 = vld [vmem:[%s1 + $0xf0] sm:$0xff]
        %v602 = vld [vmem:[%s1 + $0xf8] sm:$0xff]
        %v603 = vld [vmem:[%s1 + $0x100] sm:$0xff]
        %v604 = vld [vmem:[%s1 + $0x108] sm:$0xff]
        %v605 = vld [vmem:[%s1 + $0x110] sm:$0xff]
        %v606 = vld [vmem:[%s1 + $0x118] sm:$0xff]
        %v607 = vld [vmem:[%s1 + $0x120] sm:$0xff]
        %v608 = vld [vmem:[%s1 + $0x128] sm:$0xff]
        %v609 = vld [vmem:[%s1 + $0x130] sm:$0xff]
        %v610 = vld [vmem:[%s1 + $0x138] sm:$0xff]
        %v611 = vld [vmem:[%s1 + $0x140] sm:$0xff]
        %v612 = vld [vmem:[%s1 + $0x148] sm:$0xff]
        %v613 = vld [vmem:[%s1 + $0x150] sm:$0xff]
        %v614 = vld [vmem:[%s1 + $0x158] sm:$0xff]
        %v615 = vld [vmem:[%s1 + $0x160] sm:$0xff]
        %v616 = vld [vmem:[%s1 + $0x168] sm:$0xff]
        %v617 = vld [vmem:[%s1 + $0x170] sm:$0xff]
        %v618 = vld [vmem:[%s1 + $0x178] sm:$0xff]
        %v619 = vld [vmem:[%s3] sm:$0xf]
        %v621 = vperm.slane %v619, 0
        %v622 = vperm.slane %v619, 1
        %v623 = vperm.slane %v619, 2
        %v624 = vperm.slane %v619, 3
        %v661 = vunpack.c.l.b16 %v539
        %v662 = vunpack.c.h.b16 %v539
        %v663 = vunpack.c.l.b16 %v540
        %v664 = vunpack.c.h.b16 %v540
        %v665 = vunpack.c.l.b16 %v541
        %v666 = vunpack.c.h.b16 %v541
        %v667 = vunpack.c.l.b16 %v542
        %v668 = vunpack.c.h.b16 %v542
        %v669 = vunpack.c.l.b16 %v543
        %v670 = vunpack.c.h.b16 %v543
        %v671 = vunpack.c.l.b16 %v544
        %v672 = vunpack.c.h.b16 %v544
        %v673 = vunpack.c.l.b16 %v545
        %v674 = vunpack.c.h.b16 %v545
        %v675 = vunpack.c.l.b16 %v546
        %v676 = vunpack.c.h.b16 %v546
        %v677 = vunpack.c.l.b16 %v547
        %v678 = vunpack.c.h.b16 %v547
        %v679 = vunpack.c.l.b16 %v548
        %v680 = vunpack.c.h.b16 %v548
        %v681 = vunpack.c.l.b16 %v549
        %v682 = vunpack.c.h.b16 %v549
        %v683 = vunpack.c.l.b16 %v550
        %v684 = vunpack.c.h.b16 %v550
        %v685 = vunpack.c.l.b16 %v551
        %v686 = vunpack.c.h.b16 %v551
        %v687 = vunpack.c.l.b16 %v552
        %v688 = vunpack.c.h.b16 %v552
        %v689 = vunpack.c.l.b16 %v553
        %v690 = vunpack.c.h.b16 %v553
        %v691 = vunpack.c.l.b16 %v554
        %v692 = vunpack.c.h.b16 %v554
        %v693 = vunpack.c.l.b16 %v555
        %v694 = vunpack.c.h.b16 %v555
        %v695 = vunpack.c.l.b16 %v556
        %v696 = vunpack.c.h.b16 %v556
        %v697 = vunpack.c.l.b16 %v557
        %v698 = vunpack.c.h.b16 %v557
        %v699 = vunpack.c.l.b16 %v558
        %v700 = vunpack.c.h.b16 %v558
        %v701 = vunpack.c.l.b16 %v559
        %v702 = vunpack.c.h.b16 %v559
        %v703 = vunpack.c.l.b16 %v560
        %v704 = vunpack.c.h.b16 %v560
        %v705 = vunpack.c.l.b16 %v561
        %v706 = vunpack.c.h.b16 %v561
        %v707 = vunpack.c.l.b16 %v562
        %v708 = vunpack.c.h.b16 %v562
        %v709 = vunpack.c.l.b16 %v563
        %v710 = vunpack.c.h.b16 %v563
        %v711 = vunpack.c.l.b16 %v564
        %v712 = vunpack.c.h.b16 %v564
        %v713 = vunpack.c.l.b16 %v565
        %v714 = vunpack.c.h.b16 %v565
        %v715 = vunpack.c.l.b16 %v566
        %v716 = vunpack.c.h.b16 %v566
        %v717 = vunpack.c.l.b16 %v567
        %v718 = vunpack.c.h.b16 %v567
        %v719 = vunpack.c.l.b16 %v568
        %v720 = vunpack.c.h.b16 %v568
        %v721 = vunpack.c.l.b16 %v569
        %v722 = vunpack.c.h.b16 %v569
        %v723 = vunpack.c.l.b16 %v570
        %v724 = vunpack.c.h.b16 %v570
        %v725 = vpack.c.b16 %v663, %v661
        %v726 = vpack.c.b16 %v664, %v662
        %v727 = vpack.c.b16 %v667, %v665
        %v728 = vpack.c.b16 %v668, %v666
        %v729 = vpack.c.b16 %v671, %v669
        %v730 = vpack.c.b16 %v672, %v670
        %v731 = vpack.c.b16 %v675, %v673
        %v732 = vpack.c.b16 %v676, %v674
        %v733 = vpack.c.b16 %v679, %v677
        %v734 = vpack.c.b16 %v680, %v678
        %v735 = vpack.c.b16 %v683, %v681
        %v736 = vpack.c.b16 %v684, %v682
        %v737 = vpack.c.b16 %v687, %v685
        %v738 = vpack.c.b16 %v688, %v686
        %v739 = vpack.c.b16 %v691, %v689
        %v740 = vpack.c.b16 %v692, %v690
        %v741 = vpack.c.b16 %v695, %v693
        %v742 = vpack.c.b16 %v696, %v694
        %v743 = vpack.c.b16 %v699, %v697
        %v744 = vpack.c.b16 %v700, %v698
        %v745 = vpack.c.b16 %v703, %v701
        %v746 = vpack.c.b16 %v704, %v702
        %v747 = vpack.c.b16 %v707, %v705
        %v748 = vpack.c.b16 %v708, %v706
        %v749 = vpack.c.b16 %v711, %v709
        %v750 = vpack.c.b16 %v712, %v710
        %v751 = vpack.c.b16 %v715, %v713
        %v752 = vpack.c.b16 %v716, %v714
        %v753 = vpack.c.b16 %v719, %v717
        %v754 = vpack.c.b16 %v720, %v718
        %v755 = vpack.c.b16 %v723, %v721
        %v756 = vpack.c.b16 %v724, %v722
        %v821 = vunpack.c.l.b16 %v571
        %v822 = vunpack.c.h.b16 %v571
        %v823 = vunpack.c.l.b16 %v572
        %v824 = vunpack.c.h.b16 %v572
        %v825 = vunpack.c.l.b16 %v573
        %v826 = vunpack.c.h.b16 %v573
        %v827 = vunpack.c.l.b16 %v574
        %v828 = vunpack.c.h.b16 %v574
        %v829 = vunpack.c.l.b16 %v575
        %v830 = vunpack.c.h.b16 %v575
        %v831 = vunpack.c.l.b16 %v576
        %v832 = vunpack.c.h.b16 %v576
        %v833 = vunpack.c.l.b16 %v577
        %v834 = vunpack.c.h.b16 %v577
        %v835 = vunpack.c.l.b16 %v578
        %v836 = vunpack.c.h.b16 %v578
        %v837 = vunpack.c.l.b16 %v579
        %v838 = vunpack.c.h.b16 %v579
        %v839 = vunpack.c.l.b16 %v580
        %v840 = vunpack.c.h.b16 %v580
        %v841 = vunpack.c.l.b16 %v581
        %v842 = vunpack.c.h.b16 %v581
        %v843 = vunpack.c.l.b16 %v582
        %v844 = vunpack.c.h.b16 %v582
        %v845 = vunpack.c.l.b16 %v583
        %v846 = vunpack.c.h.b16 %v583
        %v847 = vunpack.c.l.b16 %v584
        %v848 = vunpack.c.h.b16 %v584
        %v849 = vunpack.c.l.b16 %v585
        %v850 = vunpack.c.h.b16 %v585
        %v851 = vunpack.c.l.b16 %v586
        %v852 = vunpack.c.h.b16 %v586
        %v853 = vunpack.c.l.b16 %v587
        %v854 = vunpack.c.h.b16 %v587
        %v855 = vunpack.c.l.b16 %v588
        %v856 = vunpack.c.h.b16 %v588
        %v857 = vunpack.c.l.b16 %v589
        %v858 = vunpack.c.h.b16 %v589
        %v859 = vunpack.c.l.b16 %v590
        %v860 = vunpack.c.h.b16 %v590
        %v861 = vunpack.c.l.b16 %v591
        %v862 = vunpack.c.h.b16 %v591
        %v863 = vunpack.c.l.b16 %v592
        %v864 = vunpack.c.h.b16 %v592
        %v865 = vunpack.c.l.b16 %v593
        %v866 = vunpack.c.h.b16 %v593
        %v867 = vunpack.c.l.b16 %v594
        %v868 = vunpack.c.h.b16 %v594
        %v869 = vunpack.c.l.b16 %v595
        %v870 = vunpack.c.h.b16 %v595
        %v871 = vunpack.c.l.b16 %v596
        %v872 = vunpack.c.h.b16 %v596
        %v873 = vunpack.c.l.b16 %v597
        %v874 = vunpack.c.h.b16 %v597
        %v875 = vunpack.c.l.b16 %v598
        %v876 = vunpack.c.h.b16 %v598
        %v877 = vunpack.c.l.b16 %v599
        %v878 = vunpack.c.h.b16 %v599
        %v879 = vunpack.c.l.b16 %v600
        %v880 = vunpack.c.h.b16 %v600
        %v881 = vunpack.c.l.b16 %v601
        %v882 = vunpack.c.h.b16 %v601
        %v883 = vunpack.c.l.b16 %v602
        %v884 = vunpack.c.h.b16 %v602
        %v885 = vunpack.c.l.b16 %v603
        %v886 = vunpack.c.h.b16 %v603
        %v887 = vunpack.c.l.b16 %v604
        %v888 = vunpack.c.h.b16 %v604
        %v889 = vunpack.c.l.b16 %v605
        %v890 = vunpack.c.h.b16 %v605
        %v891 = vunpack.c.l.b16 %v606
        %v892 = vunpack.c.h.b16 %v606
        %v893 = vunpack.c.l.b16 %v607
        %v894 = vunpack.c.h.b16 %v607
        %v895 = vunpack.c.l.b16 %v608
        %v896 = vunpack.c.h.b16 %v608
        %v897 = vunpack.c.l.b16 %v609
        %v898 = vunpack.c.h.b16 %v609
        %v899 = vunpack.c.l.b16 %v610
        %v900 = vunpack.c.h.b16 %v610
        %v901 = vunpack.c.l.b16 %v611
        %v902 = vunpack.c.h.b16 %v611
        %v903 = vunpack.c.l.b16 %v612
        %v904 = vunpack.c.h.b16 %v612
        %v905 = vunpack.c.l.b16 %v613
        %v906 = vunpack.c.h.b16 %v613
        %v907 = vunpack.c.l.b16 %v614
        %v908 = vunpack.c.h.b16 %v614
        %v909 = vunpack.c.l.b16 %v615
        %v910 = vunpack.c.h.b16 %v615
        %v911 = vunpack.c.l.b16 %v616
        %v912 = vunpack.c.h.b16 %v616
        %v913 = vunpack.c.l.b16 %v617
        %v914 = vunpack.c.h.b16 %v617
        %v915 = vunpack.c.l.b16 %v618
        %v916 = vunpack.c.h.b16 %v618
        %v917 = vpack.c.b16 %v825, %v821
        %v918 = vpack.c.b16 %v826, %v822
        %v919 = vpack.c.b16 %v827, %v823
        %v920 = vpack.c.b16 %v828, %v824
        %v921 = vpack.c.b16 %v833, %v829
        %v922 = vpack.c.b16 %v834, %v830
        %v923 = vpack.c.b16 %v835, %v831
        %v924 = vpack.c.b16 %v836, %v832
        %v925 = vpack.c.b16 %v841, %v837
        %v926 = vpack.c.b16 %v842, %v838
        %v927 = vpack.c.b16 %v843, %v839
        %v928 = vpack.c.b16 %v844, %v840
        %v929 = vpack.c.b16 %v849, %v845
        %v930 = vpack.c.b16 %v850, %v846
        %v931 = vpack.c.b16 %v851, %v847
        %v932 = vpack.c.b16 %v852, %v848
        %v933 = vpack.c.b16 %v857, %v853
        %v934 = vpack.c.b16 %v858, %v854
        %v935 = vpack.c.b16 %v859, %v855
        %v936 = vpack.c.b16 %v860, %v856
        %v937 = vpack.c.b16 %v865, %v861
        %v938 = vpack.c.b16 %v866, %v862
        %v939 = vpack.c.b16 %v867, %v863
        %v940 = vpack.c.b16 %v868, %v864
        %v941 = vpack.c.b16 %v873, %v869
        %v942 = vpack.c.b16 %v874, %v870
        %v943 = vpack.c.b16 %v875, %v871
        %v944 = vpack.c.b16 %v876, %v872
        %v945 = vpack.c.b16 %v881, %v877
        %v946 = vpack.c.b16 %v882, %v878
        %v947 = vpack.c.b16 %v883, %v879
        %v948 = vpack.c.b16 %v884, %v880
        %v949 = vpack.c.b16 %v889, %v885
        %v950 = vpack.c.b16 %v890, %v886
        %v951 = vpack.c.b16 %v891, %v887
        %v952 = vpack.c.b16 %v892, %v888
        %v953 = vpack.c.b16 %v897, %v893
        %v954 = vpack.c.b16 %v898, %v894
        %v955 = vpack.c.b16 %v899, %v895
        %v956 = vpack.c.b16 %v900, %v896
        %v957 = vpack.c.b16 %v905, %v901
        %v958 = vpack.c.b16 %v906, %v902
        %v959 = vpack.c.b16 %v907, %v903
        %v960 = vpack.c.b16 %v908, %v904
        %v961 = vpack.c.b16 %v913, %v909
        %v962 = vpack.c.b16 %v914, %v910
        %v963 = vpack.c.b16 %v915, %v911
        %v964 = vpack.c.b16 %v916, %v912
        %vm1013 = vcmask 523264
        %v1015 = vsel %vm1013, %v726, 0
        %v1018 = vsel %vm1013, %v728, 0
        %v1021 = vsel %vm1013, %v730, 0
        %v1024 = vsel %vm1013, %v732, 0
        %v1027 = vsel %vm1013, %v734, 0
        %v1030 = vsel %vm1013, %v736, 0
        %v1033 = vsel %vm1013, %v738, 0
        %v1036 = vsel %vm1013, %v740, 0
        %v1039 = vsel %vm1013, %v742, 0
        %v1042 = vsel %vm1013, %v744, 0
        %v1045 = vsel %vm1013, %v746, 0
        %v1048 = vsel %vm1013, %v748, 0
        %v1051 = vsel %vm1013, %v750, 0
        %v1054 = vsel %vm1013, %v752, 0
        %v1057 = vsel %vm1013, %v754, 0
        %v1060 = vsel %vm1013, %v756, 0
        %1062 = vmatpush.bf16.msra.mxu0 %v945
        %1063 = vmatpush.bf16.msra.mxu0 %v941
        %1064 = vmatpush.bf16.msra.mxu0 %v937
        %1065 = vmatpush.bf16.msra.mxu0 %v933
        %1066 = vmatpush.bf16.msra.mxu0 %v929
        %1067 = vmatpush.bf16.msra.mxu0 %v925
        %1068 = vmatpush.bf16.msra.mxu0 %v921
        %1069 = vmatpush.bf16.msra.mxu0 %v917
        %1070 = vmatmul.bf16.gmra.mxu0 %v725
        %v1071 = vpop.f32.mrf.mxu0
        %v1072 = vadd.f32 %v621, %v1071
        %v1073 = vpop.f32.mrf.mxu0
        %v1074 = vadd.f32 %v621, %v1073
        %1075 = vmatmul.bf16.gmra.mxu0 %v727
        %v1076 = vpop.f32.mrf.mxu0
        %v1077 = vadd.f32 %v621, %v1076
        %v1078 = vpop.f32.mrf.mxu0
        %v1079 = vadd.f32 %v621, %v1078
        %1080 = vmatmul.bf16.gmra.mxu0 %v729
        %v1081 = vpop.f32.mrf.mxu0
        %v1082 = vadd.f32 %v621, %v1081
        %v1083 = vpop.f32.mrf.mxu0
        %v1084 = vadd.f32 %v621, %v1083
        %1085 = vmatmul.bf16.gmra.mxu0 %v731
        %v1086 = vpop.f32.mrf.mxu0
        %v1087 = vadd.f32 %v621, %v1086
        %v1088 = vpop.f32.mrf.mxu0
        %v1089 = vadd.f32 %v621, %v1088
        %1090 = vmatmul.bf16.gmra.mxu0 %v733
        %v1091 = vpop.f32.mrf.mxu0
        %v1092 = vadd.f32 %v621, %v1091
        %v1093 = vpop.f32.mrf.mxu0
        %v1094 = vadd.f32 %v621, %v1093
        %1095 = vmatmul.bf16.gmra.mxu0 %v735
        %v1096 = vpop.f32.mrf.mxu0
        %v1097 = vadd.f32 %v621, %v1096
        %v1098 = vpop.f32.mrf.mxu0
        %v1099 = vadd.f32 %v621, %v1098
        %1100 = vmatmul.bf16.gmra.mxu0 %v737
        %v1101 = vpop.f32.mrf.mxu0
        %v1102 = vadd.f32 %v621, %v1101
        %v1103 = vpop.f32.mrf.mxu0
        %v1104 = vadd.f32 %v621, %v1103
        %1105 = vmatmul.bf16.gmra.mxu0 %v739
        %v1106 = vpop.f32.mrf.mxu0
        %v1107 = vadd.f32 %v621, %v1106
        %v1108 = vpop.f32.mrf.mxu0
        %v1109 = vadd.f32 %v621, %v1108
        %1110 = vmatmul.bf16.gmra.mxu0 %v741
        %v1111 = vpop.f32.mrf.mxu0
        %v1112 = vadd.f32 %v621, %v1111
        %v1113 = vpop.f32.mrf.mxu0
        %v1114 = vadd.f32 %v621, %v1113
        %1115 = vmatmul.bf16.gmra.mxu0 %v743
        %v1116 = vpop.f32.mrf.mxu0
        %v1117 = vadd.f32 %v621, %v1116
        %v1118 = vpop.f32.mrf.mxu0
        %v1119 = vadd.f32 %v621, %v1118
        %1120 = vmatmul.bf16.gmra.mxu0 %v745
        %v1121 = vpop.f32.mrf.mxu0
        %v1122 = vadd.f32 %v621, %v1121
        %v1123 = vpop.f32.mrf.mxu0
        %v1124 = vadd.f32 %v621, %v1123
        %1125 = vmatmul.bf16.gmra.mxu0 %v747
        %v1126 = vpop.f32.mrf.mxu0
        %v1127 = vadd.f32 %v621, %v1126
        %v1128 = vpop.f32.mrf.mxu0
        %v1129 = vadd.f32 %v621, %v1128
        %1130 = vmatmul.bf16.gmra.mxu0 %v749
        %v1131 = vpop.f32.mrf.mxu0
        %v1132 = vadd.f32 %v621, %v1131
        %v1133 = vpop.f32.mrf.mxu0
        %v1134 = vadd.f32 %v621, %v1133
        %1135 = vmatmul.bf16.gmra.mxu0 %v751
        %v1136 = vpop.f32.mrf.mxu0
        %v1137 = vadd.f32 %v621, %v1136
        %v1138 = vpop.f32.mrf.mxu0
        %v1139 = vadd.f32 %v621, %v1138
        %1140 = vmatmul.bf16.gmra.mxu0 %v753
        %v1141 = vpop.f32.mrf.mxu0
        %v1142 = vadd.f32 %v621, %v1141
        %v1143 = vpop.f32.mrf.mxu0
        %v1144 = vadd.f32 %v621, %v1143
        %1145 = vmatmul.bf16.gmra.mxu0 %v755
        %v1146 = vpop.f32.mrf.mxu0
        %v1147 = vadd.f32 %v621, %v1146
        %v1148 = vpop.f32.mrf.mxu0
        %v1149 = vadd.f32 %v621, %v1148
        %1150 = vdwg.mxu0
        %1151 = vmatpush.bf16.msra.mxu0 0
        %1152 = vmatpush.bf16.msra.mxu0 0
        %1153 = vmatpush.bf16.msra.mxu0 0
        %1154 = vmatpush.bf16.msra.mxu0 0
        %1155 = vmatpush.bf16.msra.mxu0 %v961
        %1156 = vmatpush.bf16.msra.mxu0 %v957
        %1157 = vmatpush.bf16.msra.mxu0 %v953
        %1158 = vmatpush.bf16.msra.mxu0 %v949
        %1159 = vmatmul.bf16.gmra.mxu0 %v1015
        %v1160 = vpop.f32.mrf.mxu0
        %v1161 = vadd.f32 %v1072, %v1160
        %v1162 = vpop.f32.mrf.mxu0
        %v1163 = vadd.f32 %v1074, %v1162
        %1164 = vmatmul.bf16.gmra.mxu0 %v1018
        %v1165 = vpop.f32.mrf.mxu0
        %v1166 = vadd.f32 %v1077, %v1165
        %v1167 = vpop.f32.mrf.mxu0
        %v1168 = vadd.f32 %v1079, %v1167
        %1169 = vmatmul.bf16.gmra.mxu0 %v1021
        %v1170 = vpop.f32.mrf.mxu0
        %v1171 = vadd.f32 %v1082, %v1170
        %v1172 = vpop.f32.mrf.mxu0
        %v1173 = vadd.f32 %v1084, %v1172
        %1174 = vmatmul.bf16.gmra.mxu0 %v1024
        %v1175 = vpop.f32.mrf.mxu0
        %v1176 = vadd.f32 %v1087, %v1175
        %v1177 = vpop.f32.mrf.mxu0
        %v1178 = vadd.f32 %v1089, %v1177
        %1179 = vmatmul.bf16.gmra.mxu0 %v1027
        %v1180 = vpop.f32.mrf.mxu0
        %v1181 = vadd.f32 %v1092, %v1180
        %v1182 = vpop.f32.mrf.mxu0
        %v1183 = vadd.f32 %v1094, %v1182
        %1184 = vmatmul.bf16.gmra.mxu0 %v1030
        %v1185 = vpop.f32.mrf.mxu0
        %v1186 = vadd.f32 %v1097, %v1185
        %v1187 = vpop.f32.mrf.mxu0
        %v1188 = vadd.f32 %v1099, %v1187
        %1189 = vmatmul.bf16.gmra.mxu0 %v1033
        %v1190 = vpop.f32.mrf.mxu0
        %v1191 = vadd.f32 %v1102, %v1190
        %v1192 = vpop.f32.mrf.mxu0
        %v1193 = vadd.f32 %v1104, %v1192
        %1194 = vmatmul.bf16.gmra.mxu0 %v1036
        %v1195 = vpop.f32.mrf.mxu0
        %v1196 = vadd.f32 %v1107, %v1195
        %v1197 = vpop.f32.mrf.mxu0
        %v1198 = vadd.f32 %v1109, %v1197
        %1199 = vmatmul.bf16.gmra.mxu0 %v1039
        %v1200 = vpop.f32.mrf.mxu0
        %v1201 = vadd.f32 %v1112, %v1200
        %v1202 = vpop.f32.mrf.mxu0
        %v1203 = vadd.f32 %v1114, %v1202
        %1204 = vmatmul.bf16.gmra.mxu0 %v1042
        %v1205 = vpop.f32.mrf.mxu0
        %v1206 = vadd.f32 %v1117, %v1205
        %v1207 = vpop.f32.mrf.mxu0
        %v1208 = vadd.f32 %v1119, %v1207
        %1209 = vmatmul.bf16.gmra.mxu0 %v1045
        %v1210 = vpop.f32.mrf.mxu0
        %v1211 = vadd.f32 %v1122, %v1210
        %v1212 = vpop.f32.mrf.mxu0
        %v1213 = vadd.f32 %v1124, %v1212
        %1214 = vmatmul.bf16.gmra.mxu0 %v1048
        %v1215 = vpop.f32.mrf.mxu0
        %v1216 = vadd.f32 %v1127, %v1215
        %v1217 = vpop.f32.mrf.mxu0
        %v1218 = vadd.f32 %v1129, %v1217
        %1219 = vmatmul.bf16.gmra.mxu0 %v1051
        %v1220 = vpop.f32.mrf.mxu0
        %v1221 = vadd.f32 %v1132, %v1220
        %v1222 = vpop.f32.mrf.mxu0
        %v1223 = vadd.f32 %v1134, %v1222
        %1224 = vmatmul.bf16.gmra.mxu0 %v1054
        %v1225 = vpop.f32.mrf.mxu0
        %v1226 = vadd.f32 %v1137, %v1225
        %v1227 = vpop.f32.mrf.mxu0
        %v1228 = vadd.f32 %v1139, %v1227
        %1229 = vmatmul.bf16.gmra.mxu0 %v1057
        %v1230 = vpop.f32.mrf.mxu0
        %v1231 = vadd.f32 %v1142, %v1230
        %v1232 = vpop.f32.mrf.mxu0
        %v1233 = vadd.f32 %v1144, %v1232
        %1234 = vmatmul.bf16.gmra.mxu0 %v1060
        %v1235 = vpop.f32.mrf.mxu0
        %v1236 = vadd.f32 %v1147, %v1235
        %v1237 = vpop.f32.mrf.mxu0
        %v1238 = vadd.f32 %v1149, %v1237
        %1239 = vdwg.mxu0
        %1240 = vmatpush.bf16.msra.mxu0 %v946
        %1241 = vmatpush.bf16.msra.mxu0 %v942
        %1242 = vmatpush.bf16.msra.mxu0 %v938
        %1243 = vmatpush.bf16.msra.mxu0 %v934
        %1244 = vmatpush.bf16.msra.mxu0 %v930
        %1245 = vmatpush.bf16.msra.mxu0 %v926
        %1246 = vmatpush.bf16.msra.mxu0 %v922
        %1247 = vmatpush.bf16.msra.mxu0 %v918
        %1248 = vmatmul.bf16.gmra.mxu0 %v725
        %v1249 = vpop.f32.mrf.mxu0
        %v1250 = vadd.f32 %v622, %v1249
        %v1251 = vpop.f32.mrf.mxu0
        %v1252 = vadd.f32 %v622, %v1251
        %1253 = vmatmul.bf16.gmra.mxu0 %v727
        %v1254 = vpop.f32.mrf.mxu0
        %v1255 = vadd.f32 %v622, %v1254
        %v1256 = vpop.f32.mrf.mxu0
        %v1257 = vadd.f32 %v622, %v1256
        %1258 = vmatmul.bf16.gmra.mxu0 %v729
        %v1259 = vpop.f32.mrf.mxu0
        %v1260 = vadd.f32 %v622, %v1259
        %v1261 = vpop.f32.mrf.mxu0
        %v1262 = vadd.f32 %v622, %v1261
        %1263 = vmatmul.bf16.gmra.mxu0 %v731
        %v1264 = vpop.f32.mrf.mxu0
        %v1265 = vadd.f32 %v622, %v1264
        %v1266 = vpop.f32.mrf.mxu0
        %v1267 = vadd.f32 %v622, %v1266
        %1268 = vmatmul.bf16.gmra.mxu0 %v733
        %v1269 = vpop.f32.mrf.mxu0
        %v1270 = vadd.f32 %v622, %v1269
        %v1271 = vpop.f32.mrf.mxu0
        %v1272 = vadd.f32 %v622, %v1271
        %1273 = vmatmul.bf16.gmra.mxu0 %v735
        %v1274 = vpop.f32.mrf.mxu0
        %v1275 = vadd.f32 %v622, %v1274
        %v1276 = vpop.f32.mrf.mxu0
        %v1277 = vadd.f32 %v622, %v1276
        %1278 = vmatmul.bf16.gmra.mxu0 %v737
        %v1279 = vpop.f32.mrf.mxu0
        %v1280 = vadd.f32 %v622, %v1279
        %v1281 = vpop.f32.mrf.mxu0
        %v1282 = vadd.f32 %v622, %v1281
        %1283 = vmatmul.bf16.gmra.mxu0 %v739
        %v1284 = vpop.f32.mrf.mxu0
        %v1285 = vadd.f32 %v622, %v1284
        %v1286 = vpop.f32.mrf.mxu0
        %v1287 = vadd.f32 %v622, %v1286
        %1288 = vmatmul.bf16.gmra.mxu0 %v741
        %v1289 = vpop.f32.mrf.mxu0
        %v1290 = vadd.f32 %v622, %v1289
        %v1291 = vpop.f32.mrf.mxu0
        %v1292 = vadd.f32 %v622, %v1291
        %1293 = vmatmul.bf16.gmra.mxu0 %v743
        %v1294 = vpop.f32.mrf.mxu0
        %v1295 = vadd.f32 %v622, %v1294
        %v1296 = vpop.f32.mrf.mxu0
        %v1297 = vadd.f32 %v622, %v1296
        %1298 = vmatmul.bf16.gmra.mxu0 %v745
        %v1299 = vpop.f32.mrf.mxu0
        %v1300 = vadd.f32 %v622, %v1299
        %v1301 = vpop.f32.mrf.mxu0
        %v1302 = vadd.f32 %v622, %v1301
        %1303 = vmatmul.bf16.gmra.mxu0 %v747
        %v1304 = vpop.f32.mrf.mxu0
        %v1305 = vadd.f32 %v622, %v1304
        %v1306 = vpop.f32.mrf.mxu0
        %v1307 = vadd.f32 %v622, %v1306
        %1308 = vmatmul.bf16.gmra.mxu0 %v749
        %v1309 = vpop.f32.mrf.mxu0
        %v1310 = vadd.f32 %v622, %v1309
        %v1311 = vpop.f32.mrf.mxu0
        %v1312 = vadd.f32 %v622, %v1311
        %1313 = vmatmul.bf16.gmra.mxu0 %v751
        %v1314 = vpop.f32.mrf.mxu0
        %v1315 = vadd.f32 %v622, %v1314
        %v1316 = vpop.f32.mrf.mxu0
        %v1317 = vadd.f32 %v622, %v1316
        %1318 = vmatmul.bf16.gmra.mxu0 %v753
        %v1319 = vpop.f32.mrf.mxu0
        %v1320 = vadd.f32 %v622, %v1319
        %v1321 = vpop.f32.mrf.mxu0
        %v1322 = vadd.f32 %v622, %v1321
        %1323 = vmatmul.bf16.gmra.mxu0 %v755
        %v1324 = vpop.f32.mrf.mxu0
        %v1325 = vadd.f32 %v622, %v1324
        %v1326 = vpop.f32.mrf.mxu0
        %v1327 = vadd.f32 %v622, %v1326
        %1328 = vdwg.mxu0
        %1329 = vmatpush.bf16.msra.mxu0 0
        %1330 = vmatpush.bf16.msra.mxu0 0
        %1331 = vmatpush.bf16.msra.mxu0 0
        %1332 = vmatpush.bf16.msra.mxu0 0
        %1333 = vmatpush.bf16.msra.mxu0 %v962
        %1334 = vmatpush.bf16.msra.mxu0 %v958
        %1335 = vmatpush.bf16.msra.mxu0 %v954
        %1336 = vmatpush.bf16.msra.mxu0 %v950
        %1337 = vmatmul.bf16.gmra.mxu0 %v1015
        %v1338 = vpop.f32.mrf.mxu0
        %v1339 = vadd.f32 %v1250, %v1338
        %v1340 = vpop.f32.mrf.mxu0
        %v1341 = vadd.f32 %v1252, %v1340
        %1342 = vmatmul.bf16.gmra.mxu0 %v1018
        %v1343 = vpop.f32.mrf.mxu0
        %v1344 = vadd.f32 %v1255, %v1343
        %v1345 = vpop.f32.mrf.mxu0
        %v1346 = vadd.f32 %v1257, %v1345
        %1347 = vmatmul.bf16.gmra.mxu0 %v1021
        %v1348 = vpop.f32.mrf.mxu0
        %v1349 = vadd.f32 %v1260, %v1348
        %v1350 = vpop.f32.mrf.mxu0
        %v1351 = vadd.f32 %v1262, %v1350
        %1352 = vmatmul.bf16.gmra.mxu0 %v1024
        %v1353 = vpop.f32.mrf.mxu0
        %v1354 = vadd.f32 %v1265, %v1353
        %v1355 = vpop.f32.mrf.mxu0
        %v1356 = vadd.f32 %v1267, %v1355
        %1357 = vmatmul.bf16.gmra.mxu0 %v1027
        %v1358 = vpop.f32.mrf.mxu0
        %v1359 = vadd.f32 %v1270, %v1358
        %v1360 = vpop.f32.mrf.mxu0
        %v1361 = vadd.f32 %v1272, %v1360
        %1362 = vmatmul.bf16.gmra.mxu0 %v1030
        %v1363 = vpop.f32.mrf.mxu0
        %v1364 = vadd.f32 %v1275, %v1363
        %v1365 = vpop.f32.mrf.mxu0
        %v1366 = vadd.f32 %v1277, %v1365
        %1367 = vmatmul.bf16.gmra.mxu0 %v1033
        %v1368 = vpop.f32.mrf.mxu0
        %v1369 = vadd.f32 %v1280, %v1368
        %v1370 = vpop.f32.mrf.mxu0
        %v1371 = vadd.f32 %v1282, %v1370
        %1372 = vmatmul.bf16.gmra.mxu0 %v1036
        %v1373 = vpop.f32.mrf.mxu0
        %v1374 = vadd.f32 %v1285, %v1373
        %v1375 = vpop.f32.mrf.mxu0
        %v1376 = vadd.f32 %v1287, %v1375
        %1377 = vmatmul.bf16.gmra.mxu0 %v1039
        %v1378 = vpop.f32.mrf.mxu0
        %v1379 = vadd.f32 %v1290, %v1378
        %v1380 = vpop.f32.mrf.mxu0
        %v1381 = vadd.f32 %v1292, %v1380
        %1382 = vmatmul.bf16.gmra.mxu0 %v1042
        %v1383 = vpop.f32.mrf.mxu0
        %v1384 = vadd.f32 %v1295, %v1383
        %v1385 = vpop.f32.mrf.mxu0
        %v1386 = vadd.f32 %v1297, %v1385
        %1387 = vmatmul.bf16.gmra.mxu0 %v1045
        %v1388 = vpop.f32.mrf.mxu0
        %v1389 = vadd.f32 %v1300, %v1388
        %v1390 = vpop.f32.mrf.mxu0
        %v1391 = vadd.f32 %v1302, %v1390
        %1392 = vmatmul.bf16.gmra.mxu0 %v1048
        %v1393 = vpop.f32.mrf.mxu0
        %v1394 = vadd.f32 %v1305, %v1393
        %v1395 = vpop.f32.mrf.mxu0
        %v1396 = vadd.f32 %v1307, %v1395
        %1397 = vmatmul.bf16.gmra.mxu0 %v1051
        %v1398 = vpop.f32.mrf.mxu0
        %v1399 = vadd.f32 %v1310, %v1398
        %v1400 = vpop.f32.mrf.mxu0
        %v1401 = vadd.f32 %v1312, %v1400
        %1402 = vmatmul.bf16.gmra.mxu0 %v1054
        %v1403 = vpop.f32.mrf.mxu0
        %v1404 = vadd.f32 %v1315, %v1403
        %v1405 = vpop.f32.mrf.mxu0
        %v1406 = vadd.f32 %v1317, %v1405
        %1407 = vmatmul.bf16.gmra.mxu0 %v1057
        %v1408 = vpop.f32.mrf.mxu0
        %v1409 = vadd.f32 %v1320, %v1408
        %v1410 = vpop.f32.mrf.mxu0
        %v1411 = vadd.f32 %v1322, %v1410
        %1412 = vmatmul.bf16.gmra.mxu0 %v1060
        %v1413 = vpop.f32.mrf.mxu0
        %v1414 = vadd.f32 %v1325, %v1413
        %v1415 = vpop.f32.mrf.mxu0
        %v1416 = vadd.f32 %v1327, %v1415
        %1417 = vdwg.mxu0
        %1418 = vmatpush.bf16.msra.mxu0 %v947
        %1419 = vmatpush.bf16.msra.mxu0 %v943
        %1420 = vmatpush.bf16.msra.mxu0 %v939
        %1421 = vmatpush.bf16.msra.mxu0 %v935
        %1422 = vmatpush.bf16.msra.mxu0 %v931
        %1423 = vmatpush.bf16.msra.mxu0 %v927
        %1424 = vmatpush.bf16.msra.mxu0 %v923
        %1425 = vmatpush.bf16.msra.mxu0 %v919
        %1426 = vmatmul.bf16.gmra.mxu0 %v725
        %v1427 = vpop.f32.mrf.mxu0
        %v1428 = vadd.f32 %v623, %v1427
        %v1429 = vpop.f32.mrf.mxu0
        %v1430 = vadd.f32 %v623, %v1429
        %1431 = vmatmul.bf16.gmra.mxu0 %v727
        %v1432 = vpop.f32.mrf.mxu0
        %v1433 = vadd.f32 %v623, %v1432
        %v1434 = vpop.f32.mrf.mxu0
        %v1435 = vadd.f32 %v623, %v1434
        %1436 = vmatmul.bf16.gmra.mxu0 %v729
        %v1437 = vpop.f32.mrf.mxu0
        %v1438 = vadd.f32 %v623, %v1437
        %v1439 = vpop.f32.mrf.mxu0
        %v1440 = vadd.f32 %v623, %v1439
        %1441 = vmatmul.bf16.gmra.mxu0 %v731
        %v1442 = vpop.f32.mrf.mxu0
        %v1443 = vadd.f32 %v623, %v1442
        %v1444 = vpop.f32.mrf.mxu0
        %v1445 = vadd.f32 %v623, %v1444
        %1446 = vmatmul.bf16.gmra.mxu0 %v733
        %v1447 = vpop.f32.mrf.mxu0
        %v1448 = vadd.f32 %v623, %v1447
        %v1449 = vpop.f32.mrf.mxu0
        %v1450 = vadd.f32 %v623, %v1449
        %1451 = vmatmul.bf16.gmra.mxu0 %v735
        %v1452 = vpop.f32.mrf.mxu0
        %v1453 = vadd.f32 %v623, %v1452
        %v1454 = vpop.f32.mrf.mxu0
        %v1455 = vadd.f32 %v623, %v1454
        %1456 = vmatmul.bf16.gmra.mxu0 %v737
        %v1457 = vpop.f32.mrf.mxu0
        %v1458 = vadd.f32 %v623, %v1457
        %v1459 = vpop.f32.mrf.mxu0
        %v1460 = vadd.f32 %v623, %v1459
        %1461 = vmatmul.bf16.gmra.mxu0 %v739
        %v1462 = vpop.f32.mrf.mxu0
        %v1463 = vadd.f32 %v623, %v1462
        %v1464 = vpop.f32.mrf.mxu0
        %v1465 = vadd.f32 %v623, %v1464
        %1466 = vmatmul.bf16.gmra.mxu0 %v741
        %v1467 = vpop.f32.mrf.mxu0
        %v1468 = vadd.f32 %v623, %v1467
        %v1469 = vpop.f32.mrf.mxu0
        %v1470 = vadd.f32 %v623, %v1469
        %1471 = vmatmul.bf16.gmra.mxu0 %v743
        %v1472 = vpop.f32.mrf.mxu0
        %v1473 = vadd.f32 %v623, %v1472
        %v1474 = vpop.f32.mrf.mxu0
        %v1475 = vadd.f32 %v623, %v1474
        %1476 = vmatmul.bf16.gmra.mxu0 %v745
        %v1477 = vpop.f32.mrf.mxu0
        %v1478 = vadd.f32 %v623, %v1477
        %v1479 = vpop.f32.mrf.mxu0
        %v1480 = vadd.f32 %v623, %v1479
        %1481 = vmatmul.bf16.gmra.mxu0 %v747
        %v1482 = vpop.f32.mrf.mxu0
        %v1483 = vadd.f32 %v623, %v1482
        %v1484 = vpop.f32.mrf.mxu0
        %v1485 = vadd.f32 %v623, %v1484
        %1486 = vmatmul.bf16.gmra.mxu0 %v749
        %v1487 = vpop.f32.mrf.mxu0
        %v1488 = vadd.f32 %v623, %v1487
        %v1489 = vpop.f32.mrf.mxu0
        %v1490 = vadd.f32 %v623, %v1489
        %1491 = vmatmul.bf16.gmra.mxu0 %v751
        %v1492 = vpop.f32.mrf.mxu0
        %v1493 = vadd.f32 %v623, %v1492
        %v1494 = vpop.f32.mrf.mxu0
        %v1495 = vadd.f32 %v623, %v1494
        %1496 = vmatmul.bf16.gmra.mxu0 %v753
        %v1497 = vpop.f32.mrf.mxu0
        %v1498 = vadd.f32 %v623, %v1497
        %v1499 = vpop.f32.mrf.mxu0
        %v1500 = vadd.f32 %v623, %v1499
        %1501 = vmatmul.bf16.gmra.mxu0 %v755
        %v1502 = vpop.f32.mrf.mxu0
        %v1503 = vadd.f32 %v623, %v1502
        %v1504 = vpop.f32.mrf.mxu0
        %v1505 = vadd.f32 %v623, %v1504
        %1506 = vdwg.mxu0
        %1507 = vmatpush.bf16.msra.mxu0 0
        %1508 = vmatpush.bf16.msra.mxu0 0
        %1509 = vmatpush.bf16.msra.mxu0 0
        %1510 = vmatpush.bf16.msra.mxu0 0
        %1511 = vmatpush.bf16.msra.mxu0 %v963
        %1512 = vmatpush.bf16.msra.mxu0 %v959
        %1513 = vmatpush.bf16.msra.mxu0 %v955
        %1514 = vmatpush.bf16.msra.mxu0 %v951
        %1515 = vmatmul.bf16.gmra.mxu0 %v1015
        %v1516 = vpop.f32.mrf.mxu0
        %v1517 = vadd.f32 %v1428, %v1516
        %v1518 = vpop.f32.mrf.mxu0
        %v1519 = vadd.f32 %v1430, %v1518
        %1520 = vmatmul.bf16.gmra.mxu0 %v1018
        %v1521 = vpop.f32.mrf.mxu0
        %v1522 = vadd.f32 %v1433, %v1521
        %v1523 = vpop.f32.mrf.mxu0
        %v1524 = vadd.f32 %v1435, %v1523
        %1525 = vmatmul.bf16.gmra.mxu0 %v1021
        %v1526 = vpop.f32.mrf.mxu0
        %v1527 = vadd.f32 %v1438, %v1526
        %v1528 = vpop.f32.mrf.mxu0
        %v1529 = vadd.f32 %v1440, %v1528
        %1530 = vmatmul.bf16.gmra.mxu0 %v1024
        %v1531 = vpop.f32.mrf.mxu0
        %v1532 = vadd.f32 %v1443, %v1531
        %v1533 = vpop.f32.mrf.mxu0
        %v1534 = vadd.f32 %v1445, %v1533
        %1535 = vmatmul.bf16.gmra.mxu0 %v1027
        %v1536 = vpop.f32.mrf.mxu0
        %v1537 = vadd.f32 %v1448, %v1536
        %v1538 = vpop.f32.mrf.mxu0
        %v1539 = vadd.f32 %v1450, %v1538
        %1540 = vmatmul.bf16.gmra.mxu0 %v1030
        %v1541 = vpop.f32.mrf.mxu0
        %v1542 = vadd.f32 %v1453, %v1541
        %v1543 = vpop.f32.mrf.mxu0
        %v1544 = vadd.f32 %v1455, %v1543
        %1545 = vmatmul.bf16.gmra.mxu0 %v1033
        %v1546 = vpop.f32.mrf.mxu0
        %v1547 = vadd.f32 %v1458, %v1546
        %v1548 = vpop.f32.mrf.mxu0
        %v1549 = vadd.f32 %v1460, %v1548
        %1550 = vmatmul.bf16.gmra.mxu0 %v1036
        %v1551 = vpop.f32.mrf.mxu0
        %v1552 = vadd.f32 %v1463, %v1551
        %v1553 = vpop.f32.mrf.mxu0
        %v1554 = vadd.f32 %v1465, %v1553
        %1555 = vmatmul.bf16.gmra.mxu0 %v1039
        %v1556 = vpop.f32.mrf.mxu0
        %v1557 = vadd.f32 %v1468, %v1556
        %v1558 = vpop.f32.mrf.mxu0
        %v1559 = vadd.f32 %v1470, %v1558
        %1560 = vmatmul.bf16.gmra.mxu0 %v1042
        %v1561 = vpop.f32.mrf.mxu0
        %v1562 = vadd.f32 %v1473, %v1561
        %v1563 = vpop.f32.mrf.mxu0
        %v1564 = vadd.f32 %v1475, %v1563
        %1565 = vmatmul.bf16.gmra.mxu0 %v1045
        %v1566 = vpop.f32.mrf.mxu0
        %v1567 = vadd.f32 %v1478, %v1566
        %v1568 = vpop.f32.mrf.mxu0
        %v1569 = vadd.f32 %v1480, %v1568
        %1570 = vmatmul.bf16.gmra.mxu0 %v1048
        %v1571 = vpop.f32.mrf.mxu0
        %v1572 = vadd.f32 %v1483, %v1571
        %v1573 = vpop.f32.mrf.mxu0
        %v1574 = vadd.f32 %v1485, %v1573
        %1575 = vmatmul.bf16.gmra.mxu0 %v1051
        %v1576 = vpop.f32.mrf.mxu0
        %v1577 = vadd.f32 %v1488, %v1576
        %v1578 = vpop.f32.mrf.mxu0
        %v1579 = vadd.f32 %v1490, %v1578
        %1580 = vmatmul.bf16.gmra.mxu0 %v1054
        %v1581 = vpop.f32.mrf.mxu0
        %v1582 = vadd.f32 %v1493, %v1581
        %v1583 = vpop.f32.mrf.mxu0
        %v1584 = vadd.f32 %v1495, %v1583
        %1585 = vmatmul.bf16.gmra.mxu0 %v1057
        %v1586 = vpop.f32.mrf.mxu0
        %v1587 = vadd.f32 %v1498, %v1586
        %v1588 = vpop.f32.mrf.mxu0
        %v1589 = vadd.f32 %v1500, %v1588
        %1590 = vmatmul.bf16.gmra.mxu0 %v1060
        %v1591 = vpop.f32.mrf.mxu0
        %v1592 = vadd.f32 %v1503, %v1591
        %v1593 = vpop.f32.mrf.mxu0
        %v1594 = vadd.f32 %v1505, %v1593
        %1595 = vdwg.mxu0
        %1596 = vmatpush.bf16.msra.mxu0 %v948
        %1597 = vmatpush.bf16.msra.mxu0 %v944
        %1598 = vmatpush.bf16.msra.mxu0 %v940
        %1599 = vmatpush.bf16.msra.mxu0 %v936
        %1600 = vmatpush.bf16.msra.mxu0 %v932
        %1601 = vmatpush.bf16.msra.mxu0 %v928
        %1602 = vmatpush.bf16.msra.mxu0 %v924
        %1603 = vmatpush.bf16.msra.mxu0 %v920
        %1604 = vmatmul.bf16.gmra.mxu0 %v725
        %v1605 = vpop.f32.mrf.mxu0
        %v1606 = vadd.f32 %v624, %v1605
        %v1607 = vpop.f32.mrf.mxu0
        %v1608 = vadd.f32 %v624, %v1607
        %1609 = vmatmul.bf16.gmra.mxu0 %v727
        %v1610 = vpop.f32.mrf.mxu0
        %v1611 = vadd.f32 %v624, %v1610
        %v1612 = vpop.f32.mrf.mxu0
        %v1613 = vadd.f32 %v624, %v1612
        %1614 = vmatmul.bf16.gmra.mxu0 %v729
        %v1615 = vpop.f32.mrf.mxu0
        %v1616 = vadd.f32 %v624, %v1615
        %v1617 = vpop.f32.mrf.mxu0
        %v1618 = vadd.f32 %v624, %v1617
        %1619 = vmatmul.bf16.gmra.mxu0 %v731
        %v1620 = vpop.f32.mrf.mxu0
        %v1621 = vadd.f32 %v624, %v1620
        %v1622 = vpop.f32.mrf.mxu0
        %v1623 = vadd.f32 %v624, %v1622
        %1624 = vmatmul.bf16.gmra.mxu0 %v733
        %v1625 = vpop.f32.mrf.mxu0
        %v1626 = vadd.f32 %v624, %v1625
        %v1627 = vpop.f32.mrf.mxu0
        %v1628 = vadd.f32 %v624, %v1627
        %1629 = vmatmul.bf16.gmra.mxu0 %v735
        %v1630 = vpop.f32.mrf.mxu0
        %v1631 = vadd.f32 %v624, %v1630
        %v1632 = vpop.f32.mrf.mxu0
        %v1633 = vadd.f32 %v624, %v1632
        %1634 = vmatmul.bf16.gmra.mxu0 %v737
        %v1635 = vpop.f32.mrf.mxu0
        %v1636 = vadd.f32 %v624, %v1635
        %v1637 = vpop.f32.mrf.mxu0
        %v1638 = vadd.f32 %v624, %v1637
        %1639 = vmatmul.bf16.gmra.mxu0 %v739
        %v1640 = vpop.f32.mrf.mxu0
        %v1641 = vadd.f32 %v624, %v1640
        %v1642 = vpop.f32.mrf.mxu0
        %v1643 = vadd.f32 %v624, %v1642
        %1644 = vmatmul.bf16.gmra.mxu0 %v741
        %v1645 = vpop.f32.mrf.mxu0
        %v1646 = vadd.f32 %v624, %v1645
        %v1647 = vpop.f32.mrf.mxu0
        %v1648 = vadd.f32 %v624, %v1647
        %1649 = vmatmul.bf16.gmra.mxu0 %v743
        %v1650 = vpop.f32.mrf.mxu0
        %v1651 = vadd.f32 %v624, %v1650
        %v1652 = vpop.f32.mrf.mxu0
        %v1653 = vadd.f32 %v624, %v1652
        %1654 = vmatmul.bf16.gmra.mxu0 %v745
        %v1655 = vpop.f32.mrf.mxu0
        %v1656 = vadd.f32 %v624, %v1655
        %v1657 = vpop.f32.mrf.mxu0
        %v1658 = vadd.f32 %v624, %v1657
        %1659 = vmatmul.bf16.gmra.mxu0 %v747
        %v1660 = vpop.f32.mrf.mxu0
        %v1661 = vadd.f32 %v624, %v1660
        %v1662 = vpop.f32.mrf.mxu0
        %v1663 = vadd.f32 %v624, %v1662
        %1664 = vmatmul.bf16.gmra.mxu0 %v749
        %v1665 = vpop.f32.mrf.mxu0
        %v1666 = vadd.f32 %v624, %v1665
        %v1667 = vpop.f32.mrf.mxu0
        %v1668 = vadd.f32 %v624, %v1667
        %1669 = vmatmul.bf16.gmra.mxu0 %v751
        %v1670 = vpop.f32.mrf.mxu0
        %v1671 = vadd.f32 %v624, %v1670
        %v1672 = vpop.f32.mrf.mxu0
        %v1673 = vadd.f32 %v624, %v1672
        %1674 = vmatmul.bf16.gmra.mxu0 %v753
        %v1675 = vpop.f32.mrf.mxu0
        %v1676 = vadd.f32 %v624, %v1675
        %v1677 = vpop.f32.mrf.mxu0
        %v1678 = vadd.f32 %v624, %v1677
        %1679 = vmatmul.bf16.gmra.mxu0 %v755
        %v1680 = vpop.f32.mrf.mxu0
        %v1681 = vadd.f32 %v624, %v1680
        %v1682 = vpop.f32.mrf.mxu0
        %v1683 = vadd.f32 %v624, %v1682
        %1684 = vdwg.mxu0
        %1685 = vmatpush.bf16.msra.mxu0 0
        %1686 = vmatpush.bf16.msra.mxu0 0
        %1687 = vmatpush.bf16.msra.mxu0 0
        %1688 = vmatpush.bf16.msra.mxu0 0
        %1689 = vmatpush.bf16.msra.mxu0 %v964
        %1690 = vmatpush.bf16.msra.mxu0 %v960
        %1691 = vmatpush.bf16.msra.mxu0 %v956
        %1692 = vmatpush.bf16.msra.mxu0 %v952
        %1693 = vmatmul.bf16.gmra.mxu0 %v1015
        %v1694 = vpop.f32.mrf.mxu0
        %v1695 = vadd.f32 %v1606, %v1694
        %v1696 = vpop.f32.mrf.mxu0
        %v1697 = vadd.f32 %v1608, %v1696
        %1698 = vmatmul.bf16.gmra.mxu0 %v1018
        %v1699 = vpop.f32.mrf.mxu0
        %v1700 = vadd.f32 %v1611, %v1699
        %v1701 = vpop.f32.mrf.mxu0
        %v1702 = vadd.f32 %v1613, %v1701
        %1703 = vmatmul.bf16.gmra.mxu0 %v1021
        %v1704 = vpop.f32.mrf.mxu0
        %v1705 = vadd.f32 %v1616, %v1704
        %v1706 = vpop.f32.mrf.mxu0
        %v1707 = vadd.f32 %v1618, %v1706
        %1708 = vmatmul.bf16.gmra.mxu0 %v1024
        %v1709 = vpop.f32.mrf.mxu0
        %v1710 = vadd.f32 %v1621, %v1709
        %v1711 = vpop.f32.mrf.mxu0
        %v1712 = vadd.f32 %v1623, %v1711
        %1713 = vmatmul.bf16.gmra.mxu0 %v1027
        %v1714 = vpop.f32.mrf.mxu0
        %v1715 = vadd.f32 %v1626, %v1714
        %v1716 = vpop.f32.mrf.mxu0
        %v1717 = vadd.f32 %v1628, %v1716
        %1718 = vmatmul.bf16.gmra.mxu0 %v1030
        %v1719 = vpop.f32.mrf.mxu0
        %v1720 = vadd.f32 %v1631, %v1719
        %v1721 = vpop.f32.mrf.mxu0
        %v1722 = vadd.f32 %v1633, %v1721
        %1723 = vmatmul.bf16.gmra.mxu0 %v1033
        %v1724 = vpop.f32.mrf.mxu0
        %v1725 = vadd.f32 %v1636, %v1724
        %v1726 = vpop.f32.mrf.mxu0
        %v1727 = vadd.f32 %v1638, %v1726
        %1728 = vmatmul.bf16.gmra.mxu0 %v1036
        %v1729 = vpop.f32.mrf.mxu0
        %v1730 = vadd.f32 %v1641, %v1729
        %v1731 = vpop.f32.mrf.mxu0
        %v1732 = vadd.f32 %v1643, %v1731
        %1733 = vmatmul.bf16.gmra.mxu0 %v1039
        %v1734 = vpop.f32.mrf.mxu0
        %v1735 = vadd.f32 %v1646, %v1734
        %v1736 = vpop.f32.mrf.mxu0
        %v1737 = vadd.f32 %v1648, %v1736
        %1738 = vmatmul.bf16.gmra.mxu0 %v1042
        %v1739 = vpop.f32.mrf.mxu0
        %v1740 = vadd.f32 %v1651, %v1739
        %v1741 = vpop.f32.mrf.mxu0
        %v1742 = vadd.f32 %v1653, %v1741
        %1743 = vmatmul.bf16.gmra.mxu0 %v1045
        %v1744 = vpop.f32.mrf.mxu0
        %v1745 = vadd.f32 %v1656, %v1744
        %v1746 = vpop.f32.mrf.mxu0
        %v1747 = vadd.f32 %v1658, %v1746
        %1748 = vmatmul.bf16.gmra.mxu0 %v1048
        %v1749 = vpop.f32.mrf.mxu0
        %v1750 = vadd.f32 %v1661, %v1749
        %v1751 = vpop.f32.mrf.mxu0
        %v1752 = vadd.f32 %v1663, %v1751
        %1753 = vmatmul.bf16.gmra.mxu0 %v1051
        %v1754 = vpop.f32.mrf.mxu0
        %v1755 = vadd.f32 %v1666, %v1754
        %v1756 = vpop.f32.mrf.mxu0
        %v1757 = vadd.f32 %v1668, %v1756
        %1758 = vmatmul.bf16.gmra.mxu0 %v1054
        %v1759 = vpop.f32.mrf.mxu0
        %v1760 = vadd.f32 %v1671, %v1759
        %v1761 = vpop.f32.mrf.mxu0
        %v1762 = vadd.f32 %v1673, %v1761
        %1763 = vmatmul.bf16.gmra.mxu0 %v1057
        %v1764 = vpop.f32.mrf.mxu0
        %v1765 = vadd.f32 %v1676, %v1764
        %v1766 = vpop.f32.mrf.mxu0
        %v1767 = vadd.f32 %v1678, %v1766
        %1768 = vmatmul.bf16.gmra.mxu0 %v1060
        %v1769 = vpop.f32.mrf.mxu0
        %v1770 = vadd.f32 %v1681, %v1769
        %v1771 = vpop.f32.mrf.mxu0
        %v1772 = vadd.f32 %v1683, %v1771
        %1773 = vdwg.mxu0
        %v1774 = vld [vmem:[%s2] sm:$0xff]
        %v1775 = vld [vmem:[%s2 + $0x8] sm:$0xff]
        %v1776 = vld [vmem:[%s2 + $0x10] sm:$0xff]
        %v1777 = vld [vmem:[%s2 + $0x18] sm:$0xff]
        %v1778 = vld [vmem:[%s2 + $0x20] sm:$0xff]
        %v1779 = vld [vmem:[%s2 + $0x28] sm:$0xff]
        %v1780 = vld [vmem:[%s2 + $0x30] sm:$0xff]
        %v1781 = vld [vmem:[%s2 + $0x38] sm:$0xff]
        %v1782 = vld [vmem:[%s2 + $0x40] sm:$0xff]
        %v1783 = vld [vmem:[%s2 + $0x48] sm:$0xff]
        %v1784 = vld [vmem:[%s2 + $0x50] sm:$0xff]
        %v1785 = vld [vmem:[%s2 + $0x58] sm:$0xff]
        %v1786 = vld [vmem:[%s2 + $0x60] sm:$0xff]
        %v1787 = vld [vmem:[%s2 + $0x68] sm:$0xff]
        %v1788 = vld [vmem:[%s2 + $0x70] sm:$0xff]
        %v1789 = vld [vmem:[%s2 + $0x78] sm:$0xff]
        %v1790 = vld [vmem:[%s2 + $0x80] sm:$0xff]
        %v1791 = vld [vmem:[%s2 + $0x88] sm:$0xff]
        %v1792 = vld [vmem:[%s2 + $0x90] sm:$0xff]
        %v1793 = vld [vmem:[%s2 + $0x98] sm:$0xff]
        %v1794 = vld [vmem:[%s2 + $0xa0] sm:$0xff]
        %v1795 = vld [vmem:[%s2 + $0xa8] sm:$0xff]
        %v1796 = vld [vmem:[%s2 + $0xb0] sm:$0xff]
        %v1797 = vld [vmem:[%s2 + $0xb8] sm:$0xff]
        %v1798 = vld [vmem:[%s2 + $0xc0] sm:$0xff]
        %v1799 = vld [vmem:[%s2 + $0xc8] sm:$0xff]
        %v1800 = vld [vmem:[%s2 + $0xd0] sm:$0xff]
        %v1801 = vld [vmem:[%s2 + $0xd8] sm:$0xff]
        %v1802 = vld [vmem:[%s2 + $0xe0] sm:$0xff]
        %v1803 = vld [vmem:[%s2 + $0xe8] sm:$0xff]
        %v1804 = vld [vmem:[%s2 + $0xf0] sm:$0xff]
        %v1805 = vld [vmem:[%s2 + $0xf8] sm:$0xff]
        %v1838 = vunpack.c.l.b16 %v1774
        %v1839 = vunpack.c.h.b16 %v1774
        %v1840 = vunpack.c.l.b16 %v1775
        %v1841 = vunpack.c.h.b16 %v1775
        %v1842 = vunpack.c.l.b16 %v1776
        %v1843 = vunpack.c.h.b16 %v1776
        %v1844 = vunpack.c.l.b16 %v1777
        %v1845 = vunpack.c.h.b16 %v1777
        %v1846 = vunpack.c.l.b16 %v1778
        %v1847 = vunpack.c.h.b16 %v1778
        %v1848 = vunpack.c.l.b16 %v1779
        %v1849 = vunpack.c.h.b16 %v1779
        %v1850 = vunpack.c.l.b16 %v1780
        %v1851 = vunpack.c.h.b16 %v1780
        %v1852 = vunpack.c.l.b16 %v1781
        %v1853 = vunpack.c.h.b16 %v1781
        %v1854 = vunpack.c.l.b16 %v1782
        %v1855 = vunpack.c.h.b16 %v1782
        %v1856 = vunpack.c.l.b16 %v1783
        %v1857 = vunpack.c.h.b16 %v1783
        %v1858 = vunpack.c.l.b16 %v1784
        %v1859 = vunpack.c.h.b16 %v1784
        %v1860 = vunpack.c.l.b16 %v1785
        %v1861 = vunpack.c.h.b16 %v1785
        %v1862 = vunpack.c.l.b16 %v1786
        %v1863 = vunpack.c.h.b16 %v1786
        %v1864 = vunpack.c.l.b16 %v1787
        %v1865 = vunpack.c.h.b16 %v1787
        %v1866 = vunpack.c.l.b16 %v1788
        %v1867 = vunpack.c.h.b16 %v1788
        %v1868 = vunpack.c.l.b16 %v1789
        %v1869 = vunpack.c.h.b16 %v1789
        %v1870 = vunpack.c.l.b16 %v1790
        %v1871 = vunpack.c.h.b16 %v1790
        %v1872 = vunpack.c.l.b16 %v1791
        %v1873 = vunpack.c.h.b16 %v1791
        %v1874 = vunpack.c.l.b16 %v1792
        %v1875 = vunpack.c.h.b16 %v1792
        %v1876 = vunpack.c.l.b16 %v1793
        %v1877 = vunpack.c.h.b16 %v1793
        %v1878 = vunpack.c.l.b16 %v1794
        %v1879 = vunpack.c.h.b16 %v1794
        %v1880 = vunpack.c.l.b16 %v1795
        %v1881 = vunpack.c.h.b16 %v1795
        %v1882 = vunpack.c.l.b16 %v1796
        %v1883 = vunpack.c.h.b16 %v1796
        %v1884 = vunpack.c.l.b16 %v1797
        %v1885 = vunpack.c.h.b16 %v1797
        %v1886 = vunpack.c.l.b16 %v1798
        %v1887 = vunpack.c.h.b16 %v1798
        %v1888 = vunpack.c.l.b16 %v1799
        %v1889 = vunpack.c.h.b16 %v1799
        %v1890 = vunpack.c.l.b16 %v1800
        %v1891 = vunpack.c.h.b16 %v1800
        %v1892 = vunpack.c.l.b16 %v1801
        %v1893 = vunpack.c.h.b16 %v1801
        %v1894 = vunpack.c.l.b16 %v1802
        %v1895 = vunpack.c.h.b16 %v1802
        %v1896 = vunpack.c.l.b16 %v1803
        %v1897 = vunpack.c.h.b16 %v1803
        %v1898 = vunpack.c.l.b16 %v1804
        %v1899 = vunpack.c.h.b16 %v1804
        %v1900 = vunpack.c.l.b16 %v1805
        %v1901 = vunpack.c.h.b16 %v1805
        %v1902 = vpack.c.b16 %v1842, %v1838
        %v1903 = vpack.c.b16 %v1843, %v1839
        %v1904 = vpack.c.b16 %v1844, %v1840
        %v1905 = vpack.c.b16 %v1845, %v1841
        %v1906 = vpack.c.b16 %v1850, %v1846
        %v1907 = vpack.c.b16 %v1851, %v1847
        %v1908 = vpack.c.b16 %v1852, %v1848
        %v1909 = vpack.c.b16 %v1853, %v1849
        %v1910 = vpack.c.b16 %v1858, %v1854
        %v1911 = vpack.c.b16 %v1859, %v1855
        %v1912 = vpack.c.b16 %v1860, %v1856
        %v1913 = vpack.c.b16 %v1861, %v1857
        %v1914 = vpack.c.b16 %v1866, %v1862
        %v1915 = vpack.c.b16 %v1867, %v1863
        %v1916 = vpack.c.b16 %v1868, %v1864
        %v1917 = vpack.c.b16 %v1869, %v1865
        %v1918 = vpack.c.b16 %v1874, %v1870
        %v1919 = vpack.c.b16 %v1875, %v1871
        %v1920 = vpack.c.b16 %v1876, %v1872
        %v1921 = vpack.c.b16 %v1877, %v1873
        %v1922 = vpack.c.b16 %v1882, %v1878
        %v1923 = vpack.c.b16 %v1883, %v1879
        %v1924 = vpack.c.b16 %v1884, %v1880
        %v1925 = vpack.c.b16 %v1885, %v1881
        %v1926 = vpack.c.b16 %v1890, %v1886
        %v1927 = vpack.c.b16 %v1891, %v1887
        %v1928 = vpack.c.b16 %v1892, %v1888
        %v1929 = vpack.c.b16 %v1893, %v1889
        %v1930 = vpack.c.b16 %v1898, %v1894
        %v1931 = vpack.c.b16 %v1899, %v1895
        %v1932 = vpack.c.b16 %v1900, %v1896
        %v1933 = vpack.c.b16 %v1901, %v1897
        %1966 = vmatpush.bf16.msra.mxu0 %v1930
        %1967 = vmatpush.bf16.msra.mxu0 %v1926
        %1968 = vmatpush.bf16.msra.mxu0 %v1922
        %1969 = vmatpush.bf16.msra.mxu0 %v1918
        %1970 = vmatpush.bf16.msra.mxu0 %v1914
        %1971 = vmatpush.bf16.msra.mxu0 %v1910
        %1972 = vmatpush.bf16.msra.mxu0 %v1906
        %1973 = vmatpush.bf16.msra.mxu0 %v1902
        %1974 = vmatmul.bf16.gmra.mxu0 0
        %v1975 = vpop.f32.mrf.mxu0
        %v1976 = vadd.f32 0.0, %v1975
        %v1977 = vpop.f32.mrf.mxu0
        %v1978 = vadd.f32 0.0, %v1977
        %1979 = vmatmul.bf16.gmra.mxu0 0
        %v1980 = vpop.f32.mrf.mxu0
        %v1981 = vadd.f32 0.0, %v1980
        %v1982 = vpop.f32.mrf.mxu0
        %v1983 = vadd.f32 0.0, %v1982
        %1984 = vmatmul.bf16.gmra.mxu0 0
        %v1985 = vpop.f32.mrf.mxu0
        %v1986 = vadd.f32 0.0, %v1985
        %v1987 = vpop.f32.mrf.mxu0
        %v1988 = vadd.f32 0.0, %v1987
        %1989 = vmatmul.bf16.gmra.mxu0 0
        %v1990 = vpop.f32.mrf.mxu0
        %v1991 = vadd.f32 0.0, %v1990
        %v1992 = vpop.f32.mrf.mxu0
        %v1993 = vadd.f32 0.0, %v1992
        %1994 = vmatmul.bf16.gmra.mxu0 0
        %v1995 = vpop.f32.mrf.mxu0
        %v1996 = vadd.f32 0.0, %v1995
        %v1997 = vpop.f32.mrf.mxu0
        %v1998 = vadd.f32 0.0, %v1997
        %1999 = vmatmul.bf16.gmra.mxu0 0
        %v2000 = vpop.f32.mrf.mxu0
        %v2001 = vadd.f32 0.0, %v2000
        %v2002 = vpop.f32.mrf.mxu0
        %v2003 = vadd.f32 0.0, %v2002
        %2004 = vmatmul.bf16.gmra.mxu0 0
        %v2005 = vpop.f32.mrf.mxu0
        %v2006 = vadd.f32 0.0, %v2005
        %v2007 = vpop.f32.mrf.mxu0
        %v2008 = vadd.f32 0.0, %v2007
        %2009 = vmatmul.bf16.gmra.mxu0 0
        %v2010 = vpop.f32.mrf.mxu0
        %v2011 = vadd.f32 0.0, %v2010
        %v2012 = vpop.f32.mrf.mxu0
        %v2013 = vadd.f32 0.0, %v2012
        %2014 = vdwg.mxu0
        %2015 = vmatpush.bf16.msra.mxu0 %v1931
        %2016 = vmatpush.bf16.msra.mxu0 %v1927
        %2017 = vmatpush.bf16.msra.mxu0 %v1923
        %2018 = vmatpush.bf16.msra.mxu0 %v1919
        %2019 = vmatpush.bf16.msra.mxu0 %v1915
        %2020 = vmatpush.bf16.msra.mxu0 %v1911
        %2021 = vmatpush.bf16.msra.mxu0 %v1907
        %2022 = vmatpush.bf16.msra.mxu0 %v1903
        %2023 = vmatmul.bf16.gmra.mxu0 0
        %v2024 = vpop.f32.mrf.mxu0
        %v2025 = vadd.f32 0.0, %v2024
        %v2026 = vpop.f32.mrf.mxu0
        %v2027 = vadd.f32 0.0, %v2026
        %2028 = vmatmul.bf16.gmra.mxu0 0
        %v2029 = vpop.f32.mrf.mxu0
        %v2030 = vadd.f32 0.0, %v2029
        %v2031 = vpop.f32.mrf.mxu0
        %v2032 = vadd.f32 0.0, %v2031
        %2033 = vmatmul.bf16.gmra.mxu0 0
        %v2034 = vpop.f32.mrf.mxu0
        %v2035 = vadd.f32 0.0, %v2034
        %v2036 = vpop.f32.mrf.mxu0
        %v2037 = vadd.f32 0.0, %v2036
        %2038 = vmatmul.bf16.gmra.mxu0 0
        %v2039 = vpop.f32.mrf.mxu0
        %v2040 = vadd.f32 0.0, %v2039
        %v2041 = vpop.f32.mrf.mxu0
        %v2042 = vadd.f32 0.0, %v2041
        %2043 = vmatmul.bf16.gmra.mxu0 0
        %v2044 = vpop.f32.mrf.mxu0
        %v2045 = vadd.f32 0.0, %v2044
        %v2046 = vpop.f32.mrf.mxu0
        %v2047 = vadd.f32 0.0, %v2046
        %2048 = vmatmul.bf16.gmra.mxu0 0
        %v2049 = vpop.f32.mrf.mxu0
        %v2050 = vadd.f32 0.0, %v2049
        %v2051 = vpop.f32.mrf.mxu0
        %v2052 = vadd.f32 0.0, %v2051
        %2053 = vmatmul.bf16.gmra.mxu0 0
        %v2054 = vpop.f32.mrf.mxu0
        %v2055 = vadd.f32 0.0, %v2054
        %v2056 = vpop.f32.mrf.mxu0
        %v2057 = vadd.f32 0.0, %v2056
        %2058 = vmatmul.bf16.gmra.mxu0 0
        %v2059 = vpop.f32.mrf.mxu0
        %v2060 = vadd.f32 0.0, %v2059
        %v2061 = vpop.f32.mrf.mxu0
        %v2062 = vadd.f32 0.0, %v2061
        %2063 = vdwg.mxu0
        %2064 = vmatpush.bf16.msra.mxu0 %v1932
        %2065 = vmatpush.bf16.msra.mxu0 %v1928
        %2066 = vmatpush.bf16.msra.mxu0 %v1924
        %2067 = vmatpush.bf16.msra.mxu0 %v1920
        %2068 = vmatpush.bf16.msra.mxu0 %v1916
        %2069 = vmatpush.bf16.msra.mxu0 %v1912
        %2070 = vmatpush.bf16.msra.mxu0 %v1908
        %2071 = vmatpush.bf16.msra.mxu0 %v1904
        %2072 = vmatmul.bf16.gmra.mxu0 0
        %v2073 = vpop.f32.mrf.mxu0
        %v2074 = vadd.f32 0.0, %v2073
        %v2075 = vpop.f32.mrf.mxu0
        %v2076 = vadd.f32 0.0, %v2075
        %2077 = vmatmul.bf16.gmra.mxu0 0
        %v2078 = vpop.f32.mrf.mxu0
        %v2079 = vadd.f32 0.0, %v2078
        %v2080 = vpop.f32.mrf.mxu0
        %v2081 = vadd.f32 0.0, %v2080
        %2082 = vmatmul.bf16.gmra.mxu0 0
        %v2083 = vpop.f32.mrf.mxu0
        %v2084 = vadd.f32 0.0, %v2083
        %v2085 = vpop.f32.mrf.mxu0
        %v2086 = vadd.f32 0.0, %v2085
        %2087 = vmatmul.bf16.gmra.mxu0 0
        %v2088 = vpop.f32.mrf.mxu0
        %v2089 = vadd.f32 0.0, %v2088
        %v2090 = vpop.f32.mrf.mxu0
        %v2091 = vadd.f32 0.0, %v2090
        %2092 = vmatmul.bf16.gmra.mxu0 0
        %v2093 = vpop.f32.mrf.mxu0
        %v2094 = vadd.f32 0.0, %v2093
        %v2095 = vpop.f32.mrf.mxu0
        %v2096 = vadd.f32 0.0, %v2095
        %2097 = vmatmul.bf16.gmra.mxu0 0
        %v2098 = vpop.f32.mrf.mxu0
        %v2099 = vadd.f32 0.0, %v2098
        %v2100 = vpop.f32.mrf.mxu0
        %v2101 = vadd.f32 0.0, %v2100
        %2102 = vmatmul.bf16.gmra.mxu0 0
        %v2103 = vpop.f32.mrf.mxu0
        %v2104 = vadd.f32 0.0, %v2103
        %v2105 = vpop.f32.mrf.mxu0
        %v2106 = vadd.f32 0.0, %v2105
        %2107 = vmatmul.bf16.gmra.mxu0 0
        %v2108 = vpop.f32.mrf.mxu0
        %v2109 = vadd.f32 0.0, %v2108
        %v2110 = vpop.f32.mrf.mxu0
        %v2111 = vadd.f32 0.0, %v2110
        %2112 = vdwg.mxu0
        %2113 = vmatpush.bf16.msra.mxu0 %v1933
        %2114 = vmatpush.bf16.msra.mxu0 %v1929
        %2115 = vmatpush.bf16.msra.mxu0 %v1925
        %2116 = vmatpush.bf16.msra.mxu0 %v1921
        %2117 = vmatpush.bf16.msra.mxu0 %v1917
        %2118 = vmatpush.bf16.msra.mxu0 %v1913
        %2119 = vmatpush.bf16.msra.mxu0 %v1909
        %2120 = vmatpush.bf16.msra.mxu0 %v1905
        %2121 = vmatmul.bf16.gmra.mxu0 0
        %v2122 = vpop.f32.mrf.mxu0
        %v2123 = vadd.f32 0.0, %v2122
        %v2124 = vpop.f32.mrf.mxu0
        %v2125 = vadd.f32 0.0, %v2124
        %2126 = vmatmul.bf16.gmra.mxu0 0
        %v2127 = vpop.f32.mrf.mxu0
        %v2128 = vadd.f32 0.0, %v2127
        %v2129 = vpop.f32.mrf.mxu0
        %v2130 = vadd.f32 0.0, %v2129
        %2131 = vmatmul.bf16.gmra.mxu0 0
        %v2132 = vpop.f32.mrf.mxu0
        %v2133 = vadd.f32 0.0, %v2132
        %v2134 = vpop.f32.mrf.mxu0
        %v2135 = vadd.f32 0.0, %v2134
        %2136 = vmatmul.bf16.gmra.mxu0 0
        %v2137 = vpop.f32.mrf.mxu0
        %v2138 = vadd.f32 0.0, %v2137
        %v2139 = vpop.f32.mrf.mxu0
        %v2140 = vadd.f32 0.0, %v2139
        %2141 = vmatmul.bf16.gmra.mxu0 0
        %v2142 = vpop.f32.mrf.mxu0
        %v2143 = vadd.f32 0.0, %v2142
        %v2144 = vpop.f32.mrf.mxu0
        %v2145 = vadd.f32 0.0, %v2144
        %2146 = vmatmul.bf16.gmra.mxu0 0
        %v2147 = vpop.f32.mrf.mxu0
        %v2148 = vadd.f32 0.0, %v2147
        %v2149 = vpop.f32.mrf.mxu0
        %v2150 = vadd.f32 0.0, %v2149
        %2151 = vmatmul.bf16.gmra.mxu0 0
        %v2152 = vpop.f32.mrf.mxu0
        %v2153 = vadd.f32 0.0, %v2152
        %v2154 = vpop.f32.mrf.mxu0
        %v2155 = vadd.f32 0.0, %v2154
        %2156 = vmatmul.bf16.gmra.mxu0 0
        %v2157 = vpop.f32.mrf.mxu0
        %v2158 = vadd.f32 0.0, %v2157
        %v2159 = vpop.f32.mrf.mxu0
        %v2160 = vadd.f32 0.0, %v2159
        %2161 = vdwg.mxu0
        %v2162 = vadd.f32 %v1161, %v1976
        %v2163 = vadd.f32 %v1339, %v2025
        %v2164 = vadd.f32 %v1517, %v2074
        %v2165 = vadd.f32 %v1695, %v2123
        %v2166 = vadd.f32 %v1163, %v1978
        %v2167 = vadd.f32 %v1341, %v2027
        %v2168 = vadd.f32 %v1519, %v2076
        %v2169 = vadd.f32 %v1697, %v2125
        %v2170 = vadd.f32 %v1166, %v1981
        %v2171 = vadd.f32 %v1344, %v2030
        %v2172 = vadd.f32 %v1522, %v2079
        %v2173 = vadd.f32 %v1700, %v2128
        %v2174 = vadd.f32 %v1168, %v1983
        %v2175 = vadd.f32 %v1346, %v2032
        %v2176 = vadd.f32 %v1524, %v2081
        %v2177 = vadd.f32 %v1702, %v2130
        %v2178 = vadd.f32 %v1171, %v1986
        %v2179 = vadd.f32 %v1349, %v2035
        %v2180 = vadd.f32 %v1527, %v2084
        %v2181 = vadd.f32 %v1705, %v2133
        %v2182 = vadd.f32 %v1173, %v1988
        %v2183 = vadd.f32 %v1351, %v2037
        %v2184 = vadd.f32 %v1529, %v2086
        %v2185 = vadd.f32 %v1707, %v2135
        %v2186 = vadd.f32 %v1176, %v1991
        %v2187 = vadd.f32 %v1354, %v2040
        %v2188 = vadd.f32 %v1532, %v2089
        %v2189 = vadd.f32 %v1710, %v2138
        %v2190 = vadd.f32 %v1178, %v1993
        %v2191 = vadd.f32 %v1356, %v2042
        %v2192 = vadd.f32 %v1534, %v2091
        %v2193 = vadd.f32 %v1712, %v2140
        %v2194 = vadd.f32 %v1181, %v1996
        %v2195 = vadd.f32 %v1359, %v2045
        %v2196 = vadd.f32 %v1537, %v2094
        %v2197 = vadd.f32 %v1715, %v2143
        %v2198 = vadd.f32 %v1183, %v1998
        %v2199 = vadd.f32 %v1361, %v2047
        %v2200 = vadd.f32 %v1539, %v2096
        %v2201 = vadd.f32 %v1717, %v2145
        %v2202 = vadd.f32 %v1186, %v2001
        %v2203 = vadd.f32 %v1364, %v2050
        %v2204 = vadd.f32 %v1542, %v2099
        %v2205 = vadd.f32 %v1720, %v2148
        %v2206 = vadd.f32 %v1188, %v2003
        %v2207 = vadd.f32 %v1366, %v2052
        %v2208 = vadd.f32 %v1544, %v2101
        %v2209 = vadd.f32 %v1722, %v2150
        %v2210 = vadd.f32 %v1191, %v2006
        %v2211 = vadd.f32 %v1369, %v2055
        %v2212 = vadd.f32 %v1547, %v2104
        %v2213 = vadd.f32 %v1725, %v2153
        %v2214 = vadd.f32 %v1193, %v2008
        %v2215 = vadd.f32 %v1371, %v2057
        %v2216 = vadd.f32 %v1549, %v2106
        %v2217 = vadd.f32 %v1727, %v2155
        %v2218 = vadd.f32 %v1196, %v2011
        %v2219 = vadd.f32 %v1374, %v2060
        %v2220 = vadd.f32 %v1552, %v2109
        %v2221 = vadd.f32 %v1730, %v2158
        %v2222 = vadd.f32 %v1198, %v2013
        %v2223 = vadd.f32 %v1376, %v2062
        %v2224 = vadd.f32 %v1554, %v2111
        %v2225 = vadd.f32 %v1732, %v2160
        %v2226 = vxor.u32 %v2162, 2147483648
        %v2227 = vxor.u32 %v2163, 2147483648
        %v2228 = vxor.u32 %v2164, 2147483648
        %v2229 = vxor.u32 %v2166, 2147483648
        %v2230 = vxor.u32 %v2167, 2147483648
        %v2231 = vxor.u32 %v2168, 2147483648
        %v2232 = vxor.u32 %v2170, 2147483648
        %v2233 = vxor.u32 %v2171, 2147483648
        %v2234 = vxor.u32 %v2172, 2147483648
        %v2235 = vxor.u32 %v2174, 2147483648
        %v2236 = vxor.u32 %v2175, 2147483648
        %v2237 = vxor.u32 %v2176, 2147483648
        %v2238 = vxor.u32 %v2178, 2147483648
        %v2239 = vxor.u32 %v2179, 2147483648
        %v2240 = vxor.u32 %v2180, 2147483648
        %v2241 = vxor.u32 %v2182, 2147483648
        %v2242 = vxor.u32 %v2183, 2147483648
        %v2243 = vxor.u32 %v2184, 2147483648
        %v2244 = vxor.u32 %v2186, 2147483648
        %v2245 = vxor.u32 %v2187, 2147483648
        %v2246 = vxor.u32 %v2188, 2147483648
        %v2247 = vxor.u32 %v2190, 2147483648
        %v2248 = vxor.u32 %v2191, 2147483648
        %v2249 = vxor.u32 %v2192, 2147483648
        %v2250 = vxor.u32 %v2194, 2147483648
        %v2251 = vxor.u32 %v2195, 2147483648
        %v2252 = vxor.u32 %v2196, 2147483648
        %v2253 = vxor.u32 %v2198, 2147483648
        %v2254 = vxor.u32 %v2199, 2147483648
        %v2255 = vxor.u32 %v2200, 2147483648
        %v2256 = vxor.u32 %v2202, 2147483648
        %v2257 = vxor.u32 %v2203, 2147483648
        %v2258 = vxor.u32 %v2204, 2147483648
        %v2259 = vxor.u32 %v2206, 2147483648
        %v2260 = vxor.u32 %v2207, 2147483648
        %v2261 = vxor.u32 %v2208, 2147483648
        %v2262 = vxor.u32 %v2210, 2147483648
        %v2263 = vxor.u32 %v2211, 2147483648
        %v2264 = vxor.u32 %v2212, 2147483648
        %v2265 = vxor.u32 %v2214, 2147483648
        %v2266 = vxor.u32 %v2215, 2147483648
        %v2267 = vxor.u32 %v2216, 2147483648
        %v2268 = vxor.u32 %v2218, 2147483648
        %v2269 = vxor.u32 %v2219, 2147483648
        %v2270 = vxor.u32 %v2220, 2147483648
        %v2271 = vxor.u32 %v2222, 2147483648
        %v2272 = vxor.u32 %v2223, 2147483648
        %v2273 = vxor.u32 %v2224, 2147483648
        %v2274 = vmul.f32 %v2226, 1.442695
        %v2275 = vpow.pop %v2274
        %v2276 = vmul.f32 %v2227, 1.442695
        %v2277 = vpow.pop %v2276
        %v2278 = vmul.f32 %v2228, 1.442695
        %v2279 = vpow.pop %v2278
        %v2280 = vmul.f32 %v2229, 1.442695
        %v2281 = vpow.pop %v2280
        %v2282 = vmul.f32 %v2230, 1.442695
        %v2283 = vpow.pop %v2282
        %v2284 = vmul.f32 %v2231, 1.442695
        %v2285 = vpow.pop %v2284
        %v2286 = vmul.f32 %v2232, 1.442695
        %v2287 = vpow.pop %v2286
        %v2288 = vmul.f32 %v2233, 1.442695
        %v2289 = vpow.pop %v2288
        %v2290 = vmul.f32 %v2234, 1.442695
        %v2291 = vpow.pop %v2290
        %v2292 = vmul.f32 %v2235, 1.442695
        %v2293 = vpow.pop %v2292
        %v2294 = vmul.f32 %v2236, 1.442695
        %v2295 = vpow.pop %v2294
        %v2296 = vmul.f32 %v2237, 1.442695
        %v2297 = vpow.pop %v2296
        %v2298 = vmul.f32 %v2238, 1.442695
        %v2299 = vpow.pop %v2298
        %v2300 = vmul.f32 %v2239, 1.442695
        %v2301 = vpow.pop %v2300
        %v2302 = vmul.f32 %v2240, 1.442695
        %v2303 = vpow.pop %v2302
        %v2304 = vmul.f32 %v2241, 1.442695
        %v2305 = vpow.pop %v2304
        %v2306 = vmul.f32 %v2242, 1.442695
        %v2307 = vpow.pop %v2306
        %v2308 = vmul.f32 %v2243, 1.442695
        %v2309 = vpow.pop %v2308
        %v2310 = vmul.f32 %v2244, 1.442695
        %v2311 = vpow.pop %v2310
        %v2312 = vmul.f32 %v2245, 1.442695
        %v2313 = vpow.pop %v2312
        %v2314 = vmul.f32 %v2246, 1.442695
        %v2315 = vpow.pop %v2314
        %v2316 = vmul.f32 %v2247, 1.442695
        %v2317 = vpow.pop %v2316
        %v2318 = vmul.f32 %v2248, 1.442695
        %v2319 = vpow.pop %v2318
        %v2320 = vmul.f32 %v2249, 1.442695
        %v2321 = vpow.pop %v2320
        %v2322 = vmul.f32 %v2250, 1.442695
        %v2323 = vpow.pop %v2322
        %v2324 = vmul.f32 %v2251, 1.442695
        %v2325 = vpow.pop %v2324
        %v2326 = vmul.f32 %v2252, 1.442695
        %v2327 = vpow.pop %v2326
        %v2328 = vmul.f32 %v2253, 1.442695
        %v2329 = vpow.pop %v2328
        %v2330 = vmul.f32 %v2254, 1.442695
        %v2331 = vpow.pop %v2330
        %v2332 = vmul.f32 %v2255, 1.442695
        %v2333 = vpow.pop %v2332
        %v2334 = vmul.f32 %v2256, 1.442695
        %v2335 = vpow.pop %v2334
        %v2336 = vmul.f32 %v2257, 1.442695
        %v2337 = vpow.pop %v2336
        %v2338 = vmul.f32 %v2258, 1.442695
        %v2339 = vpow.pop %v2338
        %v2340 = vmul.f32 %v2259, 1.442695
        %v2341 = vpow.pop %v2340
        %v2342 = vmul.f32 %v2260, 1.442695
        %v2343 = vpow.pop %v2342
        %v2344 = vmul.f32 %v2261, 1.442695
        %v2345 = vpow.pop %v2344
        %v2346 = vmul.f32 %v2262, 1.442695
        %v2347 = vpow.pop %v2346
        %v2348 = vmul.f32 %v2263, 1.442695
        %v2349 = vpow.pop %v2348
        %v2350 = vmul.f32 %v2264, 1.442695
        %v2351 = vpow.pop %v2350
        %v2352 = vmul.f32 %v2265, 1.442695
        %v2353 = vpow.pop %v2352
        %v2354 = vmul.f32 %v2266, 1.442695
        %v2355 = vpow.pop %v2354
        %v2356 = vmul.f32 %v2267, 1.442695
        %v2357 = vpow.pop %v2356
        %v2358 = vmul.f32 %v2268, 1.442695
        %v2359 = vpow.pop %v2358
        %v2360 = vmul.f32 %v2269, 1.442695
        %v2361 = vpow.pop %v2360
        %v2362 = vmul.f32 %v2270, 1.442695
        %v2363 = vpow.pop %v2362
        %v2364 = vmul.f32 %v2271, 1.442695
        %v2365 = vpow.pop %v2364
        %v2366 = vmul.f32 %v2272, 1.442695
        %v2367 = vpow.pop %v2366
        %v2368 = vmul.f32 %v2273, 1.442695
        %v2369 = vpow.pop %v2368
        %v2370 = vadd.f32 %v2275, 1.0
        %v2371 = vadd.f32 %v2277, 1.0
        %v2372 = vadd.f32 %v2279, 1.0
        %v2373 = vadd.f32 %v2281, 1.0
        %v2374 = vadd.f32 %v2283, 1.0
        %v2375 = vadd.f32 %v2285, 1.0
        %v2376 = vadd.f32 %v2287, 1.0
        %v2377 = vadd.f32 %v2289, 1.0
        %v2378 = vadd.f32 %v2291, 1.0
        %v2379 = vadd.f32 %v2293, 1.0
        %v2380 = vadd.f32 %v2295, 1.0
        %v2381 = vadd.f32 %v2297, 1.0
        %v2382 = vadd.f32 %v2299, 1.0
        %v2383 = vadd.f32 %v2301, 1.0
        %v2384 = vadd.f32 %v2303, 1.0
        %v2385 = vadd.f32 %v2305, 1.0
        %v2386 = vadd.f32 %v2307, 1.0
        %v2387 = vadd.f32 %v2309, 1.0
        %v2388 = vadd.f32 %v2311, 1.0
        %v2389 = vadd.f32 %v2313, 1.0
        %v2390 = vadd.f32 %v2315, 1.0
        %v2391 = vadd.f32 %v2317, 1.0
        %v2392 = vadd.f32 %v2319, 1.0
        %v2393 = vadd.f32 %v2321, 1.0
        %v2394 = vadd.f32 %v2323, 1.0
        %v2395 = vadd.f32 %v2325, 1.0
        %v2396 = vadd.f32 %v2327, 1.0
        %v2397 = vadd.f32 %v2329, 1.0
        %v2398 = vadd.f32 %v2331, 1.0
        %v2399 = vadd.f32 %v2333, 1.0
        %v2400 = vadd.f32 %v2335, 1.0
        %v2401 = vadd.f32 %v2337, 1.0
        %v2402 = vadd.f32 %v2339, 1.0
        %v2403 = vadd.f32 %v2341, 1.0
        %v2404 = vadd.f32 %v2343, 1.0
        %v2405 = vadd.f32 %v2345, 1.0
        %v2406 = vadd.f32 %v2347, 1.0
        %v2407 = vadd.f32 %v2349, 1.0
        %v2408 = vadd.f32 %v2351, 1.0
        %v2409 = vadd.f32 %v2353, 1.0
        %v2410 = vadd.f32 %v2355, 1.0
        %v2411 = vadd.f32 %v2357, 1.0
        %v2412 = vadd.f32 %v2359, 1.0
        %v2413 = vadd.f32 %v2361, 1.0
        %v2414 = vadd.f32 %v2363, 1.0
        %v2415 = vadd.f32 %v2365, 1.0
        %v2416 = vadd.f32 %v2367, 1.0
        %v2417 = vadd.f32 %v2369, 1.0
        %v2418 = vrcp.pop %v2370
        %v2419 = vmul.f32 %v2370, %v2418
        %v2420 = vsub.f32 1.0, %v2419
        %v2421 = vmul.f32 %v2418, %v2420
        %v2422 = vadd.f32 %v2418, %v2421
        %vm2423 = vweird.f32 %v2370
        %vm2424 = vweird.f32 %v2418
        %vm2425 = vmor %vm2423, %vm2424
        %v2426 = vsel %vm2425, %v2418, %v2422
        %v2427 = vand.u32 2147483647, %v2370
        %vm2428 = vcmp.eq.f32.partialorder %v2427, 8.507059e+37
        %v2429 = vand.u32 %v2370, 2147483648
        %v2430 = vor.u32 1.1754944e-38, %v2429
        %v2431 = vsel %vm2428, %v2430, %v2426
        %v2432 = vmul.f32 1.0, %v2431
        %v2433 = vrcp.pop %v2371
        %v2434 = vmul.f32 %v2371, %v2433
        %v2435 = vsub.f32 1.0, %v2434
        %v2436 = vmul.f32 %v2433, %v2435
        %v2437 = vadd.f32 %v2433, %v2436
        %vm2438 = vweird.f32 %v2371
        %vm2439 = vweird.f32 %v2433
        %vm2440 = vmor %vm2438, %vm2439
        %v2441 = vsel %vm2440, %v2433, %v2437
        %v2442 = vand.u32 2147483647, %v2371
        %vm2443 = vcmp.eq.f32.partialorder %v2442, 8.507059e+37
        %v2444 = vand.u32 %v2371, 2147483648
        %v2445 = vor.u32 1.1754944e-38, %v2444
        %v2446 = vsel %vm2443, %v2445, %v2441
        %v2447 = vmul.f32 1.0, %v2446
        %v2448 = vrcp.pop %v2372
        %v2449 = vmul.f32 %v2372, %v2448
        %v2450 = vsub.f32 1.0, %v2449
        %v2451 = vmul.f32 %v2448, %v2450
        %v2452 = vadd.f32 %v2448, %v2451
        %vm2453 = vweird.f32 %v2372
        %vm2454 = vweird.f32 %v2448
        %vm2455 = vmor %vm2453, %vm2454
        %v2456 = vsel %vm2455, %v2448, %v2452
        %v2457 = vand.u32 2147483647, %v2372
        %vm2458 = vcmp.eq.f32.partialorder %v2457, 8.507059e+37
        %v2459 = vand.u32 %v2372, 2147483648
        %v2460 = vor.u32 1.1754944e-38, %v2459
        %v2461 = vsel %vm2458, %v2460, %v2456
        %v2462 = vmul.f32 1.0, %v2461
        %v2463 = vrcp.pop %v2373
        %v2464 = vmul.f32 %v2373, %v2463
        %v2465 = vsub.f32 1.0, %v2464
        %v2466 = vmul.f32 %v2463, %v2465
        %v2467 = vadd.f32 %v2463, %v2466
        %vm2468 = vweird.f32 %v2373
        %vm2469 = vweird.f32 %v2463
        %vm2470 = vmor %vm2468, %vm2469
        %v2471 = vsel %vm2470, %v2463, %v2467
        %v2472 = vand.u32 2147483647, %v2373
        %vm2473 = vcmp.eq.f32.partialorder %v2472, 8.507059e+37
        %v2474 = vand.u32 %v2373, 2147483648
        %v2475 = vor.u32 1.1754944e-38, %v2474
        %v2476 = vsel %vm2473, %v2475, %v2471
        %v2477 = vmul.f32 1.0, %v2476
        %v2478 = vrcp.pop %v2374
        %v2479 = vmul.f32 %v2374, %v2478
        %v2480 = vsub.f32 1.0, %v2479
        %v2481 = vmul.f32 %v2478, %v2480
        %v2482 = vadd.f32 %v2478, %v2481
        %vm2483 = vweird.f32 %v2374
        %vm2484 = vweird.f32 %v2478
        %vm2485 = vmor %vm2483, %vm2484
        %v2486 = vsel %vm2485, %v2478, %v2482
        %v2487 = vand.u32 2147483647, %v2374
        %vm2488 = vcmp.eq.f32.partialorder %v2487, 8.507059e+37
        %v2489 = vand.u32 %v2374, 2147483648
        %v2490 = vor.u32 1.1754944e-38, %v2489
        %v2491 = vsel %vm2488, %v2490, %v2486
        %v2492 = vmul.f32 1.0, %v2491
        %v2493 = vrcp.pop %v2375
        %v2494 = vmul.f32 %v2375, %v2493
        %v2495 = vsub.f32 1.0, %v2494
        %v2496 = vmul.f32 %v2493, %v2495
        %v2497 = vadd.f32 %v2493, %v2496
        %vm2498 = vweird.f32 %v2375
        %vm2499 = vweird.f32 %v2493
        %vm2500 = vmor %vm2498, %vm2499
        %v2501 = vsel %vm2500, %v2493, %v2497
        %v2502 = vand.u32 2147483647, %v2375
        %vm2503 = vcmp.eq.f32.partialorder %v2502, 8.507059e+37
        %v2504 = vand.u32 %v2375, 2147483648
        %v2505 = vor.u32 1.1754944e-38, %v2504
        %v2506 = vsel %vm2503, %v2505, %v2501
        %v2507 = vmul.f32 1.0, %v2506
        %v2508 = vrcp.pop %v2376
        %v2509 = vmul.f32 %v2376, %v2508
        %v2510 = vsub.f32 1.0, %v2509
        %v2511 = vmul.f32 %v2508, %v2510
        %v2512 = vadd.f32 %v2508, %v2511
        %vm2513 = vweird.f32 %v2376
        %vm2514 = vweird.f32 %v2508
        %vm2515 = vmor %vm2513, %vm2514
        %v2516 = vsel %vm2515, %v2508, %v2512
        %v2517 = vand.u32 2147483647, %v2376
        %vm2518 = vcmp.eq.f32.partialorder %v2517, 8.507059e+37
        %v2519 = vand.u32 %v2376, 2147483648
        %v2520 = vor.u32 1.1754944e-38, %v2519
        %v2521 = vsel %vm2518, %v2520, %v2516
        %v2522 = vmul.f32 1.0, %v2521
        %v2523 = vrcp.pop %v2377
        %v2524 = vmul.f32 %v2377, %v2523
        %v2525 = vsub.f32 1.0, %v2524
        %v2526 = vmul.f32 %v2523, %v2525
        %v2527 = vadd.f32 %v2523, %v2526
        %vm2528 = vweird.f32 %v2377
        %vm2529 = vweird.f32 %v2523
        %vm2530 = vmor %vm2528, %vm2529
        %v2531 = vsel %vm2530, %v2523, %v2527
        %v2532 = vand.u32 2147483647, %v2377
        %vm2533 = vcmp.eq.f32.partialorder %v2532, 8.507059e+37
        %v2534 = vand.u32 %v2377, 2147483648
        %v2535 = vor.u32 1.1754944e-38, %v2534
        %v2536 = vsel %vm2533, %v2535, %v2531
        %v2537 = vmul.f32 1.0, %v2536
        %v2538 = vrcp.pop %v2378
        %v2539 = vmul.f32 %v2378, %v2538
        %v2540 = vsub.f32 1.0, %v2539
        %v2541 = vmul.f32 %v2538, %v2540
        %v2542 = vadd.f32 %v2538, %v2541
        %vm2543 = vweird.f32 %v2378
        %vm2544 = vweird.f32 %v2538
        %vm2545 = vmor %vm2543, %vm2544
        %v2546 = vsel %vm2545, %v2538, %v2542
        %v2547 = vand.u32 2147483647, %v2378
        %vm2548 = vcmp.eq.f32.partialorder %v2547, 8.507059e+37
        %v2549 = vand.u32 %v2378, 2147483648
        %v2550 = vor.u32 1.1754944e-38, %v2549
        %v2551 = vsel %vm2548, %v2550, %v2546
        %v2552 = vmul.f32 1.0, %v2551
        %v2553 = vrcp.pop %v2379
        %v2554 = vmul.f32 %v2379, %v2553
        %v2555 = vsub.f32 1.0, %v2554
        %v2556 = vmul.f32 %v2553, %v2555
        %v2557 = vadd.f32 %v2553, %v2556
        %vm2558 = vweird.f32 %v2379
        %vm2559 = vweird.f32 %v2553
        %vm2560 = vmor %vm2558, %vm2559
        %v2561 = vsel %vm2560, %v2553, %v2557
        %v2562 = vand.u32 2147483647, %v2379
        %vm2563 = vcmp.eq.f32.partialorder %v2562, 8.507059e+37
        %v2564 = vand.u32 %v2379, 2147483648
        %v2565 = vor.u32 1.1754944e-38, %v2564
        %v2566 = vsel %vm2563, %v2565, %v2561
        %v2567 = vmul.f32 1.0, %v2566
        %v2568 = vrcp.pop %v2380
        %v2569 = vmul.f32 %v2380, %v2568
        %v2570 = vsub.f32 1.0, %v2569
        %v2571 = vmul.f32 %v2568, %v2570
        %v2572 = vadd.f32 %v2568, %v2571
        %vm2573 = vweird.f32 %v2380
        %vm2574 = vweird.f32 %v2568
        %vm2575 = vmor %vm2573, %vm2574
        %v2576 = vsel %vm2575, %v2568, %v2572
        %v2577 = vand.u32 2147483647, %v2380
        %vm2578 = vcmp.eq.f32.partialorder %v2577, 8.507059e+37
        %v2579 = vand.u32 %v2380, 2147483648
        %v2580 = vor.u32 1.1754944e-38, %v2579
        %v2581 = vsel %vm2578, %v2580, %v2576
        %v2582 = vmul.f32 1.0, %v2581
        %v2583 = vrcp.pop %v2381
        %v2584 = vmul.f32 %v2381, %v2583
        %v2585 = vsub.f32 1.0, %v2584
        %v2586 = vmul.f32 %v2583, %v2585
        %v2587 = vadd.f32 %v2583, %v2586
        %vm2588 = vweird.f32 %v2381
        %vm2589 = vweird.f32 %v2583
        %vm2590 = vmor %vm2588, %vm2589
        %v2591 = vsel %vm2590, %v2583, %v2587
        %v2592 = vand.u32 2147483647, %v2381
        %vm2593 = vcmp.eq.f32.partialorder %v2592, 8.507059e+37
        %v2594 = vand.u32 %v2381, 2147483648
        %v2595 = vor.u32 1.1754944e-38, %v2594
        %v2596 = vsel %vm2593, %v2595, %v2591
        %v2597 = vmul.f32 1.0, %v2596
        %v2598 = vrcp.pop %v2382
        %v2599 = vmul.f32 %v2382, %v2598
        %v2600 = vsub.f32 1.0, %v2599
        %v2601 = vmul.f32 %v2598, %v2600
        %v2602 = vadd.f32 %v2598, %v2601
        %vm2603 = vweird.f32 %v2382
        %vm2604 = vweird.f32 %v2598
        %vm2605 = vmor %vm2603, %vm2604
        %v2606 = vsel %vm2605, %v2598, %v2602
        %v2607 = vand.u32 2147483647, %v2382
        %vm2608 = vcmp.eq.f32.partialorder %v2607, 8.507059e+37
        %v2609 = vand.u32 %v2382, 2147483648
        %v2610 = vor.u32 1.1754944e-38, %v2609
        %v2611 = vsel %vm2608, %v2610, %v2606
        %v2612 = vmul.f32 1.0, %v2611
        %v2613 = vrcp.pop %v2383
        %v2614 = vmul.f32 %v2383, %v2613
        %v2615 = vsub.f32 1.0, %v2614
        %v2616 = vmul.f32 %v2613, %v2615
        %v2617 = vadd.f32 %v2613, %v2616
        %vm2618 = vweird.f32 %v2383
        %vm2619 = vweird.f32 %v2613
        %vm2620 = vmor %vm2618, %vm2619
        %v2621 = vsel %vm2620, %v2613, %v2617
        %v2622 = vand.u32 2147483647, %v2383
        %vm2623 = vcmp.eq.f32.partialorder %v2622, 8.507059e+37
        %v2624 = vand.u32 %v2383, 2147483648
        %v2625 = vor.u32 1.1754944e-38, %v2624
        %v2626 = vsel %vm2623, %v2625, %v2621
        %v2627 = vmul.f32 1.0, %v2626
        %v2628 = vrcp.pop %v2384
        %v2629 = vmul.f32 %v2384, %v2628
        %v2630 = vsub.f32 1.0, %v2629
        %v2631 = vmul.f32 %v2628, %v2630
        %v2632 = vadd.f32 %v2628, %v2631
        %vm2633 = vweird.f32 %v2384
        %vm2634 = vweird.f32 %v2628
        %vm2635 = vmor %vm2633, %vm2634
        %v2636 = vsel %vm2635, %v2628, %v2632
        %v2637 = vand.u32 2147483647, %v2384
        %vm2638 = vcmp.eq.f32.partialorder %v2637, 8.507059e+37
        %v2639 = vand.u32 %v2384, 2147483648
        %v2640 = vor.u32 1.1754944e-38, %v2639
        %v2641 = vsel %vm2638, %v2640, %v2636
        %v2642 = vmul.f32 1.0, %v2641
        %v2643 = vrcp.pop %v2385
        %v2644 = vmul.f32 %v2385, %v2643
        %v2645 = vsub.f32 1.0, %v2644
        %v2646 = vmul.f32 %v2643, %v2645
        %v2647 = vadd.f32 %v2643, %v2646
        %vm2648 = vweird.f32 %v2385
        %vm2649 = vweird.f32 %v2643
        %vm2650 = vmor %vm2648, %vm2649
        %v2651 = vsel %vm2650, %v2643, %v2647
        %v2652 = vand.u32 2147483647, %v2385
        %vm2653 = vcmp.eq.f32.partialorder %v2652, 8.507059e+37
        %v2654 = vand.u32 %v2385, 2147483648
        %v2655 = vor.u32 1.1754944e-38, %v2654
        %v2656 = vsel %vm2653, %v2655, %v2651
        %v2657 = vmul.f32 1.0, %v2656
        %v2658 = vrcp.pop %v2386
        %v2659 = vmul.f32 %v2386, %v2658
        %v2660 = vsub.f32 1.0, %v2659
        %v2661 = vmul.f32 %v2658, %v2660
        %v2662 = vadd.f32 %v2658, %v2661
        %vm2663 = vweird.f32 %v2386
        %vm2664 = vweird.f32 %v2658
        %vm2665 = vmor %vm2663, %vm2664
        %v2666 = vsel %vm2665, %v2658, %v2662
        %v2667 = vand.u32 2147483647, %v2386
        %vm2668 = vcmp.eq.f32.partialorder %v2667, 8.507059e+37
        %v2669 = vand.u32 %v2386, 2147483648
        %v2670 = vor.u32 1.1754944e-38, %v2669
        %v2671 = vsel %vm2668, %v2670, %v2666
        %v2672 = vmul.f32 1.0, %v2671
        %v2673 = vrcp.pop %v2387
        %v2674 = vmul.f32 %v2387, %v2673
        %v2675 = vsub.f32 1.0, %v2674
        %v2676 = vmul.f32 %v2673, %v2675
        %v2677 = vadd.f32 %v2673, %v2676
        %vm2678 = vweird.f32 %v2387
        %vm2679 = vweird.f32 %v2673
        %vm2680 = vmor %vm2678, %vm2679
        %v2681 = vsel %vm2680, %v2673, %v2677
        %v2682 = vand.u32 2147483647, %v2387
        %vm2683 = vcmp.eq.f32.partialorder %v2682, 8.507059e+37
        %v2684 = vand.u32 %v2387, 2147483648
        %v2685 = vor.u32 1.1754944e-38, %v2684
        %v2686 = vsel %vm2683, %v2685, %v2681
        %v2687 = vmul.f32 1.0, %v2686
        %v2688 = vrcp.pop %v2388
        %v2689 = vmul.f32 %v2388, %v2688
        %v2690 = vsub.f32 1.0, %v2689
        %v2691 = vmul.f32 %v2688, %v2690
        %v2692 = vadd.f32 %v2688, %v2691
        %vm2693 = vweird.f32 %v2388
        %vm2694 = vweird.f32 %v2688
        %vm2695 = vmor %vm2693, %vm2694
        %v2696 = vsel %vm2695, %v2688, %v2692
        %v2697 = vand.u32 2147483647, %v2388
        %vm2698 = vcmp.eq.f32.partialorder %v2697, 8.507059e+37
        %v2699 = vand.u32 %v2388, 2147483648
        %v2700 = vor.u32 1.1754944e-38, %v2699
        %v2701 = vsel %vm2698, %v2700, %v2696
        %v2702 = vmul.f32 1.0, %v2701
        %v2703 = vrcp.pop %v2389
        %v2704 = vmul.f32 %v2389, %v2703
        %v2705 = vsub.f32 1.0, %v2704
        %v2706 = vmul.f32 %v2703, %v2705
        %v2707 = vadd.f32 %v2703, %v2706
        %vm2708 = vweird.f32 %v2389
        %vm2709 = vweird.f32 %v2703
        %vm2710 = vmor %vm2708, %vm2709
        %v2711 = vsel %vm2710, %v2703, %v2707
        %v2712 = vand.u32 2147483647, %v2389
        %vm2713 = vcmp.eq.f32.partialorder %v2712, 8.507059e+37
        %v2714 = vand.u32 %v2389, 2147483648
        %v2715 = vor.u32 1.1754944e-38, %v2714
        %v2716 = vsel %vm2713, %v2715, %v2711
        %v2717 = vmul.f32 1.0, %v2716
        %v2718 = vrcp.pop %v2390
        %v2719 = vmul.f32 %v2390, %v2718
        %v2720 = vsub.f32 1.0, %v2719
        %v2721 = vmul.f32 %v2718, %v2720
        %v2722 = vadd.f32 %v2718, %v2721
        %vm2723 = vweird.f32 %v2390
        %vm2724 = vweird.f32 %v2718
        %vm2725 = vmor %vm2723, %vm2724
        %v2726 = vsel %vm2725, %v2718, %v2722
        %v2727 = vand.u32 2147483647, %v2390
        %vm2728 = vcmp.eq.f32.partialorder %v2727, 8.507059e+37
        %v2729 = vand.u32 %v2390, 2147483648
        %v2730 = vor.u32 1.1754944e-38, %v2729
        %v2731 = vsel %vm2728, %v2730, %v2726
        %v2732 = vmul.f32 1.0, %v2731
        %v2733 = vrcp.pop %v2391
        %v2734 = vmul.f32 %v2391, %v2733
        %v2735 = vsub.f32 1.0, %v2734
        %v2736 = vmul.f32 %v2733, %v2735
        %v2737 = vadd.f32 %v2733, %v2736
        %vm2738 = vweird.f32 %v2391
        %vm2739 = vweird.f32 %v2733
        %vm2740 = vmor %vm2738, %vm2739
        %v2741 = vsel %vm2740, %v2733, %v2737
        %v2742 = vand.u32 2147483647, %v2391
        %vm2743 = vcmp.eq.f32.partialorder %v2742, 8.507059e+37
        %v2744 = vand.u32 %v2391, 2147483648
        %v2745 = vor.u32 1.1754944e-38, %v2744
        %v2746 = vsel %vm2743, %v2745, %v2741
        %v2747 = vmul.f32 1.0, %v2746
        %v2748 = vrcp.pop %v2392
        %v2749 = vmul.f32 %v2392, %v2748
        %v2750 = vsub.f32 1.0, %v2749
        %v2751 = vmul.f32 %v2748, %v2750
        %v2752 = vadd.f32 %v2748, %v2751
        %vm2753 = vweird.f32 %v2392
        %vm2754 = vweird.f32 %v2748
        %vm2755 = vmor %vm2753, %vm2754
        %v2756 = vsel %vm2755, %v2748, %v2752
        %v2757 = vand.u32 2147483647, %v2392
        %vm2758 = vcmp.eq.f32.partialorder %v2757, 8.507059e+37
        %v2759 = vand.u32 %v2392, 2147483648
        %v2760 = vor.u32 1.1754944e-38, %v2759
        %v2761 = vsel %vm2758, %v2760, %v2756
        %v2762 = vmul.f32 1.0, %v2761
        %v2763 = vrcp.pop %v2393
        %v2764 = vmul.f32 %v2393, %v2763
        %v2765 = vsub.f32 1.0, %v2764
        %v2766 = vmul.f32 %v2763, %v2765
        %v2767 = vadd.f32 %v2763, %v2766
        %vm2768 = vweird.f32 %v2393
        %vm2769 = vweird.f32 %v2763
        %vm2770 = vmor %vm2768, %vm2769
        %v2771 = vsel %vm2770, %v2763, %v2767
        %v2772 = vand.u32 2147483647, %v2393
        %vm2773 = vcmp.eq.f32.partialorder %v2772, 8.507059e+37
        %v2774 = vand.u32 %v2393, 2147483648
        %v2775 = vor.u32 1.1754944e-38, %v2774
        %v2776 = vsel %vm2773, %v2775, %v2771
        %v2777 = vmul.f32 1.0, %v2776
        %v2778 = vrcp.pop %v2394
        %v2779 = vmul.f32 %v2394, %v2778
        %v2780 = vsub.f32 1.0, %v2779
        %v2781 = vmul.f32 %v2778, %v2780
        %v2782 = vadd.f32 %v2778, %v2781
        %vm2783 = vweird.f32 %v2394
        %vm2784 = vweird.f32 %v2778
        %vm2785 = vmor %vm2783, %vm2784
        %v2786 = vsel %vm2785, %v2778, %v2782
        %v2787 = vand.u32 2147483647, %v2394
        %vm2788 = vcmp.eq.f32.partialorder %v2787, 8.507059e+37
        %v2789 = vand.u32 %v2394, 2147483648
        %v2790 = vor.u32 1.1754944e-38, %v2789
        %v2791 = vsel %vm2788, %v2790, %v2786
        %v2792 = vmul.f32 1.0, %v2791
        %v2793 = vrcp.pop %v2395
        %v2794 = vmul.f32 %v2395, %v2793
        %v2795 = vsub.f32 1.0, %v2794
        %v2796 = vmul.f32 %v2793, %v2795
        %v2797 = vadd.f32 %v2793, %v2796
        %vm2798 = vweird.f32 %v2395
        %vm2799 = vweird.f32 %v2793
        %vm2800 = vmor %vm2798, %vm2799
        %v2801 = vsel %vm2800, %v2793, %v2797
        %v2802 = vand.u32 2147483647, %v2395
        %vm2803 = vcmp.eq.f32.partialorder %v2802, 8.507059e+37
        %v2804 = vand.u32 %v2395, 2147483648
        %v2805 = vor.u32 1.1754944e-38, %v2804
        %v2806 = vsel %vm2803, %v2805, %v2801
        %v2807 = vmul.f32 1.0, %v2806
        %v2808 = vrcp.pop %v2396
        %v2809 = vmul.f32 %v2396, %v2808
        %v2810 = vsub.f32 1.0, %v2809
        %v2811 = vmul.f32 %v2808, %v2810
        %v2812 = vadd.f32 %v2808, %v2811
        %vm2813 = vweird.f32 %v2396
        %vm2814 = vweird.f32 %v2808
        %vm2815 = vmor %vm2813, %vm2814
        %v2816 = vsel %vm2815, %v2808, %v2812
        %v2817 = vand.u32 2147483647, %v2396
        %vm2818 = vcmp.eq.f32.partialorder %v2817, 8.507059e+37
        %v2819 = vand.u32 %v2396, 2147483648
        %v2820 = vor.u32 1.1754944e-38, %v2819
        %v2821 = vsel %vm2818, %v2820, %v2816
        %v2822 = vmul.f32 1.0, %v2821
        %v2823 = vrcp.pop %v2397
        %v2824 = vmul.f32 %v2397, %v2823
        %v2825 = vsub.f32 1.0, %v2824
        %v2826 = vmul.f32 %v2823, %v2825
        %v2827 = vadd.f32 %v2823, %v2826
        %vm2828 = vweird.f32 %v2397
        %vm2829 = vweird.f32 %v2823
        %vm2830 = vmor %vm2828, %vm2829
        %v2831 = vsel %vm2830, %v2823, %v2827
        %v2832 = vand.u32 2147483647, %v2397
        %vm2833 = vcmp.eq.f32.partialorder %v2832, 8.507059e+37
        %v2834 = vand.u32 %v2397, 2147483648
        %v2835 = vor.u32 1.1754944e-38, %v2834
        %v2836 = vsel %vm2833, %v2835, %v2831
        %v2837 = vmul.f32 1.0, %v2836
        %v2838 = vrcp.pop %v2398
        %v2839 = vmul.f32 %v2398, %v2838
        %v2840 = vsub.f32 1.0, %v2839
        %v2841 = vmul.f32 %v2838, %v2840
        %v2842 = vadd.f32 %v2838, %v2841
        %vm2843 = vweird.f32 %v2398
        %vm2844 = vweird.f32 %v2838
        %vm2845 = vmor %vm2843, %vm2844
        %v2846 = vsel %vm2845, %v2838, %v2842
        %v2847 = vand.u32 2147483647, %v2398
        %vm2848 = vcmp.eq.f32.partialorder %v2847, 8.507059e+37
        %v2849 = vand.u32 %v2398, 2147483648
        %v2850 = vor.u32 1.1754944e-38, %v2849
        %v2851 = vsel %vm2848, %v2850, %v2846
        %v2852 = vmul.f32 1.0, %v2851
        %v2853 = vrcp.pop %v2399
        %v2854 = vmul.f32 %v2399, %v2853
        %v2855 = vsub.f32 1.0, %v2854
        %v2856 = vmul.f32 %v2853, %v2855
        %v2857 = vadd.f32 %v2853, %v2856
        %vm2858 = vweird.f32 %v2399
        %vm2859 = vweird.f32 %v2853
        %vm2860 = vmor %vm2858, %vm2859
        %v2861 = vsel %vm2860, %v2853, %v2857
        %v2862 = vand.u32 2147483647, %v2399
        %vm2863 = vcmp.eq.f32.partialorder %v2862, 8.507059e+37
        %v2864 = vand.u32 %v2399, 2147483648
        %v2865 = vor.u32 1.1754944e-38, %v2864
        %v2866 = vsel %vm2863, %v2865, %v2861
        %v2867 = vmul.f32 1.0, %v2866
        %v2868 = vrcp.pop %v2400
        %v2869 = vmul.f32 %v2400, %v2868
        %v2870 = vsub.f32 1.0, %v2869
        %v2871 = vmul.f32 %v2868, %v2870
        %v2872 = vadd.f32 %v2868, %v2871
        %vm2873 = vweird.f32 %v2400
        %vm2874 = vweird.f32 %v2868
        %vm2875 = vmor %vm2873, %vm2874
        %v2876 = vsel %vm2875, %v2868, %v2872
        %v2877 = vand.u32 2147483647, %v2400
        %vm2878 = vcmp.eq.f32.partialorder %v2877, 8.507059e+37
        %v2879 = vand.u32 %v2400, 2147483648
        %v2880 = vor.u32 1.1754944e-38, %v2879
        %v2881 = vsel %vm2878, %v2880, %v2876
        %v2882 = vmul.f32 1.0, %v2881
        %v2883 = vrcp.pop %v2401
        %v2884 = vmul.f32 %v2401, %v2883
        %v2885 = vsub.f32 1.0, %v2884
        %v2886 = vmul.f32 %v2883, %v2885
        %v2887 = vadd.f32 %v2883, %v2886
        %vm2888 = vweird.f32 %v2401
        %vm2889 = vweird.f32 %v2883
        %vm2890 = vmor %vm2888, %vm2889
        %v2891 = vsel %vm2890, %v2883, %v2887
        %v2892 = vand.u32 2147483647, %v2401
        %vm2893 = vcmp.eq.f32.partialorder %v2892, 8.507059e+37
        %v2894 = vand.u32 %v2401, 2147483648
        %v2895 = vor.u32 1.1754944e-38, %v2894
        %v2896 = vsel %vm2893, %v2895, %v2891
        %v2897 = vmul.f32 1.0, %v2896
        %v2898 = vrcp.pop %v2402
        %v2899 = vmul.f32 %v2402, %v2898
        %v2900 = vsub.f32 1.0, %v2899
        %v2901 = vmul.f32 %v2898, %v2900
        %v2902 = vadd.f32 %v2898, %v2901
        %vm2903 = vweird.f32 %v2402
        %vm2904 = vweird.f32 %v2898
        %vm2905 = vmor %vm2903, %vm2904
        %v2906 = vsel %vm2905, %v2898, %v2902
        %v2907 = vand.u32 2147483647, %v2402
        %vm2908 = vcmp.eq.f32.partialorder %v2907, 8.507059e+37
        %v2909 = vand.u32 %v2402, 2147483648
        %v2910 = vor.u32 1.1754944e-38, %v2909
        %v2911 = vsel %vm2908, %v2910, %v2906
        %v2912 = vmul.f32 1.0, %v2911
        %v2913 = vrcp.pop %v2403
        %v2914 = vmul.f32 %v2403, %v2913
        %v2915 = vsub.f32 1.0, %v2914
        %v2916 = vmul.f32 %v2913, %v2915
        %v2917 = vadd.f32 %v2913, %v2916
        %vm2918 = vweird.f32 %v2403
        %vm2919 = vweird.f32 %v2913
        %vm2920 = vmor %vm2918, %vm2919
        %v2921 = vsel %vm2920, %v2913, %v2917
        %v2922 = vand.u32 2147483647, %v2403
        %vm2923 = vcmp.eq.f32.partialorder %v2922, 8.507059e+37
        %v2924 = vand.u32 %v2403, 2147483648
        %v2925 = vor.u32 1.1754944e-38, %v2924
        %v2926 = vsel %vm2923, %v2925, %v2921
        %v2927 = vmul.f32 1.0, %v2926
        %v2928 = vrcp.pop %v2404
        %v2929 = vmul.f32 %v2404, %v2928
        %v2930 = vsub.f32 1.0, %v2929
        %v2931 = vmul.f32 %v2928, %v2930
        %v2932 = vadd.f32 %v2928, %v2931
        %vm2933 = vweird.f32 %v2404
        %vm2934 = vweird.f32 %v2928
        %vm2935 = vmor %vm2933, %vm2934
        %v2936 = vsel %vm2935, %v2928, %v2932
        %v2937 = vand.u32 2147483647, %v2404
        %vm2938 = vcmp.eq.f32.partialorder %v2937, 8.507059e+37
        %v2939 = vand.u32 %v2404, 2147483648
        %v2940 = vor.u32 1.1754944e-38, %v2939
        %v2941 = vsel %vm2938, %v2940, %v2936
        %v2942 = vmul.f32 1.0, %v2941
        %v2943 = vrcp.pop %v2405
        %v2944 = vmul.f32 %v2405, %v2943
        %v2945 = vsub.f32 1.0, %v2944
        %v2946 = vmul.f32 %v2943, %v2945
        %v2947 = vadd.f32 %v2943, %v2946
        %vm2948 = vweird.f32 %v2405
        %vm2949 = vweird.f32 %v2943
        %vm2950 = vmor %vm2948, %vm2949
        %v2951 = vsel %vm2950, %v2943, %v2947
        %v2952 = vand.u32 2147483647, %v2405
        %vm2953 = vcmp.eq.f32.partialorder %v2952, 8.507059e+37
        %v2954 = vand.u32 %v2405, 2147483648
        %v2955 = vor.u32 1.1754944e-38, %v2954
        %v2956 = vsel %vm2953, %v2955, %v2951
        %v2957 = vmul.f32 1.0, %v2956
        %v2958 = vrcp.pop %v2406
        %v2959 = vmul.f32 %v2406, %v2958
        %v2960 = vsub.f32 1.0, %v2959
        %v2961 = vmul.f32 %v2958, %v2960
        %v2962 = vadd.f32 %v2958, %v2961
        %vm2963 = vweird.f32 %v2406
        %vm2964 = vweird.f32 %v2958
        %vm2965 = vmor %vm2963, %vm2964
        %v2966 = vsel %vm2965, %v2958, %v2962
        %v2967 = vand.u32 2147483647, %v2406
        %vm2968 = vcmp.eq.f32.partialorder %v2967, 8.507059e+37
        %v2969 = vand.u32 %v2406, 2147483648
        %v2970 = vor.u32 1.1754944e-38, %v2969
        %v2971 = vsel %vm2968, %v2970, %v2966
        %v2972 = vmul.f32 1.0, %v2971
        %v2973 = vrcp.pop %v2407
        %v2974 = vmul.f32 %v2407, %v2973
        %v2975 = vsub.f32 1.0, %v2974
        %v2976 = vmul.f32 %v2973, %v2975
        %v2977 = vadd.f32 %v2973, %v2976
        %vm2978 = vweird.f32 %v2407
        %vm2979 = vweird.f32 %v2973
        %vm2980 = vmor %vm2978, %vm2979
        %v2981 = vsel %vm2980, %v2973, %v2977
        %v2982 = vand.u32 2147483647, %v2407
        %vm2983 = vcmp.eq.f32.partialorder %v2982, 8.507059e+37
        %v2984 = vand.u32 %v2407, 2147483648
        %v2985 = vor.u32 1.1754944e-38, %v2984
        %v2986 = vsel %vm2983, %v2985, %v2981
        %v2987 = vmul.f32 1.0, %v2986
        %v2988 = vrcp.pop %v2408
        %v2989 = vmul.f32 %v2408, %v2988
        %v2990 = vsub.f32 1.0, %v2989
        %v2991 = vmul.f32 %v2988, %v2990
        %v2992 = vadd.f32 %v2988, %v2991
        %vm2993 = vweird.f32 %v2408
        %vm2994 = vweird.f32 %v2988
        %vm2995 = vmor %vm2993, %vm2994
        %v2996 = vsel %vm2995, %v2988, %v2992
        %v2997 = vand.u32 2147483647, %v2408
        %vm2998 = vcmp.eq.f32.partialorder %v2997, 8.507059e+37
        %v2999 = vand.u32 %v2408, 2147483648
        %v3000 = vor.u32 1.1754944e-38, %v2999
        %v3001 = vsel %vm2998, %v3000, %v2996
        %v3002 = vmul.f32 1.0, %v3001
        %v3003 = vrcp.pop %v2409
        %v3004 = vmul.f32 %v2409, %v3003
        %v3005 = vsub.f32 1.0, %v3004
        %v3006 = vmul.f32 %v3003, %v3005
        %v3007 = vadd.f32 %v3003, %v3006
        %vm3008 = vweird.f32 %v2409
        %vm3009 = vweird.f32 %v3003
        %vm3010 = vmor %vm3008, %vm3009
        %v3011 = vsel %vm3010, %v3003, %v3007
        %v3012 = vand.u32 2147483647, %v2409
        %vm3013 = vcmp.eq.f32.partialorder %v3012, 8.507059e+37
        %v3014 = vand.u32 %v2409, 2147483648
        %v3015 = vor.u32 1.1754944e-38, %v3014
        %v3016 = vsel %vm3013, %v3015, %v3011
        %v3017 = vmul.f32 1.0, %v3016
        %v3018 = vrcp.pop %v2410
        %v3019 = vmul.f32 %v2410, %v3018
        %v3020 = vsub.f32 1.0, %v3019
        %v3021 = vmul.f32 %v3018, %v3020
        %v3022 = vadd.f32 %v3018, %v3021
        %vm3023 = vweird.f32 %v2410
        %vm3024 = vweird.f32 %v3018
        %vm3025 = vmor %vm3023, %vm3024
        %v3026 = vsel %vm3025, %v3018, %v3022
        %v3027 = vand.u32 2147483647, %v2410
        %vm3028 = vcmp.eq.f32.partialorder %v3027, 8.507059e+37
        %v3029 = vand.u32 %v2410, 2147483648
        %v3030 = vor.u32 1.1754944e-38, %v3029
        %v3031 = vsel %vm3028, %v3030, %v3026
        %v3032 = vmul.f32 1.0, %v3031
        %v3033 = vrcp.pop %v2411
        %v3034 = vmul.f32 %v2411, %v3033
        %v3035 = vsub.f32 1.0, %v3034
        %v3036 = vmul.f32 %v3033, %v3035
        %v3037 = vadd.f32 %v3033, %v3036
        %vm3038 = vweird.f32 %v2411
        %vm3039 = vweird.f32 %v3033
        %vm3040 = vmor %vm3038, %vm3039
        %v3041 = vsel %vm3040, %v3033, %v3037
        %v3042 = vand.u32 2147483647, %v2411
        %vm3043 = vcmp.eq.f32.partialorder %v3042, 8.507059e+37
        %v3044 = vand.u32 %v2411, 2147483648
        %v3045 = vor.u32 1.1754944e-38, %v3044
        %v3046 = vsel %vm3043, %v3045, %v3041
        %v3047 = vmul.f32 1.0, %v3046
        %v3048 = vrcp.pop %v2412
        %v3049 = vmul.f32 %v2412, %v3048
        %v3050 = vsub.f32 1.0, %v3049
        %v3051 = vmul.f32 %v3048, %v3050
        %v3052 = vadd.f32 %v3048, %v3051
        %vm3053 = vweird.f32 %v2412
        %vm3054 = vweird.f32 %v3048
        %vm3055 = vmor %vm3053, %vm3054
        %v3056 = vsel %vm3055, %v3048, %v3052
        %v3057 = vand.u32 2147483647, %v2412
        %vm3058 = vcmp.eq.f32.partialorder %v3057, 8.507059e+37
        %v3059 = vand.u32 %v2412, 2147483648
        %v3060 = vor.u32 1.1754944e-38, %v3059
        %v3061 = vsel %vm3058, %v3060, %v3056
        %v3062 = vmul.f32 1.0, %v3061
        %v3063 = vrcp.pop %v2413
        %v3064 = vmul.f32 %v2413, %v3063
        %v3065 = vsub.f32 1.0, %v3064
        %v3066 = vmul.f32 %v3063, %v3065
        %v3067 = vadd.f32 %v3063, %v3066
        %vm3068 = vweird.f32 %v2413
        %vm3069 = vweird.f32 %v3063
        %vm3070 = vmor %vm3068, %vm3069
        %v3071 = vsel %vm3070, %v3063, %v3067
        %v3072 = vand.u32 2147483647, %v2413
        %vm3073 = vcmp.eq.f32.partialorder %v3072, 8.507059e+37
        %v3074 = vand.u32 %v2413, 2147483648
        %v3075 = vor.u32 1.1754944e-38, %v3074
        %v3076 = vsel %vm3073, %v3075, %v3071
        %v3077 = vmul.f32 1.0, %v3076
        %v3078 = vrcp.pop %v2414
        %v3079 = vmul.f32 %v2414, %v3078
        %v3080 = vsub.f32 1.0, %v3079
        %v3081 = vmul.f32 %v3078, %v3080
        %v3082 = vadd.f32 %v3078, %v3081
        %vm3083 = vweird.f32 %v2414
        %vm3084 = vweird.f32 %v3078
        %vm3085 = vmor %vm3083, %vm3084
        %v3086 = vsel %vm3085, %v3078, %v3082
        %v3087 = vand.u32 2147483647, %v2414
        %vm3088 = vcmp.eq.f32.partialorder %v3087, 8.507059e+37
        %v3089 = vand.u32 %v2414, 2147483648
        %v3090 = vor.u32 1.1754944e-38, %v3089
        %v3091 = vsel %vm3088, %v3090, %v3086
        %v3092 = vmul.f32 1.0, %v3091
        %v3093 = vrcp.pop %v2415
        %v3094 = vmul.f32 %v2415, %v3093
        %v3095 = vsub.f32 1.0, %v3094
        %v3096 = vmul.f32 %v3093, %v3095
        %v3097 = vadd.f32 %v3093, %v3096
        %vm3098 = vweird.f32 %v2415
        %vm3099 = vweird.f32 %v3093
        %vm3100 = vmor %vm3098, %vm3099
        %v3101 = vsel %vm3100, %v3093, %v3097
        %v3102 = vand.u32 2147483647, %v2415
        %vm3103 = vcmp.eq.f32.partialorder %v3102, 8.507059e+37
        %v3104 = vand.u32 %v2415, 2147483648
        %v3105 = vor.u32 1.1754944e-38, %v3104
        %v3106 = vsel %vm3103, %v3105, %v3101
        %v3107 = vmul.f32 1.0, %v3106
        %v3108 = vrcp.pop %v2416
        %v3109 = vmul.f32 %v2416, %v3108
        %v3110 = vsub.f32 1.0, %v3109
        %v3111 = vmul.f32 %v3108, %v3110
        %v3112 = vadd.f32 %v3108, %v3111
        %vm3113 = vweird.f32 %v2416
        %vm3114 = vweird.f32 %v3108
        %vm3115 = vmor %vm3113, %vm3114
        %v3116 = vsel %vm3115, %v3108, %v3112
        %v3117 = vand.u32 2147483647, %v2416
        %vm3118 = vcmp.eq.f32.partialorder %v3117, 8.507059e+37
        %v3119 = vand.u32 %v2416, 2147483648
        %v3120 = vor.u32 1.1754944e-38, %v3119
        %v3121 = vsel %vm3118, %v3120, %v3116
        %v3122 = vmul.f32 1.0, %v3121
        %v3123 = vrcp.pop %v2417
        %v3124 = vmul.f32 %v2417, %v3123
        %v3125 = vsub.f32 1.0, %v3124
        %v3126 = vmul.f32 %v3123, %v3125
        %v3127 = vadd.f32 %v3123, %v3126
        %vm3128 = vweird.f32 %v2417
        %vm3129 = vweird.f32 %v3123
        %vm3130 = vmor %vm3128, %vm3129
        %v3131 = vsel %vm3130, %v3123, %v3127
        %v3132 = vand.u32 2147483647, %v2417
        %vm3133 = vcmp.eq.f32.partialorder %v3132, 8.507059e+37
        %v3134 = vand.u32 %v2417, 2147483648
        %v3135 = vor.u32 1.1754944e-38, %v3134
        %v3136 = vsel %vm3133, %v3135, %v3131
        %v3137 = vmul.f32 1.0, %v3136
        %v3138 = vtanh.pop %v2165
        %v3139 = vtanh.pop %v2169
        %v3140 = vtanh.pop %v2173
        %v3141 = vtanh.pop %v2177
        %v3142 = vtanh.pop %v2181
        %v3143 = vtanh.pop %v2185
        %v3144 = vtanh.pop %v2189
        %v3145 = vtanh.pop %v2193
        %v3146 = vtanh.pop %v2197
        %v3147 = vtanh.pop %v2201
        %v3148 = vtanh.pop %v2205
        %v3149 = vtanh.pop %v2209
        %v3150 = vtanh.pop %v2213
        %v3151 = vtanh.pop %v2217
        %v3152 = vtanh.pop %v2221
        %v3153 = vtanh.pop %v2225
        %v3154 = vmul.f32 %v2447, 0.0
        %v3155 = vmul.f32 %v2492, 0.0
        %v3156 = vmul.f32 %v2537, 0.0
        %v3157 = vmul.f32 %v2582, 0.0
        %v3158 = vmul.f32 %v2627, 0.0
        %v3159 = vmul.f32 %v2672, 0.0
        %v3160 = vmul.f32 %v2717, 0.0
        %v3161 = vmul.f32 %v2762, 0.0
        %v3162 = vmul.f32 %v2807, 0.0
        %v3163 = vmul.f32 %v2852, 0.0
        %v3164 = vmul.f32 %v2897, 0.0
        %v3165 = vmul.f32 %v2942, 0.0
        %v3166 = vmul.f32 %v2987, 0.0
        %v3167 = vmul.f32 %v3032, 0.0
        %v3168 = vmul.f32 %v3077, 0.0
        %v3169 = vmul.f32 %v3122, 0.0
        %v3170 = vmul.f32 %v2432, %v3138
        %v3171 = vmul.f32 %v2477, %v3139
        %v3172 = vmul.f32 %v2522, %v3140
        %v3173 = vmul.f32 %v2567, %v3141
        %v3174 = vmul.f32 %v2612, %v3142
        %v3175 = vmul.f32 %v2657, %v3143
        %v3176 = vmul.f32 %v2702, %v3144
        %v3177 = vmul.f32 %v2747, %v3145
        %v3178 = vmul.f32 %v2792, %v3146
        %v3179 = vmul.f32 %v2837, %v3147
        %v3180 = vmul.f32 %v2882, %v3148
        %v3181 = vmul.f32 %v2927, %v3149
        %v3182 = vmul.f32 %v2972, %v3150
        %v3183 = vmul.f32 %v3017, %v3151
        %v3184 = vmul.f32 %v3062, %v3152
        %v3185 = vmul.f32 %v3107, %v3153
        %v3186 = vadd.f32 %v3154, %v3170
        %v3187 = vadd.f32 %v3155, %v3171
        %v3188 = vadd.f32 %v3156, %v3172
        %v3189 = vadd.f32 %v3157, %v3173
        %v3190 = vadd.f32 %v3158, %v3174
        %v3191 = vadd.f32 %v3159, %v3175
        %v3192 = vadd.f32 %v3160, %v3176
        %v3193 = vadd.f32 %v3161, %v3177
        %v3194 = vadd.f32 %v3162, %v3178
        %v3195 = vadd.f32 %v3163, %v3179
        %v3196 = vadd.f32 %v3164, %v3180
        %v3197 = vadd.f32 %v3165, %v3181
        %v3198 = vadd.f32 %v3166, %v3182
        %v3199 = vadd.f32 %v3167, %v3183
        %v3200 = vadd.f32 %v3168, %v3184
        %v3201 = vadd.f32 %v3169, %v3185
        %v3202 = vtanh.pop %v3186
        %v3203 = vtanh.pop %v3187
        %v3204 = vtanh.pop %v3188
        %v3205 = vtanh.pop %v3189
        %v3206 = vtanh.pop %v3190
        %v3207 = vtanh.pop %v3191
        %v3208 = vtanh.pop %v3192
        %v3209 = vtanh.pop %v3193
        %v3210 = vtanh.pop %v3194
        %v3211 = vtanh.pop %v3195
        %v3212 = vtanh.pop %v3196
        %v3213 = vtanh.pop %v3197
        %v3214 = vtanh.pop %v3198
        %v3215 = vtanh.pop %v3199
        %v3216 = vtanh.pop %v3200
        %v3217 = vtanh.pop %v3201
        %v3218 = vmul.f32 %v2462, %v3202
        %v3219 = vmul.f32 %v2507, %v3203
        %v3220 = vmul.f32 %v2552, %v3204
        %v3221 = vmul.f32 %v2597, %v3205
        %v3222 = vmul.f32 %v2642, %v3206
        %v3223 = vmul.f32 %v2687, %v3207
        %v3224 = vmul.f32 %v2732, %v3208
        %v3225 = vmul.f32 %v2777, %v3209
        %v3226 = vmul.f32 %v2822, %v3210
        %v3227 = vmul.f32 %v2867, %v3211
        %v3228 = vmul.f32 %v2912, %v3212
        %v3229 = vmul.f32 %v2957, %v3213
        %v3230 = vmul.f32 %v3002, %v3214
        %v3231 = vmul.f32 %v3047, %v3215
        %v3232 = vmul.f32 %v3092, %v3216
        %v3233 = vmul.f32 %v3137, %v3217
        %v3234 = vpack.c.bf16 %v3219, %v3218
        %v3235 = vpack.c.bf16 %v3221, %v3220
        %v3236 = vpack.c.bf16 %v3223, %v3222
        %v3237 = vpack.c.bf16 %v3225, %v3224
        %v3238 = vpack.c.bf16 %v3227, %v3226
        %v3239 = vpack.c.bf16 %v3229, %v3228
        %v3240 = vpack.c.bf16 %v3231, %v3230
        %v3241 = vpack.c.bf16 %v3233, %v3232
        %3242 = vmatpush.bf16.msra.mxu0 %v1930
        %3243 = vmatpush.bf16.msra.mxu0 %v1926
        %3244 = vmatpush.bf16.msra.mxu0 %v1922
        %3245 = vmatpush.bf16.msra.mxu0 %v1918
        %3246 = vmatpush.bf16.msra.mxu0 %v1914
        %3247 = vmatpush.bf16.msra.mxu0 %v1910
        %3248 = vmatpush.bf16.msra.mxu0 %v1906
        %3249 = vmatpush.bf16.msra.mxu0 %v1902
        %3250 = vmatmul.bf16.gmra.mxu0 %v3234
        %v3251 = vpop.f32.mrf.mxu0
        %v3252 = vadd.f32 0.0, %v3251
        %v3253 = vpop.f32.mrf.mxu0
        %v3254 = vadd.f32 0.0, %v3253
        %3255 = vmatmul.bf16.gmra.mxu0 %v3235
        %v3256 = vpop.f32.mrf.mxu0
        %v3257 = vadd.f32 0.0, %v3256
        %v3258 = vpop.f32.mrf.mxu0
        %v3259 = vadd.f32 0.0, %v3258
        %3260 = vmatmul.bf16.gmra.mxu0 %v3236
        %v3261 = vpop.f32.mrf.mxu0
        %v3262 = vadd.f32 0.0, %v3261
        %v3263 = vpop.f32.mrf.mxu0
        %v3264 = vadd.f32 0.0, %v3263
        %3265 = vmatmul.bf16.gmra.mxu0 %v3237
        %v3266 = vpop.f32.mrf.mxu0
        %v3267 = vadd.f32 0.0, %v3266
        %v3268 = vpop.f32.mrf.mxu0
        %v3269 = vadd.f32 0.0, %v3268
        %3270 = vmatmul.bf16.gmra.mxu0 %v3238
        %v3271 = vpop.f32.mrf.mxu0
        %v3272 = vadd.f32 0.0, %v3271
        %v3273 = vpop.f32.mrf.mxu0
        %v3274 = vadd.f32 0.0, %v3273
        %3275 = vmatmul.bf16.gmra.mxu0 %v3239
        %v3276 = vpop.f32.mrf.mxu0
        %v3277 = vadd.f32 0.0, %v3276
        %v3278 = vpop.f32.mrf.mxu0
        %v3279 = vadd.f32 0.0, %v3278
        %3280 = vmatmul.bf16.gmra.mxu0 %v3240
        %v3281 = vpop.f32.mrf.mxu0
        %v3282 = vadd.f32 0.0, %v3281
        %v3283 = vpop.f32.mrf.mxu0
        %v3284 = vadd.f32 0.0, %v3283
        %3285 = vmatmul.bf16.gmra.mxu0 %v3241
        %v3286 = vpop.f32.mrf.mxu0
        %v3287 = vadd.f32 0.0, %v3286
        %v3288 = vpop.f32.mrf.mxu0
        %v3289 = vadd.f32 0.0, %v3288
        %3290 = vdwg.mxu0
        %3291 = vmatpush.bf16.msra.mxu0 %v1931
        %3292 = vmatpush.bf16.msra.mxu0 %v1927
        %3293 = vmatpush.bf16.msra.mxu0 %v1923
        %3294 = vmatpush.bf16.msra.mxu0 %v1919
        %3295 = vmatpush.bf16.msra.mxu0 %v1915
        %3296 = vmatpush.bf16.msra.mxu0 %v1911
        %3297 = vmatpush.bf16.msra.mxu0 %v1907
        %3298 = vmatpush.bf16.msra.mxu0 %v1903
        %3299 = vmatmul.bf16.gmra.mxu0 %v3234
        %v3300 = vpop.f32.mrf.mxu0
        %v3301 = vadd.f32 0.0, %v3300
        %v3302 = vpop.f32.mrf.mxu0
        %v3303 = vadd.f32 0.0, %v3302
        %3304 = vmatmul.bf16.gmra.mxu0 %v3235
        %v3305 = vpop.f32.mrf.mxu0
        %v3306 = vadd.f32 0.0, %v3305
        %v3307 = vpop.f32.mrf.mxu0
        %v3308 = vadd.f32 0.0, %v3307
        %3309 = vmatmul.bf16.gmra.mxu0 %v3236
        %v3310 = vpop.f32.mrf.mxu0
        %v3311 = vadd.f32 0.0, %v3310
        %v3312 = vpop.f32.mrf.mxu0
        %v3313 = vadd.f32 0.0, %v3312
        %3314 = vmatmul.bf16.gmra.mxu0 %v3237
        %v3315 = vpop.f32.mrf.mxu0
        %v3316 = vadd.f32 0.0, %v3315
        %v3317 = vpop.f32.mrf.mxu0
        %v3318 = vadd.f32 0.0, %v3317
        %3319 = vmatmul.bf16.gmra.mxu0 %v3238
        %v3320 = vpop.f32.mrf.mxu0
        %v3321 = vadd.f32 0.0, %v3320
        %v3322 = vpop.f32.mrf.mxu0
        %v3323 = vadd.f32 0.0, %v3322
        %3324 = vmatmul.bf16.gmra.mxu0 %v3239
        %v3325 = vpop.f32.mrf.mxu0
        %v3326 = vadd.f32 0.0, %v3325
        %v3327 = vpop.f32.mrf.mxu0
        %v3328 = vadd.f32 0.0, %v3327
        %3329 = vmatmul.bf16.gmra.mxu0 %v3240
        %v3330 = vpop.f32.mrf.mxu0
        %v3331 = vadd.f32 0.0, %v3330
        %v3332 = vpop.f32.mrf.mxu0
        %v3333 = vadd.f32 0.0, %v3332
        %3334 = vmatmul.bf16.gmra.mxu0 %v3241
        %v3335 = vpop.f32.mrf.mxu0
        %v3336 = vadd.f32 0.0, %v3335
        %v3337 = vpop.f32.mrf.mxu0
        %v3338 = vadd.f32 0.0, %v3337
        %3339 = vdwg.mxu0
        %3340 = vmatpush.bf16.msra.mxu0 %v1932
        %3341 = vmatpush.bf16.msra.mxu0 %v1928
        %3342 = vmatpush.bf16.msra.mxu0 %v1924
        %3343 = vmatpush.bf16.msra.mxu0 %v1920
        %3344 = vmatpush.bf16.msra.mxu0 %v1916
        %3345 = vmatpush.bf16.msra.mxu0 %v1912
        %3346 = vmatpush.bf16.msra.mxu0 %v1908
        %3347 = vmatpush.bf16.msra.mxu0 %v1904
        %3348 = vmatmul.bf16.gmra.mxu0 %v3234
        %v3349 = vpop.f32.mrf.mxu0
        %v3350 = vadd.f32 0.0, %v3349
        %v3351 = vpop.f32.mrf.mxu0
        %v3352 = vadd.f32 0.0, %v3351
        %3353 = vmatmul.bf16.gmra.mxu0 %v3235
        %v3354 = vpop.f32.mrf.mxu0
        %v3355 = vadd.f32 0.0, %v3354
        %v3356 = vpop.f32.mrf.mxu0
        %v3357 = vadd.f32 0.0, %v3356
        %3358 = vmatmul.bf16.gmra.mxu0 %v3236
        %v3359 = vpop.f32.mrf.mxu0
        %v3360 = vadd.f32 0.0, %v3359
        %v3361 = vpop.f32.mrf.mxu0
        %v3362 = vadd.f32 0.0, %v3361
        %3363 = vmatmul.bf16.gmra.mxu0 %v3237
        %v3364 = vpop.f32.mrf.mxu0
        %v3365 = vadd.f32 0.0, %v3364
        %v3366 = vpop.f32.mrf.mxu0
        %v3367 = vadd.f32 0.0, %v3366
        %3368 = vmatmul.bf16.gmra.mxu0 %v3238
        %v3369 = vpop.f32.mrf.mxu0
        %v3370 = vadd.f32 0.0, %v3369
        %v3371 = vpop.f32.mrf.mxu0
        %v3372 = vadd.f32 0.0, %v3371
        %3373 = vmatmul.bf16.gmra.mxu0 %v3239
        %v3374 = vpop.f32.mrf.mxu0
        %v3375 = vadd.f32 0.0, %v3374
        %v3376 = vpop.f32.mrf.mxu0
        %v3377 = vadd.f32 0.0, %v3376
        %3378 = vmatmul.bf16.gmra.mxu0 %v3240
        %v3379 = vpop.f32.mrf.mxu0
        %v3380 = vadd.f32 0.0, %v3379
        %v3381 = vpop.f32.mrf.mxu0
        %v3382 = vadd.f32 0.0, %v3381
        %3383 = vmatmul.bf16.gmra.mxu0 %v3241
        %v3384 = vpop.f32.mrf.mxu0
        %v3385 = vadd.f32 0.0, %v3384
        %v3386 = vpop.f32.mrf.mxu0
        %v3387 = vadd.f32 0.0, %v3386
        %3388 = vdwg.mxu0
        %3389 = vmatpush.bf16.msra.mxu0 %v1933
        %3390 = vmatpush.bf16.msra.mxu0 %v1929
        %3391 = vmatpush.bf16.msra.mxu0 %v1925
        %3392 = vmatpush.bf16.msra.mxu0 %v1921
        %3393 = vmatpush.bf16.msra.mxu0 %v1917
        %3394 = vmatpush.bf16.msra.mxu0 %v1913
        %3395 = vmatpush.bf16.msra.mxu0 %v1909
        %3396 = vmatpush.bf16.msra.mxu0 %v1905
        %3397 = vmatmul.bf16.gmra.mxu0 %v3234
        %v3398 = vpop.f32.mrf.mxu0
        %v3399 = vadd.f32 0.0, %v3398
        %v3400 = vpop.f32.mrf.mxu0
        %v3401 = vadd.f32 0.0, %v3400
        %3402 = vmatmul.bf16.gmra.mxu0 %v3235
        %v3403 = vpop.f32.mrf.mxu0
        %v3404 = vadd.f32 0.0, %v3403
        %v3405 = vpop.f32.mrf.mxu0
        %v3406 = vadd.f32 0.0, %v3405
        %3407 = vmatmul.bf16.gmra.mxu0 %v3236
        %v3408 = vpop.f32.mrf.mxu0
        %v3409 = vadd.f32 0.0, %v3408
        %v3410 = vpop.f32.mrf.mxu0
        %v3411 = vadd.f32 0.0, %v3410
        %3412 = vmatmul.bf16.gmra.mxu0 %v3237
        %v3413 = vpop.f32.mrf.mxu0
        %v3414 = vadd.f32 0.0, %v3413
        %v3415 = vpop.f32.mrf.mxu0
        %v3416 = vadd.f32 0.0, %v3415
        %3417 = vmatmul.bf16.gmra.mxu0 %v3238
        %v3418 = vpop.f32.mrf.mxu0
        %v3419 = vadd.f32 0.0, %v3418
        %v3420 = vpop.f32.mrf.mxu0
        %v3421 = vadd.f32 0.0, %v3420
        %3422 = vmatmul.bf16.gmra.mxu0 %v3239
        %v3423 = vpop.f32.mrf.mxu0
        %v3424 = vadd.f32 0.0, %v3423
        %v3425 = vpop.f32.mrf.mxu0
        %v3426 = vadd.f32 0.0, %v3425
        %3427 = vmatmul.bf16.gmra.mxu0 %v3240
        %v3428 = vpop.f32.mrf.mxu0
        %v3429 = vadd.f32 0.0, %v3428
        %v3430 = vpop.f32.mrf.mxu0
        %v3431 = vadd.f32 0.0, %v3430
        %3432 = vmatmul.bf16.gmra.mxu0 %v3241
        %v3433 = vpop.f32.mrf.mxu0
        %v3434 = vadd.f32 0.0, %v3433
        %v3435 = vpop.f32.mrf.mxu0
        %v3436 = vadd.f32 0.0, %v3435
        %3437 = vdwg.mxu0
        %v3438 = vadd.f32 %v1201, %v3252
        %v3439 = vadd.f32 %v1379, %v3301
        %v3440 = vadd.f32 %v1557, %v3350
        %v3441 = vadd.f32 %v1735, %v3399
        %v3442 = vadd.f32 %v1203, %v3254
        %v3443 = vadd.f32 %v1381, %v3303
        %v3444 = vadd.f32 %v1559, %v3352
        %v3445 = vadd.f32 %v1737, %v3401
        %v3446 = vadd.f32 %v1206, %v3257
        %v3447 = vadd.f32 %v1384, %v3306
        %v3448 = vadd.f32 %v1562, %v3355
        %v3449 = vadd.f32 %v1740, %v3404
        %v3450 = vadd.f32 %v1208, %v3259
        %v3451 = vadd.f32 %v1386, %v3308
        %v3452 = vadd.f32 %v1564, %v3357
        %v3453 = vadd.f32 %v1742, %v3406
        %v3454 = vadd.f32 %v1211, %v3262
        %v3455 = vadd.f32 %v1389, %v3311
        %v3456 = vadd.f32 %v1567, %v3360
        %v3457 = vadd.f32 %v1745, %v3409
        %v3458 = vadd.f32 %v1213, %v3264
        %v3459 = vadd.f32 %v1391, %v3313
        %v3460 = vadd.f32 %v1569, %v3362
        %v3461 = vadd.f32 %v1747, %v3411
        %v3462 = vadd.f32 %v1216, %v3267
        %v3463 = vadd.f32 %v1394, %v3316
        %v3464 = vadd.f32 %v1572, %v3365
        %v3465 = vadd.f32 %v1750, %v3414
        %v3466 = vadd.f32 %v1218, %v3269
        %v3467 = vadd.f32 %v1396, %v3318
        %v3468 = vadd.f32 %v1574, %v3367
        %v3469 = vadd.f32 %v1752, %v3416
        %v3470 = vadd.f32 %v1221, %v3272
        %v3471 = vadd.f32 %v1399, %v3321
        %v3472 = vadd.f32 %v1577, %v3370
        %v3473 = vadd.f32 %v1755, %v3419
        %v3474 = vadd.f32 %v1223, %v3274
        %v3475 = vadd.f32 %v1401, %v3323
        %v3476 = vadd.f32 %v1579, %v3372
        %v3477 = vadd.f32 %v1757, %v3421
        %v3478 = vadd.f32 %v1226, %v3277
        %v3479 = vadd.f32 %v1404, %v3326
        %v3480 = vadd.f32 %v1582, %v3375
        %v3481 = vadd.f32 %v1760, %v3424
        %v3482 = vadd.f32 %v1228, %v3279
        %v3483 = vadd.f32 %v1406, %v3328
        %v3484 = vadd.f32 %v1584, %v3377
        %v3485 = vadd.f32 %v1762, %v3426
        %v3486 = vadd.f32 %v1231, %v3282
        %v3487 = vadd.f32 %v1409, %v3331
        %v3488 = vadd.f32 %v1587, %v3380
        %v3489 = vadd.f32 %v1765, %v3429
        %v3490 = vadd.f32 %v1233, %v3284
        %v3491 = vadd.f32 %v1411, %v3333
        %v3492 = vadd.f32 %v1589, %v3382
        %v3493 = vadd.f32 %v1767, %v3431
        %v3494 = vadd.f32 %v1236, %v3287
        %v3495 = vadd.f32 %v1414, %v3336
        %v3496 = vadd.f32 %v1592, %v3385
        %v3497 = vadd.f32 %v1770, %v3434
        %v3498 = vadd.f32 %v1238, %v3289
        %v3499 = vadd.f32 %v1416, %v3338
        %v3500 = vadd.f32 %v1594, %v3387
        %v3501 = vadd.f32 %v1772, %v3436
        %v3502 = vxor.u32 %v3438, 2147483648
        %v3503 = vxor.u32 %v3439, 2147483648
        %v3504 = vxor.u32 %v3440, 2147483648
        %v3505 = vxor.u32 %v3442, 2147483648
        %v3506 = vxor.u32 %v3443, 2147483648
        %v3507 = vxor.u32 %v3444, 2147483648
        %v3508 = vxor.u32 %v3446, 2147483648
        %v3509 = vxor.u32 %v3447, 2147483648
        %v3510 = vxor.u32 %v3448, 2147483648
        %v3511 = vxor.u32 %v3450, 2147483648
        %v3512 = vxor.u32 %v3451, 2147483648
        %v3513 = vxor.u32 %v3452, 2147483648
        %v3514 = vxor.u32 %v3454, 2147483648
        %v3515 = vxor.u32 %v3455, 2147483648
        %v3516 = vxor.u32 %v3456, 2147483648
        %v3517 = vxor.u32 %v3458, 2147483648
        %v3518 = vxor.u32 %v3459, 2147483648
        %v3519 = vxor.u32 %v3460, 2147483648
        %v3520 = vxor.u32 %v3462, 2147483648
        %v3521 = vxor.u32 %v3463, 2147483648
        %v3522 = vxor.u32 %v3464, 2147483648
        %v3523 = vxor.u32 %v3466, 2147483648
        %v3524 = vxor.u32 %v3467, 2147483648
        %v3525 = vxor.u32 %v3468, 2147483648
        %v3526 = vxor.u32 %v3470, 2147483648
        %v3527 = vxor.u32 %v3471, 2147483648
        %v3528 = vxor.u32 %v3472, 2147483648
        %v3529 = vxor.u32 %v3474, 2147483648
        %v3530 = vxor.u32 %v3475, 2147483648
        %v3531 = vxor.u32 %v3476, 2147483648
        %v3532 = vxor.u32 %v3478, 2147483648
        %v3533 = vxor.u32 %v3479, 2147483648
        %v3534 = vxor.u32 %v3480, 2147483648
        %v3535 = vxor.u32 %v3482, 2147483648
        %v3536 = vxor.u32 %v3483, 2147483648
        %v3537 = vxor.u32 %v3484, 2147483648
        %v3538 = vxor.u32 %v3486, 2147483648
        %v3539 = vxor.u32 %v3487, 2147483648
        %v3540 = vxor.u32 %v3488, 2147483648
        %v3541 = vxor.u32 %v3490, 2147483648
        %v3542 = vxor.u32 %v3491, 2147483648
        %v3543 = vxor.u32 %v3492, 2147483648
        %v3544 = vxor.u32 %v3494, 2147483648
        %v3545 = vxor.u32 %v3495, 2147483648
        %v3546 = vxor.u32 %v3496, 2147483648
        %v3547 = vxor.u32 %v3498, 2147483648
        %v3548 = vxor.u32 %v3499, 2147483648
        %v3549 = vxor.u32 %v3500, 2147483648
        %v3550 = vmul.f32 %v3502, 1.442695
        %v3551 = vpow.pop %v3550
        %v3552 = vmul.f32 %v3503, 1.442695
        %v3553 = vpow.pop %v3552
        %v3554 = vmul.f32 %v3504, 1.442695
        %v3555 = vpow.pop %v3554
        %v3556 = vmul.f32 %v3505, 1.442695
        %v3557 = vpow.pop %v3556
        %v3558 = vmul.f32 %v3506, 1.442695
        %v3559 = vpow.pop %v3558
        %v3560 = vmul.f32 %v3507, 1.442695
        %v3561 = vpow.pop %v3560
        %v3562 = vmul.f32 %v3508, 1.442695
        %v3563 = vpow.pop %v3562
        %v3564 = vmul.f32 %v3509, 1.442695
        %v3565 = vpow.pop %v3564
        %v3566 = vmul.f32 %v3510, 1.442695
        %v3567 = vpow.pop %v3566
        %v3568 = vmul.f32 %v3511, 1.442695
        %v3569 = vpow.pop %v3568
        %v3570 = vmul.f32 %v3512, 1.442695
        %v3571 = vpow.pop %v3570
        %v3572 = vmul.f32 %v3513, 1.442695
        %v3573 = vpow.pop %v3572
        %v3574 = vmul.f32 %v3514, 1.442695
        %v3575 = vpow.pop %v3574
        %v3576 = vmul.f32 %v3515, 1.442695
        %v3577 = vpow.pop %v3576
        %v3578 = vmul.f32 %v3516, 1.442695
        %v3579 = vpow.pop %v3578
        %v3580 = vmul.f32 %v3517, 1.442695
        %v3581 = vpow.pop %v3580
        %v3582 = vmul.f32 %v3518, 1.442695
        %v3583 = vpow.pop %v3582
        %v3584 = vmul.f32 %v3519, 1.442695
        %v3585 = vpow.pop %v3584
        %v3586 = vmul.f32 %v3520, 1.442695
        %v3587 = vpow.pop %v3586
        %v3588 = vmul.f32 %v3521, 1.442695
        %v3589 = vpow.pop %v3588
        %v3590 = vmul.f32 %v3522, 1.442695
        %v3591 = vpow.pop %v3590
        %v3592 = vmul.f32 %v3523, 1.442695
        %v3593 = vpow.pop %v3592
        %v3594 = vmul.f32 %v3524, 1.442695
        %v3595 = vpow.pop %v3594
        %v3596 = vmul.f32 %v3525, 1.442695
        %v3597 = vpow.pop %v3596
        %v3598 = vmul.f32 %v3526, 1.442695
        %v3599 = vpow.pop %v3598
        %v3600 = vmul.f32 %v3527, 1.442695
        %v3601 = vpow.pop %v3600
        %v3602 = vmul.f32 %v3528, 1.442695
        %v3603 = vpow.pop %v3602
        %v3604 = vmul.f32 %v3529, 1.442695
        %v3605 = vpow.pop %v3604
        %v3606 = vmul.f32 %v3530, 1.442695
        %v3607 = vpow.pop %v3606
        %v3608 = vmul.f32 %v3531, 1.442695
        %v3609 = vpow.pop %v3608
        %v3610 = vmul.f32 %v3532, 1.442695
        %v3611 = vpow.pop %v3610
        %v3612 = vmul.f32 %v3533, 1.442695
        %v3613 = vpow.pop %v3612
        %v3614 = vmul.f32 %v3534, 1.442695
        %v3615 = vpow.pop %v3614
        %v3616 = vmul.f32 %v3535, 1.442695
        %v3617 = vpow.pop %v3616
        %v3618 = vmul.f32 %v3536, 1.442695
        %v3619 = vpow.pop %v3618
        %v3620 = vmul.f32 %v3537, 1.442695
        %v3621 = vpow.pop %v3620
        %v3622 = vmul.f32 %v3538, 1.442695
        %v3623 = vpow.pop %v3622
        %v3624 = vmul.f32 %v3539, 1.442695
        %v3625 = vpow.pop %v3624
        %v3626 = vmul.f32 %v3540, 1.442695
        %v3627 = vpow.pop %v3626
        %v3628 = vmul.f32 %v3541, 1.442695
        %v3629 = vpow.pop %v3628
        %v3630 = vmul.f32 %v3542, 1.442695
        %v3631 = vpow.pop %v3630
        %v3632 = vmul.f32 %v3543, 1.442695
        %v3633 = vpow.pop %v3632
        %v3634 = vmul.f32 %v3544, 1.442695
        %v3635 = vpow.pop %v3634
        %v3636 = vmul.f32 %v3545, 1.442695
        %v3637 = vpow.pop %v3636
        %v3638 = vmul.f32 %v3546, 1.442695
        %v3639 = vpow.pop %v3638
        %v3640 = vmul.f32 %v3547, 1.442695
        %v3641 = vpow.pop %v3640
        %v3642 = vmul.f32 %v3548, 1.442695
        %v3643 = vpow.pop %v3642
        %v3644 = vmul.f32 %v3549, 1.442695
        %v3645 = vpow.pop %v3644
        %v3646 = vadd.f32 %v3551, 1.0
        %v3647 = vadd.f32 %v3553, 1.0
        %v3648 = vadd.f32 %v3555, 1.0
        %v3649 = vadd.f32 %v3557, 1.0
        %v3650 = vadd.f32 %v3559, 1.0
        %v3651 = vadd.f32 %v3561, 1.0
        %v3652 = vadd.f32 %v3563, 1.0
        %v3653 = vadd.f32 %v3565, 1.0
        %v3654 = vadd.f32 %v3567, 1.0
        %v3655 = vadd.f32 %v3569, 1.0
        %v3656 = vadd.f32 %v3571, 1.0
        %v3657 = vadd.f32 %v3573, 1.0
        %v3658 = vadd.f32 %v3575, 1.0
        %v3659 = vadd.f32 %v3577, 1.0
        %v3660 = vadd.f32 %v3579, 1.0
        %v3661 = vadd.f32 %v3581, 1.0
        %v3662 = vadd.f32 %v3583, 1.0
        %v3663 = vadd.f32 %v3585, 1.0
        %v3664 = vadd.f32 %v3587, 1.0
        %v3665 = vadd.f32 %v3589, 1.0
        %v3666 = vadd.f32 %v3591, 1.0
        %v3667 = vadd.f32 %v3593, 1.0
        %v3668 = vadd.f32 %v3595, 1.0
        %v3669 = vadd.f32 %v3597, 1.0
        %v3670 = vadd.f32 %v3599, 1.0
        %v3671 = vadd.f32 %v3601, 1.0
        %v3672 = vadd.f32 %v3603, 1.0
        %v3673 = vadd.f32 %v3605, 1.0
        %v3674 = vadd.f32 %v3607, 1.0
        %v3675 = vadd.f32 %v3609, 1.0
        %v3676 = vadd.f32 %v3611, 1.0
        %v3677 = vadd.f32 %v3613, 1.0
        %v3678 = vadd.f32 %v3615, 1.0
        %v3679 = vadd.f32 %v3617, 1.0
        %v3680 = vadd.f32 %v3619, 1.0
        %v3681 = vadd.f32 %v3621, 1.0
        %v3682 = vadd.f32 %v3623, 1.0
        %v3683 = vadd.f32 %v3625, 1.0
        %v3684 = vadd.f32 %v3627, 1.0
        %v3685 = vadd.f32 %v3629, 1.0
        %v3686 = vadd.f32 %v3631, 1.0
        %v3687 = vadd.f32 %v3633, 1.0
        %v3688 = vadd.f32 %v3635, 1.0
        %v3689 = vadd.f32 %v3637, 1.0
        %v3690 = vadd.f32 %v3639, 1.0
        %v3691 = vadd.f32 %v3641, 1.0
        %v3692 = vadd.f32 %v3643, 1.0
        %v3693 = vadd.f32 %v3645, 1.0
        %v3694 = vrcp.pop %v3646
        %v3695 = vmul.f32 %v3646, %v3694
        %v3696 = vsub.f32 1.0, %v3695
        %v3697 = vmul.f32 %v3694, %v3696
        %v3698 = vadd.f32 %v3694, %v3697
        %vm3699 = vweird.f32 %v3646
        %vm3700 = vweird.f32 %v3694
        %vm3701 = vmor %vm3699, %vm3700
        %v3702 = vsel %vm3701, %v3694, %v3698
        %v3703 = vand.u32 2147483647, %v3646
        %vm3704 = vcmp.eq.f32.partialorder %v3703, 8.507059e+37
        %v3705 = vand.u32 %v3646, 2147483648
        %v3706 = vor.u32 1.1754944e-38, %v3705
        %v3707 = vsel %vm3704, %v3706, %v3702
        %v3708 = vmul.f32 1.0, %v3707
        %v3709 = vrcp.pop %v3647
        %v3710 = vmul.f32 %v3647, %v3709
        %v3711 = vsub.f32 1.0, %v3710
        %v3712 = vmul.f32 %v3709, %v3711
        %v3713 = vadd.f32 %v3709, %v3712
        %vm3714 = vweird.f32 %v3647
        %vm3715 = vweird.f32 %v3709
        %vm3716 = vmor %vm3714, %vm3715
        %v3717 = vsel %vm3716, %v3709, %v3713
        %v3718 = vand.u32 2147483647, %v3647
        %vm3719 = vcmp.eq.f32.partialorder %v3718, 8.507059e+37
        %v3720 = vand.u32 %v3647, 2147483648
        %v3721 = vor.u32 1.1754944e-38, %v3720
        %v3722 = vsel %vm3719, %v3721, %v3717
        %v3723 = vmul.f32 1.0, %v3722
        %v3724 = vrcp.pop %v3648
        %v3725 = vmul.f32 %v3648, %v3724
        %v3726 = vsub.f32 1.0, %v3725
        %v3727 = vmul.f32 %v3724, %v3726
        %v3728 = vadd.f32 %v3724, %v3727
        %vm3729 = vweird.f32 %v3648
        %vm3730 = vweird.f32 %v3724
        %vm3731 = vmor %vm3729, %vm3730
        %v3732 = vsel %vm3731, %v3724, %v3728
        %v3733 = vand.u32 2147483647, %v3648
        %vm3734 = vcmp.eq.f32.partialorder %v3733, 8.507059e+37
        %v3735 = vand.u32 %v3648, 2147483648
        %v3736 = vor.u32 1.1754944e-38, %v3735
        %v3737 = vsel %vm3734, %v3736, %v3732
        %v3738 = vmul.f32 1.0, %v3737
        %v3739 = vrcp.pop %v3649
        %v3740 = vmul.f32 %v3649, %v3739
        %v3741 = vsub.f32 1.0, %v3740
        %v3742 = vmul.f32 %v3739, %v3741
        %v3743 = vadd.f32 %v3739, %v3742
        %vm3744 = vweird.f32 %v3649
        %vm3745 = vweird.f32 %v3739
        %vm3746 = vmor %vm3744, %vm3745
        %v3747 = vsel %vm3746, %v3739, %v3743
        %v3748 = vand.u32 2147483647, %v3649
        %vm3749 = vcmp.eq.f32.partialorder %v3748, 8.507059e+37
        %v3750 = vand.u32 %v3649, 2147483648
        %v3751 = vor.u32 1.1754944e-38, %v3750
        %v3752 = vsel %vm3749, %v3751, %v3747
        %v3753 = vmul.f32 1.0, %v3752
        %v3754 = vrcp.pop %v3650
        %v3755 = vmul.f32 %v3650, %v3754
        %v3756 = vsub.f32 1.0, %v3755
        %v3757 = vmul.f32 %v3754, %v3756
        %v3758 = vadd.f32 %v3754, %v3757
        %vm3759 = vweird.f32 %v3650
        %vm3760 = vweird.f32 %v3754
        %vm3761 = vmor %vm3759, %vm3760
        %v3762 = vsel %vm3761, %v3754, %v3758
        %v3763 = vand.u32 2147483647, %v3650
        %vm3764 = vcmp.eq.f32.partialorder %v3763, 8.507059e+37
        %v3765 = vand.u32 %v3650, 2147483648
        %v3766 = vor.u32 1.1754944e-38, %v3765
        %v3767 = vsel %vm3764, %v3766, %v3762
        %v3768 = vmul.f32 1.0, %v3767
        %v3769 = vrcp.pop %v3651
        %v3770 = vmul.f32 %v3651, %v3769
        %v3771 = vsub.f32 1.0, %v3770
        %v3772 = vmul.f32 %v3769, %v3771
        %v3773 = vadd.f32 %v3769, %v3772
        %vm3774 = vweird.f32 %v3651
        %vm3775 = vweird.f32 %v3769
        %vm3776 = vmor %vm3774, %vm3775
        %v3777 = vsel %vm3776, %v3769, %v3773
        %v3778 = vand.u32 2147483647, %v3651
        %vm3779 = vcmp.eq.f32.partialorder %v3778, 8.507059e+37
        %v3780 = vand.u32 %v3651, 2147483648
        %v3781 = vor.u32 1.1754944e-38, %v3780
        %v3782 = vsel %vm3779, %v3781, %v3777
        %v3783 = vmul.f32 1.0, %v3782
        %v3784 = vrcp.pop %v3652
        %v3785 = vmul.f32 %v3652, %v3784
        %v3786 = vsub.f32 1.0, %v3785
        %v3787 = vmul.f32 %v3784, %v3786
        %v3788 = vadd.f32 %v3784, %v3787
        %vm3789 = vweird.f32 %v3652
        %vm3790 = vweird.f32 %v3784
        %vm3791 = vmor %vm3789, %vm3790
        %v3792 = vsel %vm3791, %v3784, %v3788
        %v3793 = vand.u32 2147483647, %v3652
        %vm3794 = vcmp.eq.f32.partialorder %v3793, 8.507059e+37
        %v3795 = vand.u32 %v3652, 2147483648
        %v3796 = vor.u32 1.1754944e-38, %v3795
        %v3797 = vsel %vm3794, %v3796, %v3792
        %v3798 = vmul.f32 1.0, %v3797
        %v3799 = vrcp.pop %v3653
        %v3800 = vmul.f32 %v3653, %v3799
        %v3801 = vsub.f32 1.0, %v3800
        %v3802 = vmul.f32 %v3799, %v3801
        %v3803 = vadd.f32 %v3799, %v3802
        %vm3804 = vweird.f32 %v3653
        %vm3805 = vweird.f32 %v3799
        %vm3806 = vmor %vm3804, %vm3805
        %v3807 = vsel %vm3806, %v3799, %v3803
        %v3808 = vand.u32 2147483647, %v3653
        %vm3809 = vcmp.eq.f32.partialorder %v3808, 8.507059e+37
        %v3810 = vand.u32 %v3653, 2147483648
        %v3811 = vor.u32 1.1754944e-38, %v3810
        %v3812 = vsel %vm3809, %v3811, %v3807
        %v3813 = vmul.f32 1.0, %v3812
        %v3814 = vrcp.pop %v3654
        %v3815 = vmul.f32 %v3654, %v3814
        %v3816 = vsub.f32 1.0, %v3815
        %v3817 = vmul.f32 %v3814, %v3816
        %v3818 = vadd.f32 %v3814, %v3817
        %vm3819 = vweird.f32 %v3654
        %vm3820 = vweird.f32 %v3814
        %vm3821 = vmor %vm3819, %vm3820
        %v3822 = vsel %vm3821, %v3814, %v3818
        %v3823 = vand.u32 2147483647, %v3654
        %vm3824 = vcmp.eq.f32.partialorder %v3823, 8.507059e+37
        %v3825 = vand.u32 %v3654, 2147483648
        %v3826 = vor.u32 1.1754944e-38, %v3825
        %v3827 = vsel %vm3824, %v3826, %v3822
        %v3828 = vmul.f32 1.0, %v3827
        %v3829 = vrcp.pop %v3655
        %v3830 = vmul.f32 %v3655, %v3829
        %v3831 = vsub.f32 1.0, %v3830
        %v3832 = vmul.f32 %v3829, %v3831
        %v3833 = vadd.f32 %v3829, %v3832
        %vm3834 = vweird.f32 %v3655
        %vm3835 = vweird.f32 %v3829
        %vm3836 = vmor %vm3834, %vm3835
        %v3837 = vsel %vm3836, %v3829, %v3833
        %v3838 = vand.u32 2147483647, %v3655
        %vm3839 = vcmp.eq.f32.partialorder %v3838, 8.507059e+37
        %v3840 = vand.u32 %v3655, 2147483648
        %v3841 = vor.u32 1.1754944e-38, %v3840
        %v3842 = vsel %vm3839, %v3841, %v3837
        %v3843 = vmul.f32 1.0, %v3842
        %v3844 = vrcp.pop %v3656
        %v3845 = vmul.f32 %v3656, %v3844
        %v3846 = vsub.f32 1.0, %v3845
        %v3847 = vmul.f32 %v3844, %v3846
        %v3848 = vadd.f32 %v3844, %v3847
        %vm3849 = vweird.f32 %v3656
        %vm3850 = vweird.f32 %v3844
        %vm3851 = vmor %vm3849, %vm3850
        %v3852 = vsel %vm3851, %v3844, %v3848
        %v3853 = vand.u32 2147483647, %v3656
        %vm3854 = vcmp.eq.f32.partialorder %v3853, 8.507059e+37
        %v3855 = vand.u32 %v3656, 2147483648
        %v3856 = vor.u32 1.1754944e-38, %v3855
        %v3857 = vsel %vm3854, %v3856, %v3852
        %v3858 = vmul.f32 1.0, %v3857
        %v3859 = vrcp.pop %v3657
        %v3860 = vmul.f32 %v3657, %v3859
        %v3861 = vsub.f32 1.0, %v3860
        %v3862 = vmul.f32 %v3859, %v3861
        %v3863 = vadd.f32 %v3859, %v3862
        %vm3864 = vweird.f32 %v3657
        %vm3865 = vweird.f32 %v3859
        %vm3866 = vmor %vm3864, %vm3865
        %v3867 = vsel %vm3866, %v3859, %v3863
        %v3868 = vand.u32 2147483647, %v3657
        %vm3869 = vcmp.eq.f32.partialorder %v3868, 8.507059e+37
        %v3870 = vand.u32 %v3657, 2147483648
        %v3871 = vor.u32 1.1754944e-38, %v3870
        %v3872 = vsel %vm3869, %v3871, %v3867
        %v3873 = vmul.f32 1.0, %v3872
        %v3874 = vrcp.pop %v3658
        %v3875 = vmul.f32 %v3658, %v3874
        %v3876 = vsub.f32 1.0, %v3875
        %v3877 = vmul.f32 %v3874, %v3876
        %v3878 = vadd.f32 %v3874, %v3877
        %vm3879 = vweird.f32 %v3658
        %vm3880 = vweird.f32 %v3874
        %vm3881 = vmor %vm3879, %vm3880
        %v3882 = vsel %vm3881, %v3874, %v3878
        %v3883 = vand.u32 2147483647, %v3658
        %vm3884 = vcmp.eq.f32.partialorder %v3883, 8.507059e+37
        %v3885 = vand.u32 %v3658, 2147483648
        %v3886 = vor.u32 1.1754944e-38, %v3885
        %v3887 = vsel %vm3884, %v3886, %v3882
        %v3888 = vmul.f32 1.0, %v3887
        %v3889 = vrcp.pop %v3659
        %v3890 = vmul.f32 %v3659, %v3889
        %v3891 = vsub.f32 1.0, %v3890
        %v3892 = vmul.f32 %v3889, %v3891
        %v3893 = vadd.f32 %v3889, %v3892
        %vm3894 = vweird.f32 %v3659
        %vm3895 = vweird.f32 %v3889
        %vm3896 = vmor %vm3894, %vm3895
        %v3897 = vsel %vm3896, %v3889, %v3893
        %v3898 = vand.u32 2147483647, %v3659
        %vm3899 = vcmp.eq.f32.partialorder %v3898, 8.507059e+37
        %v3900 = vand.u32 %v3659, 2147483648
        %v3901 = vor.u32 1.1754944e-38, %v3900
        %v3902 = vsel %vm3899, %v3901, %v3897
        %v3903 = vmul.f32 1.0, %v3902
        %v3904 = vrcp.pop %v3660
        %v3905 = vmul.f32 %v3660, %v3904
        %v3906 = vsub.f32 1.0, %v3905
        %v3907 = vmul.f32 %v3904, %v3906
        %v3908 = vadd.f32 %v3904, %v3907
        %vm3909 = vweird.f32 %v3660
        %vm3910 = vweird.f32 %v3904
        %vm3911 = vmor %vm3909, %vm3910
        %v3912 = vsel %vm3911, %v3904, %v3908
        %v3913 = vand.u32 2147483647, %v3660
        %vm3914 = vcmp.eq.f32.partialorder %v3913, 8.507059e+37
        %v3915 = vand.u32 %v3660, 2147483648
        %v3916 = vor.u32 1.1754944e-38, %v3915
        %v3917 = vsel %vm3914, %v3916, %v3912
        %v3918 = vmul.f32 1.0, %v3917
        %v3919 = vrcp.pop %v3661
        %v3920 = vmul.f32 %v3661, %v3919
        %v3921 = vsub.f32 1.0, %v3920
        %v3922 = vmul.f32 %v3919, %v3921
        %v3923 = vadd.f32 %v3919, %v3922
        %vm3924 = vweird.f32 %v3661
        %vm3925 = vweird.f32 %v3919
        %vm3926 = vmor %vm3924, %vm3925
        %v3927 = vsel %vm3926, %v3919, %v3923
        %v3928 = vand.u32 2147483647, %v3661
        %vm3929 = vcmp.eq.f32.partialorder %v3928, 8.507059e+37
        %v3930 = vand.u32 %v3661, 2147483648
        %v3931 = vor.u32 1.1754944e-38, %v3930
        %v3932 = vsel %vm3929, %v3931, %v3927
        %v3933 = vmul.f32 1.0, %v3932
        %v3934 = vrcp.pop %v3662
        %v3935 = vmul.f32 %v3662, %v3934
        %v3936 = vsub.f32 1.0, %v3935
        %v3937 = vmul.f32 %v3934, %v3936
        %v3938 = vadd.f32 %v3934, %v3937
        %vm3939 = vweird.f32 %v3662
        %vm3940 = vweird.f32 %v3934
        %vm3941 = vmor %vm3939, %vm3940
        %v3942 = vsel %vm3941, %v3934, %v3938
        %v3943 = vand.u32 2147483647, %v3662
        %vm3944 = vcmp.eq.f32.partialorder %v3943, 8.507059e+37
        %v3945 = vand.u32 %v3662, 2147483648
        %v3946 = vor.u32 1.1754944e-38, %v3945
        %v3947 = vsel %vm3944, %v3946, %v3942
        %v3948 = vmul.f32 1.0, %v3947
        %v3949 = vrcp.pop %v3663
        %v3950 = vmul.f32 %v3663, %v3949
        %v3951 = vsub.f32 1.0, %v3950
        %v3952 = vmul.f32 %v3949, %v3951
        %v3953 = vadd.f32 %v3949, %v3952
        %vm3954 = vweird.f32 %v3663
        %vm3955 = vweird.f32 %v3949
        %vm3956 = vmor %vm3954, %vm3955
        %v3957 = vsel %vm3956, %v3949, %v3953
        %v3958 = vand.u32 2147483647, %v3663
        %vm3959 = vcmp.eq.f32.partialorder %v3958, 8.507059e+37
        %v3960 = vand.u32 %v3663, 2147483648
        %v3961 = vor.u32 1.1754944e-38, %v3960
        %v3962 = vsel %vm3959, %v3961, %v3957
        %v3963 = vmul.f32 1.0, %v3962
        %v3964 = vrcp.pop %v3664
        %v3965 = vmul.f32 %v3664, %v3964
        %v3966 = vsub.f32 1.0, %v3965
        %v3967 = vmul.f32 %v3964, %v3966
        %v3968 = vadd.f32 %v3964, %v3967
        %vm3969 = vweird.f32 %v3664
        %vm3970 = vweird.f32 %v3964
        %vm3971 = vmor %vm3969, %vm3970
        %v3972 = vsel %vm3971, %v3964, %v3968
        %v3973 = vand.u32 2147483647, %v3664
        %vm3974 = vcmp.eq.f32.partialorder %v3973, 8.507059e+37
        %v3975 = vand.u32 %v3664, 2147483648
        %v3976 = vor.u32 1.1754944e-38, %v3975
        %v3977 = vsel %vm3974, %v3976, %v3972
        %v3978 = vmul.f32 1.0, %v3977
        %v3979 = vrcp.pop %v3665
        %v3980 = vmul.f32 %v3665, %v3979
        %v3981 = vsub.f32 1.0, %v3980
        %v3982 = vmul.f32 %v3979, %v3981
        %v3983 = vadd.f32 %v3979, %v3982
        %vm3984 = vweird.f32 %v3665
        %vm3985 = vweird.f32 %v3979
        %vm3986 = vmor %vm3984, %vm3985
        %v3987 = vsel %vm3986, %v3979, %v3983
        %v3988 = vand.u32 2147483647, %v3665
        %vm3989 = vcmp.eq.f32.partialorder %v3988, 8.507059e+37
        %v3990 = vand.u32 %v3665, 2147483648
        %v3991 = vor.u32 1.1754944e-38, %v3990
        %v3992 = vsel %vm3989, %v3991, %v3987
        %v3993 = vmul.f32 1.0, %v3992
        %v3994 = vrcp.pop %v3666
        %v3995 = vmul.f32 %v3666, %v3994
        %v3996 = vsub.f32 1.0, %v3995
        %v3997 = vmul.f32 %v3994, %v3996
        %v3998 = vadd.f32 %v3994, %v3997
        %vm3999 = vweird.f32 %v3666
        %vm4000 = vweird.f32 %v3994
        %vm4001 = vmor %vm3999, %vm4000
        %v4002 = vsel %vm4001, %v3994, %v3998
        %v4003 = vand.u32 2147483647, %v3666
        %vm4004 = vcmp.eq.f32.partialorder %v4003, 8.507059e+37
        %v4005 = vand.u32 %v3666, 2147483648
        %v4006 = vor.u32 1.1754944e-38, %v4005
        %v4007 = vsel %vm4004, %v4006, %v4002
        %v4008 = vmul.f32 1.0, %v4007
        %v4009 = vrcp.pop %v3667
        %v4010 = vmul.f32 %v3667, %v4009
        %v4011 = vsub.f32 1.0, %v4010
        %v4012 = vmul.f32 %v4009, %v4011
        %v4013 = vadd.f32 %v4009, %v4012
        %vm4014 = vweird.f32 %v3667
        %vm4015 = vweird.f32 %v4009
        %vm4016 = vmor %vm4014, %vm4015
        %v4017 = vsel %vm4016, %v4009, %v4013
        %v4018 = vand.u32 2147483647, %v3667
        %vm4019 = vcmp.eq.f32.partialorder %v4018, 8.507059e+37
        %v4020 = vand.u32 %v3667, 2147483648
        %v4021 = vor.u32 1.1754944e-38, %v4020
        %v4022 = vsel %vm4019, %v4021, %v4017
        %v4023 = vmul.f32 1.0, %v4022
        %v4024 = vrcp.pop %v3668
        %v4025 = vmul.f32 %v3668, %v4024
        %v4026 = vsub.f32 1.0, %v4025
        %v4027 = vmul.f32 %v4024, %v4026
        %v4028 = vadd.f32 %v4024, %v4027
        %vm4029 = vweird.f32 %v3668
        %vm4030 = vweird.f32 %v4024
        %vm4031 = vmor %vm4029, %vm4030
        %v4032 = vsel %vm4031, %v4024, %v4028
        %v4033 = vand.u32 2147483647, %v3668
        %vm4034 = vcmp.eq.f32.partialorder %v4033, 8.507059e+37
        %v4035 = vand.u32 %v3668, 2147483648
        %v4036 = vor.u32 1.1754944e-38, %v4035
        %v4037 = vsel %vm4034, %v4036, %v4032
        %v4038 = vmul.f32 1.0, %v4037
        %v4039 = vrcp.pop %v3669
        %v4040 = vmul.f32 %v3669, %v4039
        %v4041 = vsub.f32 1.0, %v4040
        %v4042 = vmul.f32 %v4039, %v4041
        %v4043 = vadd.f32 %v4039, %v4042
        %vm4044 = vweird.f32 %v3669
        %vm4045 = vweird.f32 %v4039
        %vm4046 = vmor %vm4044, %vm4045
        %v4047 = vsel %vm4046, %v4039, %v4043
        %v4048 = vand.u32 2147483647, %v3669
        %vm4049 = vcmp.eq.f32.partialorder %v4048, 8.507059e+37
        %v4050 = vand.u32 %v3669, 2147483648
        %v4051 = vor.u32 1.1754944e-38, %v4050
        %v4052 = vsel %vm4049, %v4051, %v4047
        %v4053 = vmul.f32 1.0, %v4052
        %v4054 = vrcp.pop %v3670
        %v4055 = vmul.f32 %v3670, %v4054
        %v4056 = vsub.f32 1.0, %v4055
        %v4057 = vmul.f32 %v4054, %v4056
        %v4058 = vadd.f32 %v4054, %v4057
        %vm4059 = vweird.f32 %v3670
        %vm4060 = vweird.f32 %v4054
        %vm4061 = vmor %vm4059, %vm4060
        %v4062 = vsel %vm4061, %v4054, %v4058
        %v4063 = vand.u32 2147483647, %v3670
        %vm4064 = vcmp.eq.f32.partialorder %v4063, 8.507059e+37
        %v4065 = vand.u32 %v3670, 2147483648
        %v4066 = vor.u32 1.1754944e-38, %v4065
        %v4067 = vsel %vm4064, %v4066, %v4062
        %v4068 = vmul.f32 1.0, %v4067
        %v4069 = vrcp.pop %v3671
        %v4070 = vmul.f32 %v3671, %v4069
        %v4071 = vsub.f32 1.0, %v4070
        %v4072 = vmul.f32 %v4069, %v4071
        %v4073 = vadd.f32 %v4069, %v4072
        %vm4074 = vweird.f32 %v3671
        %vm4075 = vweird.f32 %v4069
        %vm4076 = vmor %vm4074, %vm4075
        %v4077 = vsel %vm4076, %v4069, %v4073
        %v4078 = vand.u32 2147483647, %v3671
        %vm4079 = vcmp.eq.f32.partialorder %v4078, 8.507059e+37
        %v4080 = vand.u32 %v3671, 2147483648
        %v4081 = vor.u32 1.1754944e-38, %v4080
        %v4082 = vsel %vm4079, %v4081, %v4077
        %v4083 = vmul.f32 1.0, %v4082
        %v4084 = vrcp.pop %v3672
        %v4085 = vmul.f32 %v3672, %v4084
        %v4086 = vsub.f32 1.0, %v4085
        %v4087 = vmul.f32 %v4084, %v4086
        %v4088 = vadd.f32 %v4084, %v4087
        %vm4089 = vweird.f32 %v3672
        %vm4090 = vweird.f32 %v4084
        %vm4091 = vmor %vm4089, %vm4090
        %v4092 = vsel %vm4091, %v4084, %v4088
        %v4093 = vand.u32 2147483647, %v3672
        %vm4094 = vcmp.eq.f32.partialorder %v4093, 8.507059e+37
        %v4095 = vand.u32 %v3672, 2147483648
        %v4096 = vor.u32 1.1754944e-38, %v4095
        %v4097 = vsel %vm4094, %v4096, %v4092
        %v4098 = vmul.f32 1.0, %v4097
        %v4099 = vrcp.pop %v3673
        %v4100 = vmul.f32 %v3673, %v4099
        %v4101 = vsub.f32 1.0, %v4100
        %v4102 = vmul.f32 %v4099, %v4101
        %v4103 = vadd.f32 %v4099, %v4102
        %vm4104 = vweird.f32 %v3673
        %vm4105 = vweird.f32 %v4099
        %vm4106 = vmor %vm4104, %vm4105
        %v4107 = vsel %vm4106, %v4099, %v4103
        %v4108 = vand.u32 2147483647, %v3673
        %vm4109 = vcmp.eq.f32.partialorder %v4108, 8.507059e+37
        %v4110 = vand.u32 %v3673, 2147483648
        %v4111 = vor.u32 1.1754944e-38, %v4110
        %v4112 = vsel %vm4109, %v4111, %v4107
        %v4113 = vmul.f32 1.0, %v4112
        %v4114 = vrcp.pop %v3674
        %v4115 = vmul.f32 %v3674, %v4114
        %v4116 = vsub.f32 1.0, %v4115
        %v4117 = vmul.f32 %v4114, %v4116
        %v4118 = vadd.f32 %v4114, %v4117
        %vm4119 = vweird.f32 %v3674
        %vm4120 = vweird.f32 %v4114
        %vm4121 = vmor %vm4119, %vm4120
        %v4122 = vsel %vm4121, %v4114, %v4118
        %v4123 = vand.u32 2147483647, %v3674
        %vm4124 = vcmp.eq.f32.partialorder %v4123, 8.507059e+37
        %v4125 = vand.u32 %v3674, 2147483648
        %v4126 = vor.u32 1.1754944e-38, %v4125
        %v4127 = vsel %vm4124, %v4126, %v4122
        %v4128 = vmul.f32 1.0, %v4127
        %v4129 = vrcp.pop %v3675
        %v4130 = vmul.f32 %v3675, %v4129
        %v4131 = vsub.f32 1.0, %v4130
        %v4132 = vmul.f32 %v4129, %v4131
        %v4133 = vadd.f32 %v4129, %v4132
        %vm4134 = vweird.f32 %v3675
        %vm4135 = vweird.f32 %v4129
        %vm4136 = vmor %vm4134, %vm4135
        %v4137 = vsel %vm4136, %v4129, %v4133
        %v4138 = vand.u32 2147483647, %v3675
        %vm4139 = vcmp.eq.f32.partialorder %v4138, 8.507059e+37
        %v4140 = vand.u32 %v3675, 2147483648
        %v4141 = vor.u32 1.1754944e-38, %v4140
        %v4142 = vsel %vm4139, %v4141, %v4137
        %v4143 = vmul.f32 1.0, %v4142
        %v4144 = vrcp.pop %v3676
        %v4145 = vmul.f32 %v3676, %v4144
        %v4146 = vsub.f32 1.0, %v4145
        %v4147 = vmul.f32 %v4144, %v4146
        %v4148 = vadd.f32 %v4144, %v4147
        %vm4149 = vweird.f32 %v3676
        %vm4150 = vweird.f32 %v4144
        %vm4151 = vmor %vm4149, %vm4150
        %v4152 = vsel %vm4151, %v4144, %v4148
        %v4153 = vand.u32 2147483647, %v3676
        %vm4154 = vcmp.eq.f32.partialorder %v4153, 8.507059e+37
        %v4155 = vand.u32 %v3676, 2147483648
        %v4156 = vor.u32 1.1754944e-38, %v4155
        %v4157 = vsel %vm4154, %v4156, %v4152
        %v4158 = vmul.f32 1.0, %v4157
        %v4159 = vrcp.pop %v3677
        %v4160 = vmul.f32 %v3677, %v4159
        %v4161 = vsub.f32 1.0, %v4160
        %v4162 = vmul.f32 %v4159, %v4161
        %v4163 = vadd.f32 %v4159, %v4162
        %vm4164 = vweird.f32 %v3677
        %vm4165 = vweird.f32 %v4159
        %vm4166 = vmor %vm4164, %vm4165
        %v4167 = vsel %vm4166, %v4159, %v4163
        %v4168 = vand.u32 2147483647, %v3677
        %vm4169 = vcmp.eq.f32.partialorder %v4168, 8.507059e+37
        %v4170 = vand.u32 %v3677, 2147483648
        %v4171 = vor.u32 1.1754944e-38, %v4170
        %v4172 = vsel %vm4169, %v4171, %v4167
        %v4173 = vmul.f32 1.0, %v4172
        %v4174 = vrcp.pop %v3678
        %v4175 = vmul.f32 %v3678, %v4174
        %v4176 = vsub.f32 1.0, %v4175
        %v4177 = vmul.f32 %v4174, %v4176
        %v4178 = vadd.f32 %v4174, %v4177
        %vm4179 = vweird.f32 %v3678
        %vm4180 = vweird.f32 %v4174
        %vm4181 = vmor %vm4179, %vm4180
        %v4182 = vsel %vm4181, %v4174, %v4178
        %v4183 = vand.u32 2147483647, %v3678
        %vm4184 = vcmp.eq.f32.partialorder %v4183, 8.507059e+37
        %v4185 = vand.u32 %v3678, 2147483648
        %v4186 = vor.u32 1.1754944e-38, %v4185
        %v4187 = vsel %vm4184, %v4186, %v4182
        %v4188 = vmul.f32 1.0, %v4187
        %v4189 = vrcp.pop %v3679
        %v4190 = vmul.f32 %v3679, %v4189
        %v4191 = vsub.f32 1.0, %v4190
        %v4192 = vmul.f32 %v4189, %v4191
        %v4193 = vadd.f32 %v4189, %v4192
        %vm4194 = vweird.f32 %v3679
        %vm4195 = vweird.f32 %v4189
        %vm4196 = vmor %vm4194, %vm4195
        %v4197 = vsel %vm4196, %v4189, %v4193
        %v4198 = vand.u32 2147483647, %v3679
        %vm4199 = vcmp.eq.f32.partialorder %v4198, 8.507059e+37
        %v4200 = vand.u32 %v3679, 2147483648
        %v4201 = vor.u32 1.1754944e-38, %v4200
        %v4202 = vsel %vm4199, %v4201, %v4197
        %v4203 = vmul.f32 1.0, %v4202
        %v4204 = vrcp.pop %v3680
        %v4205 = vmul.f32 %v3680, %v4204
        %v4206 = vsub.f32 1.0, %v4205
        %v4207 = vmul.f32 %v4204, %v4206
        %v4208 = vadd.f32 %v4204, %v4207
        %vm4209 = vweird.f32 %v3680
        %vm4210 = vweird.f32 %v4204
        %vm4211 = vmor %vm4209, %vm4210
        %v4212 = vsel %vm4211, %v4204, %v4208
        %v4213 = vand.u32 2147483647, %v3680
        %vm4214 = vcmp.eq.f32.partialorder %v4213, 8.507059e+37
        %v4215 = vand.u32 %v3680, 2147483648
        %v4216 = vor.u32 1.1754944e-38, %v4215
        %v4217 = vsel %vm4214, %v4216, %v4212
        %v4218 = vmul.f32 1.0, %v4217
        %v4219 = vrcp.pop %v3681
        %v4220 = vmul.f32 %v3681, %v4219
        %v4221 = vsub.f32 1.0, %v4220
        %v4222 = vmul.f32 %v4219, %v4221
        %v4223 = vadd.f32 %v4219, %v4222
        %vm4224 = vweird.f32 %v3681
        %vm4225 = vweird.f32 %v4219
        %vm4226 = vmor %vm4224, %vm4225
        %v4227 = vsel %vm4226, %v4219, %v4223
        %v4228 = vand.u32 2147483647, %v3681
        %vm4229 = vcmp.eq.f32.partialorder %v4228, 8.507059e+37
        %v4230 = vand.u32 %v3681, 2147483648
        %v4231 = vor.u32 1.1754944e-38, %v4230
        %v4232 = vsel %vm4229, %v4231, %v4227
        %v4233 = vmul.f32 1.0, %v4232
        %v4234 = vrcp.pop %v3682
        %v4235 = vmul.f32 %v3682, %v4234
        %v4236 = vsub.f32 1.0, %v4235
        %v4237 = vmul.f32 %v4234, %v4236
        %v4238 = vadd.f32 %v4234, %v4237
        %vm4239 = vweird.f32 %v3682
        %vm4240 = vweird.f32 %v4234
        %vm4241 = vmor %vm4239, %vm4240
        %v4242 = vsel %vm4241, %v4234, %v4238
        %v4243 = vand.u32 2147483647, %v3682
        %vm4244 = vcmp.eq.f32.partialorder %v4243, 8.507059e+37
        %v4245 = vand.u32 %v3682, 2147483648
        %v4246 = vor.u32 1.1754944e-38, %v4245
        %v4247 = vsel %vm4244, %v4246, %v4242
        %v4248 = vmul.f32 1.0, %v4247
        %v4249 = vrcp.pop %v3683
        %v4250 = vmul.f32 %v3683, %v4249
        %v4251 = vsub.f32 1.0, %v4250
        %v4252 = vmul.f32 %v4249, %v4251
        %v4253 = vadd.f32 %v4249, %v4252
        %vm4254 = vweird.f32 %v3683
        %vm4255 = vweird.f32 %v4249
        %vm4256 = vmor %vm4254, %vm4255
        %v4257 = vsel %vm4256, %v4249, %v4253
        %v4258 = vand.u32 2147483647, %v3683
        %vm4259 = vcmp.eq.f32.partialorder %v4258, 8.507059e+37
        %v4260 = vand.u32 %v3683, 2147483648
        %v4261 = vor.u32 1.1754944e-38, %v4260
        %v4262 = vsel %vm4259, %v4261, %v4257
        %v4263 = vmul.f32 1.0, %v4262
        %v4264 = vrcp.pop %v3684
        %v4265 = vmul.f32 %v3684, %v4264
        %v4266 = vsub.f32 1.0, %v4265
        %v4267 = vmul.f32 %v4264, %v4266
        %v4268 = vadd.f32 %v4264, %v4267
        %vm4269 = vweird.f32 %v3684
        %vm4270 = vweird.f32 %v4264
        %vm4271 = vmor %vm4269, %vm4270
        %v4272 = vsel %vm4271, %v4264, %v4268
        %v4273 = vand.u32 2147483647, %v3684
        %vm4274 = vcmp.eq.f32.partialorder %v4273, 8.507059e+37
        %v4275 = vand.u32 %v3684, 2147483648
        %v4276 = vor.u32 1.1754944e-38, %v4275
        %v4277 = vsel %vm4274, %v4276, %v4272
        %v4278 = vmul.f32 1.0, %v4277
        %v4279 = vrcp.pop %v3685
        %v4280 = vmul.f32 %v3685, %v4279
        %v4281 = vsub.f32 1.0, %v4280
        %v4282 = vmul.f32 %v4279, %v4281
        %v4283 = vadd.f32 %v4279, %v4282
        %vm4284 = vweird.f32 %v3685
        %vm4285 = vweird.f32 %v4279
        %vm4286 = vmor %vm4284, %vm4285
        %v4287 = vsel %vm4286, %v4279, %v4283
        %v4288 = vand.u32 2147483647, %v3685
        %vm4289 = vcmp.eq.f32.partialorder %v4288, 8.507059e+37
        %v4290 = vand.u32 %v3685, 2147483648
        %v4291 = vor.u32 1.1754944e-38, %v4290
        %v4292 = vsel %vm4289, %v4291, %v4287
        %v4293 = vmul.f32 1.0, %v4292
        %v4294 = vrcp.pop %v3686
        %v4295 = vmul.f32 %v3686, %v4294
        %v4296 = vsub.f32 1.0, %v4295
        %v4297 = vmul.f32 %v4294, %v4296
        %v4298 = vadd.f32 %v4294, %v4297
        %vm4299 = vweird.f32 %v3686
        %vm4300 = vweird.f32 %v4294
        %vm4301 = vmor %vm4299, %vm4300
        %v4302 = vsel %vm4301, %v4294, %v4298
        %v4303 = vand.u32 2147483647, %v3686
        %vm4304 = vcmp.eq.f32.partialorder %v4303, 8.507059e+37
        %v4305 = vand.u32 %v3686, 2147483648
        %v4306 = vor.u32 1.1754944e-38, %v4305
        %v4307 = vsel %vm4304, %v4306, %v4302
        %v4308 = vmul.f32 1.0, %v4307
        %v4309 = vrcp.pop %v3687
        %v4310 = vmul.f32 %v3687, %v4309
        %v4311 = vsub.f32 1.0, %v4310
        %v4312 = vmul.f32 %v4309, %v4311
        %v4313 = vadd.f32 %v4309, %v4312
        %vm4314 = vweird.f32 %v3687
        %vm4315 = vweird.f32 %v4309
        %vm4316 = vmor %vm4314, %vm4315
        %v4317 = vsel %vm4316, %v4309, %v4313
        %v4318 = vand.u32 2147483647, %v3687
        %vm4319 = vcmp.eq.f32.partialorder %v4318, 8.507059e+37
        %v4320 = vand.u32 %v3687, 2147483648
        %v4321 = vor.u32 1.1754944e-38, %v4320
        %v4322 = vsel %vm4319, %v4321, %v4317
        %v4323 = vmul.f32 1.0, %v4322
        %v4324 = vrcp.pop %v3688
        %v4325 = vmul.f32 %v3688, %v4324
        %v4326 = vsub.f32 1.0, %v4325
        %v4327 = vmul.f32 %v4324, %v4326
        %v4328 = vadd.f32 %v4324, %v4327
        %vm4329 = vweird.f32 %v3688
        %vm4330 = vweird.f32 %v4324
        %vm4331 = vmor %vm4329, %vm4330
        %v4332 = vsel %vm4331, %v4324, %v4328
        %v4333 = vand.u32 2147483647, %v3688
        %vm4334 = vcmp.eq.f32.partialorder %v4333, 8.507059e+37
        %v4335 = vand.u32 %v3688, 2147483648
        %v4336 = vor.u32 1.1754944e-38, %v4335
        %v4337 = vsel %vm4334, %v4336, %v4332
        %v4338 = vmul.f32 1.0, %v4337
        %v4339 = vrcp.pop %v3689
        %v4340 = vmul.f32 %v3689, %v4339
        %v4341 = vsub.f32 1.0, %v4340
        %v4342 = vmul.f32 %v4339, %v4341
        %v4343 = vadd.f32 %v4339, %v4342
        %vm4344 = vweird.f32 %v3689
        %vm4345 = vweird.f32 %v4339
        %vm4346 = vmor %vm4344, %vm4345
        %v4347 = vsel %vm4346, %v4339, %v4343
        %v4348 = vand.u32 2147483647, %v3689
        %vm4349 = vcmp.eq.f32.partialorder %v4348, 8.507059e+37
        %v4350 = vand.u32 %v3689, 2147483648
        %v4351 = vor.u32 1.1754944e-38, %v4350
        %v4352 = vsel %vm4349, %v4351, %v4347
        %v4353 = vmul.f32 1.0, %v4352
        %v4354 = vrcp.pop %v3690
        %v4355 = vmul.f32 %v3690, %v4354
        %v4356 = vsub.f32 1.0, %v4355
        %v4357 = vmul.f32 %v4354, %v4356
        %v4358 = vadd.f32 %v4354, %v4357
        %vm4359 = vweird.f32 %v3690
        %vm4360 = vweird.f32 %v4354
        %vm4361 = vmor %vm4359, %vm4360
        %v4362 = vsel %vm4361, %v4354, %v4358
        %v4363 = vand.u32 2147483647, %v3690
        %vm4364 = vcmp.eq.f32.partialorder %v4363, 8.507059e+37
        %v4365 = vand.u32 %v3690, 2147483648
        %v4366 = vor.u32 1.1754944e-38, %v4365
        %v4367 = vsel %vm4364, %v4366, %v4362
        %v4368 = vmul.f32 1.0, %v4367
        %v4369 = vrcp.pop %v3691
        %v4370 = vmul.f32 %v3691, %v4369
        %v4371 = vsub.f32 1.0, %v4370
        %v4372 = vmul.f32 %v4369, %v4371
        %v4373 = vadd.f32 %v4369, %v4372
        %vm4374 = vweird.f32 %v3691
        %vm4375 = vweird.f32 %v4369
        %vm4376 = vmor %vm4374, %vm4375
        %v4377 = vsel %vm4376, %v4369, %v4373
        %v4378 = vand.u32 2147483647, %v3691
        %vm4379 = vcmp.eq.f32.partialorder %v4378, 8.507059e+37
        %v4380 = vand.u32 %v3691, 2147483648
        %v4381 = vor.u32 1.1754944e-38, %v4380
        %v4382 = vsel %vm4379, %v4381, %v4377
        %v4383 = vmul.f32 1.0, %v4382
        %v4384 = vrcp.pop %v3692
        %v4385 = vmul.f32 %v3692, %v4384
        %v4386 = vsub.f32 1.0, %v4385
        %v4387 = vmul.f32 %v4384, %v4386
        %v4388 = vadd.f32 %v4384, %v4387
        %vm4389 = vweird.f32 %v3692
        %vm4390 = vweird.f32 %v4384
        %vm4391 = vmor %vm4389, %vm4390
        %v4392 = vsel %vm4391, %v4384, %v4388
        %v4393 = vand.u32 2147483647, %v3692
        %vm4394 = vcmp.eq.f32.partialorder %v4393, 8.507059e+37
        %v4395 = vand.u32 %v3692, 2147483648
        %v4396 = vor.u32 1.1754944e-38, %v4395
        %v4397 = vsel %vm4394, %v4396, %v4392
        %v4398 = vmul.f32 1.0, %v4397
        %v4399 = vrcp.pop %v3693
        %v4400 = vmul.f32 %v3693, %v4399
        %v4401 = vsub.f32 1.0, %v4400
        %v4402 = vmul.f32 %v4399, %v4401
        %v4403 = vadd.f32 %v4399, %v4402
        %vm4404 = vweird.f32 %v3693
        %vm4405 = vweird.f32 %v4399
        %vm4406 = vmor %vm4404, %vm4405
        %v4407 = vsel %vm4406, %v4399, %v4403
        %v4408 = vand.u32 2147483647, %v3693
        %vm4409 = vcmp.eq.f32.partialorder %v4408, 8.507059e+37
        %v4410 = vand.u32 %v3693, 2147483648
        %v4411 = vor.u32 1.1754944e-38, %v4410
        %v4412 = vsel %vm4409, %v4411, %v4407
        %v4413 = vmul.f32 1.0, %v4412
        %v4414 = vtanh.pop %v3441
        %v4415 = vtanh.pop %v3445
        %v4416 = vtanh.pop %v3449
        %v4417 = vtanh.pop %v3453
        %v4418 = vtanh.pop %v3457
        %v4419 = vtanh.pop %v3461
        %v4420 = vtanh.pop %v3465
        %v4421 = vtanh.pop %v3469
        %v4422 = vtanh.pop %v3473
        %v4423 = vtanh.pop %v3477
        %v4424 = vtanh.pop %v3481
        %v4425 = vtanh.pop %v3485
        %v4426 = vtanh.pop %v3489
        %v4427 = vtanh.pop %v3493
        %v4428 = vtanh.pop %v3497
        %v4429 = vtanh.pop %v3501
        %v4430 = vmul.f32 %v3723, %v3186
        %v4431 = vmul.f32 %v3768, %v3187
        %v4432 = vmul.f32 %v3813, %v3188
        %v4433 = vmul.f32 %v3858, %v3189
        %v4434 = vmul.f32 %v3903, %v3190
        %v4435 = vmul.f32 %v3948, %v3191
        %v4436 = vmul.f32 %v3993, %v3192
        %v4437 = vmul.f32 %v4038, %v3193
        %v4438 = vmul.f32 %v4083, %v3194
        %v4439 = vmul.f32 %v4128, %v3195
        %v4440 = vmul.f32 %v4173, %v3196
        %v4441 = vmul.f32 %v4218, %v3197
        %v4442 = vmul.f32 %v4263, %v3198
        %v4443 = vmul.f32 %v4308, %v3199
        %v4444 = vmul.f32 %v4353, %v3200
        %v4445 = vmul.f32 %v4398, %v3201
        %v4446 = vmul.f32 %v3708, %v4414
        %v4447 = vmul.f32 %v3753, %v4415
        %v4448 = vmul.f32 %v3798, %v4416
        %v4449 = vmul.f32 %v3843, %v4417
        %v4450 = vmul.f32 %v3888, %v4418
        %v4451 = vmul.f32 %v3933, %v4419
        %v4452 = vmul.f32 %v3978, %v4420
        %v4453 = vmul.f32 %v4023, %v4421
        %v4454 = vmul.f32 %v4068, %v4422
        %v4455 = vmul.f32 %v4113, %v4423
        %v4456 = vmul.f32 %v4158, %v4424
        %v4457 = vmul.f32 %v4203, %v4425
        %v4458 = vmul.f32 %v4248, %v4426
        %v4459 = vmul.f32 %v4293, %v4427
        %v4460 = vmul.f32 %v4338, %v4428
        %v4461 = vmul.f32 %v4383, %v4429
        %v4462 = vadd.f32 %v4430, %v4446
        %v4463 = vadd.f32 %v4431, %v4447
        %v4464 = vadd.f32 %v4432, %v4448
        %v4465 = vadd.f32 %v4433, %v4449
        %v4466 = vadd.f32 %v4434, %v4450
        %v4467 = vadd.f32 %v4435, %v4451
        %v4468 = vadd.f32 %v4436, %v4452
        %v4469 = vadd.f32 %v4437, %v4453
        %v4470 = vadd.f32 %v4438, %v4454
        %v4471 = vadd.f32 %v4439, %v4455
        %v4472 = vadd.f32 %v4440, %v4456
        %v4473 = vadd.f32 %v4441, %v4457
        %v4474 = vadd.f32 %v4442, %v4458
        %v4475 = vadd.f32 %v4443, %v4459
        %v4476 = vadd.f32 %v4444, %v4460
        %v4477 = vadd.f32 %v4445, %v4461
        %v4478 = vtanh.pop %v4462
        %v4479 = vtanh.pop %v4463
        %v4480 = vtanh.pop %v4464
        %v4481 = vtanh.pop %v4465
        %v4482 = vtanh.pop %v4466
        %v4483 = vtanh.pop %v4467
        %v4484 = vtanh.pop %v4468
        %v4485 = vtanh.pop %v4469
        %v4486 = vtanh.pop %v4470
        %v4487 = vtanh.pop %v4471
        %v4488 = vtanh.pop %v4472
        %v4489 = vtanh.pop %v4473
        %v4490 = vtanh.pop %v4474
        %v4491 = vtanh.pop %v4475
        %v4492 = vtanh.pop %v4476
        %v4493 = vtanh.pop %v4477
        %v4494 = vmul.f32 %v3738, %v4478
        %v4495 = vmul.f32 %v3783, %v4479
        %v4496 = vmul.f32 %v3828, %v4480
        %v4497 = vmul.f32 %v3873, %v4481
        %v4498 = vmul.f32 %v3918, %v4482
        %v4499 = vmul.f32 %v3963, %v4483
        %v4500 = vmul.f32 %v4008, %v4484
        %v4501 = vmul.f32 %v4053, %v4485
        %v4502 = vmul.f32 %v4098, %v4486
        %v4503 = vmul.f32 %v4143, %v4487
        %v4504 = vmul.f32 %v4188, %v4488
        %v4505 = vmul.f32 %v4233, %v4489
        %v4506 = vmul.f32 %v4278, %v4490
        %v4507 = vmul.f32 %v4323, %v4491
        %v4508 = vmul.f32 %v4368, %v4492
        %v4509 = vmul.f32 %v4413, %v4493
        %v4510 = vld [vmem:[%s527] sm:$0x1]
        %v4512 = vperm.slane %v4510, 0
        %v4514 = vadd.f32 %v4494, %v4512
        %v4515 = vadd.f32 %v4495, %v4512
        %v4516 = vadd.f32 %v4496, %v4512
        %v4517 = vadd.f32 %v4497, %v4512
        %v4518 = vadd.f32 %v4498, %v4512
        %v4519 = vadd.f32 %v4499, %v4512
        %v4520 = vadd.f32 %v4500, %v4512
        %v4521 = vadd.f32 %v4501, %v4512
        %v4522 = vadd.f32 %v4502, %v4512
        %v4523 = vadd.f32 %v4503, %v4512
        %v4524 = vadd.f32 %v4504, %v4512
        %v4525 = vadd.f32 %v4505, %v4512
        %v4526 = vadd.f32 %v4506, %v4512
        %v4527 = vadd.f32 %v4507, %v4512
        %v4528 = vadd.f32 %v4508, %v4512
        %v4529 = vadd.f32 %v4509, %v4512
        %4530 = vadd.xlane.f32.xlu0 %v4514
        %v4531 = vpop.xlane.xlu0 %4530
        %4532 = vadd.xlane.f32.xlu0 %v4515
        %v4533 = vpop.xlane.xlu0 %4532
        %4534 = vadd.xlane.f32.xlu0 %v4516
        %v4535 = vpop.xlane.xlu0 %4534
        %4536 = vadd.xlane.f32.xlu0 %v4517
        %v4537 = vpop.xlane.xlu0 %4536
        %4538 = vadd.xlane.f32.xlu0 %v4518
        %v4539 = vpop.xlane.xlu0 %4538
        %4540 = vadd.xlane.f32.xlu0 %v4519
        %v4541 = vpop.xlane.xlu0 %4540
        %4542 = vadd.xlane.f32.xlu0 %v4520
        %v4543 = vpop.xlane.xlu0 %4542
        %4544 = vadd.xlane.f32.xlu0 %v4521
        %v4545 = vpop.xlane.xlu0 %4544
        %4546 = vadd.xlane.f32.xlu0 %v4522
        %v4547 = vpop.xlane.xlu0 %4546
        %4548 = vadd.xlane.f32.xlu0 %v4523
        %v4549 = vpop.xlane.xlu0 %4548
        %4550 = vadd.xlane.f32.xlu0 %v4524
        %v4551 = vpop.xlane.xlu0 %4550
        %4552 = vadd.xlane.f32.xlu0 %v4525
        %v4553 = vpop.xlane.xlu0 %4552
        %4554 = vadd.xlane.f32.xlu0 %v4526
        %v4555 = vpop.xlane.xlu0 %4554
        %4556 = vadd.xlane.f32.xlu0 %v4527
        %v4557 = vpop.xlane.xlu0 %4556
        %4558 = vadd.xlane.f32.xlu0 %v4528
        %v4559 = vpop.xlane.xlu0 %4558
        %4560 = vadd.xlane.f32.xlu0 %v4529
        %v4561 = vpop.xlane.xlu0 %4560
        %v4562 = vrcp.pop 128.0
        %v4563 = vmul.f32 128.0, %v4562
        %v4564 = vsub.f32 1.0, %v4563
        %v4565 = vmul.f32 %v4562, %v4564
        %v4566 = vadd.f32 %v4562, %v4565
        %vm4567 = vweird.f32 %v4562
        %v4568 = vsel %vm4567, %v4562, %v4566
        %v4569 = vmul.f32 %v4531, %v4568
        %v4570 = vmul.f32 %v4533, %v4568
        %v4571 = vmul.f32 %v4535, %v4568
        %v4572 = vmul.f32 %v4537, %v4568
        %v4573 = vmul.f32 %v4539, %v4568
        %v4574 = vmul.f32 %v4541, %v4568
        %v4575 = vmul.f32 %v4543, %v4568
        %v4576 = vmul.f32 %v4545, %v4568
        %v4577 = vmul.f32 %v4547, %v4568
        %v4578 = vmul.f32 %v4549, %v4568
        %v4579 = vmul.f32 %v4551, %v4568
        %v4580 = vmul.f32 %v4553, %v4568
        %v4581 = vmul.f32 %v4555, %v4568
        %v4582 = vmul.f32 %v4557, %v4568
        %v4583 = vmul.f32 %v4559, %v4568
        %v4584 = vmul.f32 %v4561, %v4568
        %v4585 = vsub.f32 %v4514, %v4569
        %v4586 = vsub.f32 %v4515, %v4570
        %v4587 = vsub.f32 %v4516, %v4571
        %v4588 = vsub.f32 %v4517, %v4572
        %v4589 = vsub.f32 %v4518, %v4573
        %v4590 = vsub.f32 %v4519, %v4574
        %v4591 = vsub.f32 %v4520, %v4575
        %v4592 = vsub.f32 %v4521, %v4576
        %v4593 = vsub.f32 %v4522, %v4577
        %v4594 = vsub.f32 %v4523, %v4578
        %v4595 = vsub.f32 %v4524, %v4579
        %v4596 = vsub.f32 %v4525, %v4580
        %v4597 = vsub.f32 %v4526, %v4581
        %v4598 = vsub.f32 %v4527, %v4582
        %v4599 = vsub.f32 %v4528, %v4583
        %v4600 = vsub.f32 %v4529, %v4584
        %v4601 = vmul.f32 %v4585, %v4585
        %v4602 = vmul.f32 %v4586, %v4586
        %v4603 = vmul.f32 %v4587, %v4587
        %v4604 = vmul.f32 %v4588, %v4588
        %v4605 = vmul.f32 %v4589, %v4589
        %v4606 = vmul.f32 %v4590, %v4590
        %v4607 = vmul.f32 %v4591, %v4591
        %v4608 = vmul.f32 %v4592, %v4592
        %v4609 = vmul.f32 %v4593, %v4593
        %v4610 = vmul.f32 %v4594, %v4594
        %v4611 = vmul.f32 %v4595, %v4595
        %v4612 = vmul.f32 %v4596, %v4596
        %v4613 = vmul.f32 %v4597, %v4597
        %v4614 = vmul.f32 %v4598, %v4598
        %v4615 = vmul.f32 %v4599, %v4599
        %v4616 = vmul.f32 %v4600, %v4600
        %4617 = vadd.xlane.f32.xlu0 %v4601
        %v4618 = vpop.xlane.xlu0 %4617
        %4619 = vadd.xlane.f32.xlu0 %v4602
        %v4620 = vpop.xlane.xlu0 %4619
        %4621 = vadd.xlane.f32.xlu0 %v4603
        %v4622 = vpop.xlane.xlu0 %4621
        %4623 = vadd.xlane.f32.xlu0 %v4604
        %v4624 = vpop.xlane.xlu0 %4623
        %4625 = vadd.xlane.f32.xlu0 %v4605
        %v4626 = vpop.xlane.xlu0 %4625
        %4627 = vadd.xlane.f32.xlu0 %v4606
        %v4628 = vpop.xlane.xlu0 %4627
        %4629 = vadd.xlane.f32.xlu0 %v4607
        %v4630 = vpop.xlane.xlu0 %4629
        %4631 = vadd.xlane.f32.xlu0 %v4608
        %v4632 = vpop.xlane.xlu0 %4631
        %4633 = vadd.xlane.f32.xlu0 %v4609
        %v4634 = vpop.xlane.xlu0 %4633
        %4635 = vadd.xlane.f32.xlu0 %v4610
        %v4636 = vpop.xlane.xlu0 %4635
        %4637 = vadd.xlane.f32.xlu0 %v4611
        %v4638 = vpop.xlane.xlu0 %4637
        %4639 = vadd.xlane.f32.xlu0 %v4612
        %v4640 = vpop.xlane.xlu0 %4639
        %4641 = vadd.xlane.f32.xlu0 %v4613
        %v4642 = vpop.xlane.xlu0 %4641
        %4643 = vadd.xlane.f32.xlu0 %v4614
        %v4644 = vpop.xlane.xlu0 %4643
        %4645 = vadd.xlane.f32.xlu0 %v4615
        %v4646 = vpop.xlane.xlu0 %4645
        %4647 = vadd.xlane.f32.xlu0 %v4616
        %v4648 = vpop.xlane.xlu0 %4647
        %v4649 = vmul.f32 %v4618, %v4568
        %v4650 = vmul.f32 %v4620, %v4568
        %v4651 = vmul.f32 %v4622, %v4568
        %v4652 = vmul.f32 %v4624, %v4568
        %v4653 = vmul.f32 %v4626, %v4568
        %v4654 = vmul.f32 %v4628, %v4568
        %v4655 = vmul.f32 %v4630, %v4568
        %v4656 = vmul.f32 %v4632, %v4568
        %v4657 = vmul.f32 %v4634, %v4568
        %v4658 = vmul.f32 %v4636, %v4568
        %v4659 = vmul.f32 %v4638, %v4568
        %v4660 = vmul.f32 %v4640, %v4568
        %v4661 = vmul.f32 %v4642, %v4568
        %v4662 = vmul.f32 %v4644, %v4568
        %v4663 = vmul.f32 %v4646, %v4568
        %v4664 = vmul.f32 %v4648, %v4568
        %v4665 = vadd.f32 %v4649, 1e-05
        %v4666 = vadd.f32 %v4650, 1e-05
        %v4667 = vadd.f32 %v4651, 1e-05
        %v4668 = vadd.f32 %v4652, 1e-05
        %v4669 = vadd.f32 %v4653, 1e-05
        %v4670 = vadd.f32 %v4654, 1e-05
        %v4671 = vadd.f32 %v4655, 1e-05
        %v4672 = vadd.f32 %v4656, 1e-05
        %v4673 = vadd.f32 %v4657, 1e-05
        %v4674 = vadd.f32 %v4658, 1e-05
        %v4675 = vadd.f32 %v4659, 1e-05
        %v4676 = vadd.f32 %v4660, 1e-05
        %v4677 = vadd.f32 %v4661, 1e-05
        %v4678 = vadd.f32 %v4662, 1e-05
        %v4679 = vadd.f32 %v4663, 1e-05
        %v4680 = vadd.f32 %v4664, 1e-05
        %v4681 = vrsqrt.pop %v4665
        %v4682 = vmul.f32 %v4681, %v4665
        %v4683 = vmul.f32 %v4682, %v4681
        %v4684 = vmul.f32 0.5, %v4683
        %v4685 = vsub.f32 1.5, %v4684
        %v4686 = vmul.f32 %v4681, %v4685
        %vm4687 = vweird.f32 %v4665
        %vm4688 = vweird.f32 %v4681
        %vm4689 = vmor %vm4687, %vm4688
        %v4690 = vsel %vm4689, %v4681, %v4686
        %v4691 = vrsqrt.pop %v4666
        %v4692 = vmul.f32 %v4691, %v4666
        %v4693 = vmul.f32 %v4692, %v4691
        %v4694 = vmul.f32 0.5, %v4693
        %v4695 = vsub.f32 1.5, %v4694
        %v4696 = vmul.f32 %v4691, %v4695
        %vm4697 = vweird.f32 %v4666
        %vm4698 = vweird.f32 %v4691
        %vm4699 = vmor %vm4697, %vm4698
        %v4700 = vsel %vm4699, %v4691, %v4696
        %v4701 = vrsqrt.pop %v4667
        %v4702 = vmul.f32 %v4701, %v4667
        %v4703 = vmul.f32 %v4702, %v4701
        %v4704 = vmul.f32 0.5, %v4703
        %v4705 = vsub.f32 1.5, %v4704
        %v4706 = vmul.f32 %v4701, %v4705
        %vm4707 = vweird.f32 %v4667
        %vm4708 = vweird.f32 %v4701
        %vm4709 = vmor %vm4707, %vm4708
        %v4710 = vsel %vm4709, %v4701, %v4706
        %v4711 = vrsqrt.pop %v4668
        %v4712 = vmul.f32 %v4711, %v4668
        %v4713 = vmul.f32 %v4712, %v4711
        %v4714 = vmul.f32 0.5, %v4713
        %v4715 = vsub.f32 1.5, %v4714
        %v4716 = vmul.f32 %v4711, %v4715
        %vm4717 = vweird.f32 %v4668
        %vm4718 = vweird.f32 %v4711
        %vm4719 = vmor %vm4717, %vm4718
        %v4720 = vsel %vm4719, %v4711, %v4716
        %v4721 = vrsqrt.pop %v4669
        %v4722 = vmul.f32 %v4721, %v4669
        %v4723 = vmul.f32 %v4722, %v4721
        %v4724 = vmul.f32 0.5, %v4723
        %v4725 = vsub.f32 1.5, %v4724
        %v4726 = vmul.f32 %v4721, %v4725
        %vm4727 = vweird.f32 %v4669
        %vm4728 = vweird.f32 %v4721
        %vm4729 = vmor %vm4727, %vm4728
        %v4730 = vsel %vm4729, %v4721, %v4726
        %v4731 = vrsqrt.pop %v4670
        %v4732 = vmul.f32 %v4731, %v4670
        %v4733 = vmul.f32 %v4732, %v4731
        %v4734 = vmul.f32 0.5, %v4733
        %v4735 = vsub.f32 1.5, %v4734
        %v4736 = vmul.f32 %v4731, %v4735
        %vm4737 = vweird.f32 %v4670
        %vm4738 = vweird.f32 %v4731
        %vm4739 = vmor %vm4737, %vm4738
        %v4740 = vsel %vm4739, %v4731, %v4736
        %v4741 = vrsqrt.pop %v4671
        %v4742 = vmul.f32 %v4741, %v4671
        %v4743 = vmul.f32 %v4742, %v4741
        %v4744 = vmul.f32 0.5, %v4743
        %v4745 = vsub.f32 1.5, %v4744
        %v4746 = vmul.f32 %v4741, %v4745
        %vm4747 = vweird.f32 %v4671
        %vm4748 = vweird.f32 %v4741
        %vm4749 = vmor %vm4747, %vm4748
        %v4750 = vsel %vm4749, %v4741, %v4746
        %v4751 = vrsqrt.pop %v4672
        %v4752 = vmul.f32 %v4751, %v4672
        %v4753 = vmul.f32 %v4752, %v4751
        %v4754 = vmul.f32 0.5, %v4753
        %v4755 = vsub.f32 1.5, %v4754
        %v4756 = vmul.f32 %v4751, %v4755
        %vm4757 = vweird.f32 %v4672
        %vm4758 = vweird.f32 %v4751
        %vm4759 = vmor %vm4757, %vm4758
        %v4760 = vsel %vm4759, %v4751, %v4756
        %v4761 = vrsqrt.pop %v4673
        %v4762 = vmul.f32 %v4761, %v4673
        %v4763 = vmul.f32 %v4762, %v4761
        %v4764 = vmul.f32 0.5, %v4763
        %v4765 = vsub.f32 1.5, %v4764
        %v4766 = vmul.f32 %v4761, %v4765
        %vm4767 = vweird.f32 %v4673
        %vm4768 = vweird.f32 %v4761
        %vm4769 = vmor %vm4767, %vm4768
        %v4770 = vsel %vm4769, %v4761, %v4766
        %v4771 = vrsqrt.pop %v4674
        %v4772 = vmul.f32 %v4771, %v4674
        %v4773 = vmul.f32 %v4772, %v4771
        %v4774 = vmul.f32 0.5, %v4773
        %v4775 = vsub.f32 1.5, %v4774
        %v4776 = vmul.f32 %v4771, %v4775
        %vm4777 = vweird.f32 %v4674
        %vm4778 = vweird.f32 %v4771
        %vm4779 = vmor %vm4777, %vm4778
        %v4780 = vsel %vm4779, %v4771, %v4776
        %v4781 = vrsqrt.pop %v4675
        %v4782 = vmul.f32 %v4781, %v4675
        %v4783 = vmul.f32 %v4782, %v4781
        %v4784 = vmul.f32 0.5, %v4783
        %v4785 = vsub.f32 1.5, %v4784
        %v4786 = vmul.f32 %v4781, %v4785
        %vm4787 = vweird.f32 %v4675
        %vm4788 = vweird.f32 %v4781
        %vm4789 = vmor %vm4787, %vm4788
        %v4790 = vsel %vm4789, %v4781, %v4786
        %v4791 = vrsqrt.pop %v4676
        %v4792 = vmul.f32 %v4791, %v4676
        %v4793 = vmul.f32 %v4792, %v4791
        %v4794 = vmul.f32 0.5, %v4793
        %v4795 = vsub.f32 1.5, %v4794
        %v4796 = vmul.f32 %v4791, %v4795
        %vm4797 = vweird.f32 %v4676
        %vm4798 = vweird.f32 %v4791
        %vm4799 = vmor %vm4797, %vm4798
        %v4800 = vsel %vm4799, %v4791, %v4796
        %v4801 = vrsqrt.pop %v4677
        %v4802 = vmul.f32 %v4801, %v4677
        %v4803 = vmul.f32 %v4802, %v4801
        %v4804 = vmul.f32 0.5, %v4803
        %v4805 = vsub.f32 1.5, %v4804
        %v4806 = vmul.f32 %v4801, %v4805
        %vm4807 = vweird.f32 %v4677
        %vm4808 = vweird.f32 %v4801
        %vm4809 = vmor %vm4807, %vm4808
        %v4810 = vsel %vm4809, %v4801, %v4806
        %v4811 = vrsqrt.pop %v4678
        %v4812 = vmul.f32 %v4811, %v4678
        %v4813 = vmul.f32 %v4812, %v4811
        %v4814 = vmul.f32 0.5, %v4813
        %v4815 = vsub.f32 1.5, %v4814
        %v4816 = vmul.f32 %v4811, %v4815
        %vm4817 = vweird.f32 %v4678
        %vm4818 = vweird.f32 %v4811
        %vm4819 = vmor %vm4817, %vm4818
        %v4820 = vsel %vm4819, %v4811, %v4816
        %v4821 = vrsqrt.pop %v4679
        %v4822 = vmul.f32 %v4821, %v4679
        %v4823 = vmul.f32 %v4822, %v4821
        %v4824 = vmul.f32 0.5, %v4823
        %v4825 = vsub.f32 1.5, %v4824
        %v4826 = vmul.f32 %v4821, %v4825
        %vm4827 = vweird.f32 %v4679
        %vm4828 = vweird.f32 %v4821
        %vm4829 = vmor %vm4827, %vm4828
        %v4830 = vsel %vm4829, %v4821, %v4826
        %v4831 = vrsqrt.pop %v4680
        %v4832 = vmul.f32 %v4831, %v4680
        %v4833 = vmul.f32 %v4832, %v4831
        %v4834 = vmul.f32 0.5, %v4833
        %v4835 = vsub.f32 1.5, %v4834
        %v4836 = vmul.f32 %v4831, %v4835
        %vm4837 = vweird.f32 %v4680
        %vm4838 = vweird.f32 %v4831
        %vm4839 = vmor %vm4837, %vm4838
        %v4840 = vsel %vm4839, %v4831, %v4836
        %v4841 = vmul.f32 %v4585, %v4690
        %v4842 = vmul.f32 %v4586, %v4700
        %v4843 = vmul.f32 %v4587, %v4710
        %v4844 = vmul.f32 %v4588, %v4720
        %v4845 = vmul.f32 %v4589, %v4730
        %v4846 = vmul.f32 %v4590, %v4740
        %v4847 = vmul.f32 %v4591, %v4750
        %v4848 = vmul.f32 %v4592, %v4760
        %v4849 = vmul.f32 %v4593, %v4770
        %v4850 = vmul.f32 %v4594, %v4780
        %v4851 = vmul.f32 %v4595, %v4790
        %v4852 = vmul.f32 %v4596, %v4800
        %v4853 = vmul.f32 %v4597, %v4810
        %v4854 = vmul.f32 %v4598, %v4820
        %v4855 = vmul.f32 %v4599, %v4830
        %v4856 = vmul.f32 %v4600, %v4840
        %v4857 = vld [vmem:[%s5] sm:$0x1]
        %v4859 = vperm.slane %v4857, 0
        %v4861 = vmul.f32 %v4841, %v4859
        %v4862 = vmul.f32 %v4842, %v4859
        %v4863 = vmul.f32 %v4843, %v4859
        %v4864 = vmul.f32 %v4844, %v4859
        %v4865 = vmul.f32 %v4845, %v4859
        %v4866 = vmul.f32 %v4846, %v4859
        %v4867 = vmul.f32 %v4847, %v4859
        %v4868 = vmul.f32 %v4848, %v4859
        %v4869 = vmul.f32 %v4849, %v4859
        %v4870 = vmul.f32 %v4850, %v4859
        %v4871 = vmul.f32 %v4851, %v4859
        %v4872 = vmul.f32 %v4852, %v4859
        %v4873 = vmul.f32 %v4853, %v4859
        %v4874 = vmul.f32 %v4854, %v4859
        %v4875 = vmul.f32 %v4855, %v4859
        %v4876 = vmul.f32 %v4856, %v4859
        %v4877 = vld [vmem:[%s6] sm:$0x1]
        %v4879 = vperm.slane %v4877, 0
        %v4881 = vadd.f32 %v4861, %v4879
        %v4882 = vadd.f32 %v4862, %v4879
        %v4883 = vadd.f32 %v4863, %v4879
        %v4884 = vadd.f32 %v4864, %v4879
        %v4885 = vadd.f32 %v4865, %v4879
        %v4886 = vadd.f32 %v4866, %v4879
        %v4887 = vadd.f32 %v4867, %v4879
        %v4888 = vadd.f32 %v4868, %v4879
        %v4889 = vadd.f32 %v4869, %v4879
        %v4890 = vadd.f32 %v4870, %v4879
        %v4891 = vadd.f32 %v4871, %v4879
        %v4892 = vadd.f32 %v4872, %v4879
        %v4893 = vadd.f32 %v4873, %v4879
        %v4894 = vadd.f32 %v4874, %v4879
        %v4895 = vadd.f32 %v4875, %v4879
        %v4896 = vadd.f32 %v4876, %v4879
        %v4897 = vld [vmem:[%s7] sm:$0x1]
        %v4899 = vperm.slane %v4897, 0
        %v4901 = vmul.f32 %v4881, %v4899
        %v4902 = vmul.f32 %v4882, %v4899
        %v4903 = vmul.f32 %v4883, %v4899
        %v4904 = vmul.f32 %v4884, %v4899
        %v4905 = vmul.f32 %v4885, %v4899
        %v4906 = vmul.f32 %v4886, %v4899
        %v4907 = vmul.f32 %v4887, %v4899
        %v4908 = vmul.f32 %v4888, %v4899
        %v4909 = vmul.f32 %v4889, %v4899
        %v4910 = vmul.f32 %v4890, %v4899
        %v4911 = vmul.f32 %v4891, %v4899
        %v4912 = vmul.f32 %v4892, %v4899
        %v4913 = vmul.f32 %v4893, %v4899
        %v4914 = vmul.f32 %v4894, %v4899
        %v4915 = vmul.f32 %v4895, %v4899
        %v4916 = vmul.f32 %v4896, %v4899
        %4917 = vadd.xlane.f32.xlu0 %v4901
        %v4918 = vpop.xlane.xlu0 %4917
        %4919 = vadd.xlane.f32.xlu0 %v4902
        %v4920 = vpop.xlane.xlu0 %4919
        %4921 = vadd.xlane.f32.xlu0 %v4903
        %v4922 = vpop.xlane.xlu0 %4921
        %4923 = vadd.xlane.f32.xlu0 %v4904
        %v4924 = vpop.xlane.xlu0 %4923
        %4925 = vadd.xlane.f32.xlu0 %v4905
        %v4926 = vpop.xlane.xlu0 %4925
        %4927 = vadd.xlane.f32.xlu0 %v4906
        %v4928 = vpop.xlane.xlu0 %4927
        %4929 = vadd.xlane.f32.xlu0 %v4907
        %v4930 = vpop.xlane.xlu0 %4929
        %4931 = vadd.xlane.f32.xlu0 %v4908
        %v4932 = vpop.xlane.xlu0 %4931
        %4933 = vadd.xlane.f32.xlu0 %v4909
        %v4934 = vpop.xlane.xlu0 %4933
        %4935 = vadd.xlane.f32.xlu0 %v4910
        %v4936 = vpop.xlane.xlu0 %4935
        %4937 = vadd.xlane.f32.xlu0 %v4911
        %v4938 = vpop.xlane.xlu0 %4937
        %4939 = vadd.xlane.f32.xlu0 %v4912
        %v4940 = vpop.xlane.xlu0 %4939
        %4941 = vadd.xlane.f32.xlu0 %v4913
        %v4942 = vpop.xlane.xlu0 %4941
        %4943 = vadd.xlane.f32.xlu0 %v4914
        %v4944 = vpop.xlane.xlu0 %4943
        %4945 = vadd.xlane.f32.xlu0 %v4915
        %v4946 = vpop.xlane.xlu0 %4945
        %4947 = vadd.xlane.f32.xlu0 %v4916
        %v4948 = vpop.xlane.xlu0 %4947
        %v4949 = vld [vmem:[#allocation2] sm:$0x1]
        %v4951 = vperm.slane %v4949, 0
        %v4953 = vadd.f32 %v4918, %v4951
        %v4954 = vadd.f32 %v4920, %v4951
        %v4955 = vadd.f32 %v4922, %v4951
        %v4956 = vadd.f32 %v4924, %v4951
        %v4957 = vadd.f32 %v4926, %v4951
        %v4958 = vadd.f32 %v4928, %v4951
        %v4959 = vadd.f32 %v4930, %v4951
        %v4960 = vadd.f32 %v4932, %v4951
        %v4961 = vadd.f32 %v4934, %v4951
        %v4962 = vadd.f32 %v4936, %v4951
        %v4963 = vadd.f32 %v4938, %v4951
        %v4964 = vadd.f32 %v4940, %v4951
        %v4965 = vadd.f32 %v4942, %v4951
        %v4966 = vadd.f32 %v4944, %v4951
        %v4967 = vadd.f32 %v4946, %v4951
        %v4968 = vadd.f32 %v4948, %v4951
        %vm4969 = vcmask 7168
        %4970 = vst.msk [vmem:[%s536] sm:$0xff] %vm4969, %v4953
        %4971 = vst.msk [vmem:[%s536 + $0x8] sm:$0xff] %vm4969, %v4954
        %4972 = vst.msk [vmem:[%s536 + $0x10] sm:$0xff] %vm4969, %v4955
        %4973 = vst.msk [vmem:[%s536 + $0x18] sm:$0xff] %vm4969, %v4956
        %4974 = vst.msk [vmem:[%s536 + $0x20] sm:$0xff] %vm4969, %v4957
        %4975 = vst.msk [vmem:[%s536 + $0x28] sm:$0xff] %vm4969, %v4958
        %4976 = vst.msk [vmem:[%s536 + $0x30] sm:$0xff] %vm4969, %v4959
        %4977 = vst.msk [vmem:[%s536 + $0x38] sm:$0xff] %vm4969, %v4960
        %4978 = vst.msk [vmem:[%s536 + $0x40] sm:$0xff] %vm4969, %v4961
        %4979 = vst.msk [vmem:[%s536 + $0x48] sm:$0xff] %vm4969, %v4962
        %4980 = vst.msk [vmem:[%s536 + $0x50] sm:$0xff] %vm4969, %v4963
        %4981 = vst.msk [vmem:[%s536 + $0x58] sm:$0xff] %vm4969, %v4964
        %4982 = vst.msk [vmem:[%s536 + $0x60] sm:$0xff] %vm4969, %v4965
        %4983 = vst.msk [vmem:[%s536 + $0x68] sm:$0xff] %vm4969, %v4966
        %4984 = vst.msk [vmem:[%s536 + $0x70] sm:$0xff] %vm4969, %v4967
        %4985 = vst.msk [vmem:[%s536 + $0x78] sm:$0xff] %vm4969, %v4968
        %s4986 = smul.u32 16, %s27
        %p4987 = scmp.lt.s32.totalorder %s26, 1
        %s4988 = scalar_select %p4987, %s26, 1
        %p4989 = scmp.lt.s32.totalorder %s4986, 31
        %s4990 = scalar_select %p4989, %s4986, 31
        %s4991 = smul.addr %s4988, 32
        %s4992 = sadd.s32 %s4990, %s4991
        %s4993 = smul.addr %s4992, 8
        %s4994 = scalar_lea.vmem %s9, %s4993
        // Predicated region
        $region95: #{forward.5} parent=89 // pred_check
          %p4995 = pneg %p255
        $region96: #{forward.5} parent=89 // pred_check_branch
          %4997 = sbr.rel (%p4995) target = $region98
        $region97: #{forward.5} parent=89 // pred_region
          %s4998 = smul.u32 16, %s27
        $region98: #{forward.5} parent=89 // pred_fallthru
          _
      $region90: #{forward.5} parent=5 // pred_fallthru
        _
      %p4999 = scmp.le.s32.totalorder 2, %s17
      // Predicated region
      $region99: #{forward.5} parent=5 // pred_check
        %p5000 = pneg %p4999
      $region100: #{forward.5} parent=5 // pred_check_branch
        %5002 = sbr.rel (%p5000) target = $region102
      $region101: #{forward.5} parent=5 // pred_region
        %s5003 = ssub.s32 %s17, 2
        // Predicated region
        $region103: #{forward.5} parent=101 // pred_check
          %p5004 = pneg %p261
        $region104: #{forward.5} parent=101 // pred_check_branch
          %5006 = sbr.rel (%p5004) target = $region106
        $region105: #{forward.5} parent=101 // pred_region
          %s5007 = smul.u32 16, %s29
          %p5008 = scmp.lt.s32.totalorder %s28, 1
          %s5009 = scalar_select %p5008, %s28, 1
          %p5010 = scmp.lt.s32.totalorder %s5007, 31
          %s5011 = scalar_select %p5010, %s5007, 31
          %s5012 = smul.addr %s5009, 32
          %s5013 = sadd.s32 %s5011, %s5012
          %s5014 = smul.addr %s5013, 8
          %s5015 = scalar_lea.vmem %s9, %s5014
        $region106: #{forward.5} parent=101 // pred_fallthru
          _
      $region102: #{forward.5} parent=5 // pred_fallthru
        _
    $region6: #{forward.5} parent=1 // loop_footer
      %s21 = sadd.s32 1, %s17
    $region7: #{forward.5} parent=1 // loop_footer_branch
      %16 = sbr.rel target = $region3
    $region8: #{forward.5} parent=1 // loop_exit
      _

</llo_original>
